<compile_context>
chip_gen: v5e
topology: v5e:2x2
jax: 0.10.0
libtpu: 0.0.40
codegen_flags: <defaults>
</compile_context>

<pallas_src>
import jax
import jax.numpy as jnp
from jax.experimental import pallas as pl
from jax.experimental.pallas import tpu as pltpu


def _build_dqn_fc_kernel(out_dims):
    """Build the fused-MLP kernel for a fixed tuple of per-layer output dims."""
    n = len(out_dims)

    def kernel(*refs):
        # inputs: x, packed biases, W1..Wn (HBM)
        x_ref = refs[0]
        b_ref = refs[1]
        w_hbm = refs[2:2 + n]
        # output
        o_ref = refs[2 + n]
        # scratch: per-layer VMEM weight buffers + DMA semaphores
        w_vmem = refs[3 + n:3 + 2 * n]
        sem = refs[3 + 2 * n]

        # Kick off every weight DMA immediately.  They drain roughly in issue
        # order, so layer 1's weights land first and later layers stream in
        # underneath the (tiny) per-layer compute.
        copies = []
        for i in range(n):
            cp = pltpu.make_async_copy(w_hbm[i], w_vmem[i], sem.at[i])
            cp.start()
            copies.append(cp)

        h = x_ref[...]  # (batch, in_features) f32
        for i in range(n):
            copies[i].wait()                      # block only on this layer's W
            w = w_vmem[i][...].astype(jnp.float32)  # bf16 -> f32 (VPU, hidden under DMA)
            b = b_ref[i:i + 1, 0:out_dims[i]]       # (1, out_i) static slice
            h = jnp.dot(h, w, preferred_element_type=jnp.float32) + b
            if i < n - 1:
                h = jnp.maximum(h, 0.0)           # ReLU on fc1..fc5
        o_ref[...] = h.astype(o_ref.dtype)

    return kernel


def make_dqn_fc_params(width, height, output_num, key):
    """Init matching torch.nn.Linear default (U[-1/sqrt(in), 1/sqrt(in)]).

    Weights are (in_features, out_features) and stored in bfloat16 (HBM-byte
    optimization); biases are (1, out_features) float32.
    """
    dims = [width * height, 640, 400, 280, 180, 100, output_num]
    params = []
    for i in range(len(dims) - 1):
        fan_in, fan_out = dims[i], dims[i + 1]
        key, kw, kb = jax.random.split(key, 3)
        bound = 1.0 / (fan_in ** 0.5)
        w = jax.random.uniform(kw, (fan_in, fan_out), jnp.float32, -bound, bound)
        b = jax.random.uniform(kb, (1, fan_out), jnp.float32, -bound, bound)
        params.append((w.astype(jnp.bfloat16), b))
    return params


def dqn_fc_forward(x, params):
    batch = x.shape[0]
    n = len(params)
    out_dims = tuple(int(w.shape[1]) for w, _ in params)
    output_num = out_dims[-1]
    bias_cols = max(out_dims)

    # Pack the six biases into a single (n, max_out) f32 buffer (one DMA).
    b_rows = [
        jnp.pad(b.reshape(1, -1).astype(jnp.float32),
                ((0, 0), (0, bias_cols - b.size)))
        for _, b in params
    ]
    b_all = jnp.concatenate(b_rows, axis=0)

    weights = [w for w, _ in params]

    kernel = _build_dqn_fc_kernel(out_dims)

    vmem = pl.BlockSpec(memory_space=pltpu.MemorySpace.VMEM)
    hbm = pl.BlockSpec(memory_space=pl.ANY)

    return pl.pallas_call(
        kernel,
        out_shape=jax.ShapeDtypeStruct((batch, output_num), jnp.float32),
        in_specs=[vmem, vmem] + [hbm] * n,
        out_specs=vmem,
        scratch_shapes=[pltpu.VMEM(w.shape, w.dtype) for w in weights]
                       + [pltpu.SemaphoreType.DMA((n,))],
    )(x, b_all, *weights)


def dqn_fc_reference(x, params):
    """Plain-JAX reference (same bf16-quantized weights, f32 math)."""
    h = x
    for i, (w, b) in enumerate(params):
        h = h @ w.astype(jnp.float32) + b
        if i < len(params) - 1:
            h = jnp.maximum(h, 0.0)
    return h


if __name__ == "__main__":
    # Small shapes consistent with the module: width=16, height=16, outputNum=4, batch=2.
    width, height, output_num, batch = 16, 16, 4, 2

    key = jax.random.PRNGKey(0)
    key, kx = jax.random.split(key)
    x = jax.random.normal(kx, (batch, width * height), jnp.float32)

    params = make_dqn_fc_params(width, height, output_num, key)

    out = dqn_fc_forward(x, params)
    out = jax.block_until_ready(out)

    ref = dqn_fc_reference(x, params)
    assert out.shape == (batch, output_num)
    assert jnp.allclose(out, ref, atol=1e-2, rtol=1e-2), "Pallas output mismatch vs reference"

    print("KERNEL_OK")
</pallas_src>

<mosaic_0001>
module attributes {stable_mosaic.version = 11 : i64} {
  func.func @kernel(%arg0: memref<2x256xf32, #tpu.memory_space<vmem>>, %arg1: memref<6x640xf32, #tpu.memory_space<vmem>>, %arg2: memref<256x640xbf16, #tpu.memory_space<any>>, %arg3: memref<640x400xbf16, #tpu.memory_space<any>>, %arg4: memref<400x280xbf16, #tpu.memory_space<any>>, %arg5: memref<280x180xbf16, #tpu.memory_space<any>>, %arg6: memref<180x100xbf16, #tpu.memory_space<any>>, %arg7: memref<100x4xbf16, #tpu.memory_space<any>>, %arg8: memref<2x4xf32, #tpu.memory_space<vmem>>, %arg9: memref<256x640xbf16, #tpu.memory_space<vmem>>, %arg10: memref<640x400xbf16, #tpu.memory_space<vmem>>, %arg11: memref<400x280xbf16, #tpu.memory_space<vmem>>, %arg12: memref<280x180xbf16, #tpu.memory_space<vmem>>, %arg13: memref<180x100xbf16, #tpu.memory_space<vmem>>, %arg14: memref<100x4xbf16, #tpu.memory_space<vmem>>, %arg15: memref<6x!tpu.dma_semaphore, #tpu.memory_space<semaphore_mem>>) attributes {dimension_semantics = [], scalar_prefetch = 0 : i64, scratch_operands = 7 : i64, tpu.core_type = #tpu.core_type<tc>} {
    %c0_i32 = arith.constant 0 : i32
    %0 = tpu.memref_slice %arg15[%c0_i32] : memref<6x!tpu.dma_semaphore, #tpu.memory_space<semaphore_mem>> -> memref<1x!tpu.dma_semaphore, #tpu.memory_space<semaphore_mem>>
    %1 = tpu.memref_squeeze %0 : memref<1x!tpu.dma_semaphore, #tpu.memory_space<semaphore_mem>> -> memref<!tpu.dma_semaphore, #tpu.memory_space<semaphore_mem>>
    tpu.enqueue_dma source(%arg2 : memref<256x640xbf16, #tpu.memory_space<any>>) target(%arg9 : memref<256x640xbf16, #tpu.memory_space<vmem>>) target_semaphore(%1 : memref<!tpu.dma_semaphore, #tpu.memory_space<semaphore_mem>>)
    %c1_i32 = arith.constant 1 : i32
    %2 = tpu.memref_slice %arg15[%c1_i32] : memref<6x!tpu.dma_semaphore, #tpu.memory_space<semaphore_mem>> -> memref<1x!tpu.dma_semaphore, #tpu.memory_space<semaphore_mem>>
    %3 = tpu.memref_squeeze %2 : memref<1x!tpu.dma_semaphore, #tpu.memory_space<semaphore_mem>> -> memref<!tpu.dma_semaphore, #tpu.memory_space<semaphore_mem>>
    tpu.enqueue_dma source(%arg3 : memref<640x400xbf16, #tpu.memory_space<any>>) target(%arg10 : memref<640x400xbf16, #tpu.memory_space<vmem>>) target_semaphore(%3 : memref<!tpu.dma_semaphore, #tpu.memory_space<semaphore_mem>>)
    %c2_i32 = arith.constant 2 : i32
    %4 = tpu.memref_slice %arg15[%c2_i32] : memref<6x!tpu.dma_semaphore, #tpu.memory_space<semaphore_mem>> -> memref<1x!tpu.dma_semaphore, #tpu.memory_space<semaphore_mem>>
    %5 = tpu.memref_squeeze %4 : memref<1x!tpu.dma_semaphore, #tpu.memory_space<semaphore_mem>> -> memref<!tpu.dma_semaphore, #tpu.memory_space<semaphore_mem>>
    tpu.enqueue_dma source(%arg4 : memref<400x280xbf16, #tpu.memory_space<any>>) target(%arg11 : memref<400x280xbf16, #tpu.memory_space<vmem>>) target_semaphore(%5 : memref<!tpu.dma_semaphore, #tpu.memory_space<semaphore_mem>>)
    %c3_i32 = arith.constant 3 : i32
    %6 = tpu.memref_slice %arg15[%c3_i32] : memref<6x!tpu.dma_semaphore, #tpu.memory_space<semaphore_mem>> -> memref<1x!tpu.dma_semaphore, #tpu.memory_space<semaphore_mem>>
    %7 = tpu.memref_squeeze %6 : memref<1x!tpu.dma_semaphore, #tpu.memory_space<semaphore_mem>> -> memref<!tpu.dma_semaphore, #tpu.memory_space<semaphore_mem>>
    tpu.enqueue_dma source(%arg5 : memref<280x180xbf16, #tpu.memory_space<any>>) target(%arg12 : memref<280x180xbf16, #tpu.memory_space<vmem>>) target_semaphore(%7 : memref<!tpu.dma_semaphore, #tpu.memory_space<semaphore_mem>>)
    %c4_i32 = arith.constant 4 : i32
    %8 = tpu.memref_slice %arg15[%c4_i32] : memref<6x!tpu.dma_semaphore, #tpu.memory_space<semaphore_mem>> -> memref<1x!tpu.dma_semaphore, #tpu.memory_space<semaphore_mem>>
    %9 = tpu.memref_squeeze %8 : memref<1x!tpu.dma_semaphore, #tpu.memory_space<semaphore_mem>> -> memref<!tpu.dma_semaphore, #tpu.memory_space<semaphore_mem>>
    tpu.enqueue_dma source(%arg6 : memref<180x100xbf16, #tpu.memory_space<any>>) target(%arg13 : memref<180x100xbf16, #tpu.memory_space<vmem>>) target_semaphore(%9 : memref<!tpu.dma_semaphore, #tpu.memory_space<semaphore_mem>>)
    %c5_i32 = arith.constant 5 : i32
    %10 = tpu.memref_slice %arg15[%c5_i32] : memref<6x!tpu.dma_semaphore, #tpu.memory_space<semaphore_mem>> -> memref<1x!tpu.dma_semaphore, #tpu.memory_space<semaphore_mem>>
    %11 = tpu.memref_squeeze %10 : memref<1x!tpu.dma_semaphore, #tpu.memory_space<semaphore_mem>> -> memref<!tpu.dma_semaphore, #tpu.memory_space<semaphore_mem>>
    tpu.enqueue_dma source(%arg7 : memref<100x4xbf16, #tpu.memory_space<any>>) target(%arg14 : memref<100x4xbf16, #tpu.memory_space<vmem>>) target_semaphore(%11 : memref<!tpu.dma_semaphore, #tpu.memory_space<semaphore_mem>>)
    %c0 = arith.constant 0 : index
    %c0_0 = arith.constant 0 : index
    %12 = vector.load %arg0[%c0, %c0_0] : memref<2x256xf32, #tpu.memory_space<vmem>>, vector<2x256xf32>
    %c0_i32_1 = arith.constant 0 : i32
    %13 = tpu.memref_slice %arg15[%c0_i32_1] : memref<6x!tpu.dma_semaphore, #tpu.memory_space<semaphore_mem>> -> memref<1x!tpu.dma_semaphore, #tpu.memory_space<semaphore_mem>>
    %14 = tpu.memref_squeeze %13 : memref<1x!tpu.dma_semaphore, #tpu.memory_space<semaphore_mem>> -> memref<!tpu.dma_semaphore, #tpu.memory_space<semaphore_mem>>
    tpu.wait_dma2 semaphore(%14 : memref<!tpu.dma_semaphore, #tpu.memory_space<semaphore_mem>>) src(%arg2 : memref<256x640xbf16, #tpu.memory_space<any>>) dst(%arg9 : memref<256x640xbf16, #tpu.memory_space<vmem>>)
    %c0_2 = arith.constant 0 : index
    %c0_3 = arith.constant 0 : index
    %15 = vector.load %arg9[%c0_2, %c0_3] : memref<256x640xbf16, #tpu.memory_space<vmem>>, vector<256x640xbf16>
    %16 = arith.extf %15 : vector<256x640xbf16> to vector<256x640xf32>
    %c0_4 = arith.constant 0 : index
    %c0_5 = arith.constant 0 : index
    %17 = vector.load %arg1[%c0_4, %c0_5] : memref<6x640xf32, #tpu.memory_space<vmem>>, vector<1x640xf32>
    %cst = arith.constant dense<0.000000e+00> : vector<2x640xf32>
    %18 = tpu.matmul %12, %16, %cst {dimension_numbers = #tpu.dot_dimension_numbers<[1], [0], [0], [1], [0, 0, 1, 1], [], []>} : vector<2x256xf32>, vector<256x640xf32>, vector<2x640xf32> -> vector<2x640xf32>
    %19 = vector.broadcast %17 : vector<1x640xf32> to vector<2x640xf32>
    %20 = arith.addf %18, %19 : vector<2x640xf32>
    %cst_6 = arith.constant 0.000000e+00 : f32
    %21 = vector.broadcast %cst_6 : f32 to vector<2x640xf32>
    %22 = arith.maximumf %20, %21 : vector<2x640xf32>
    %c1_i32_7 = arith.constant 1 : i32
    %23 = tpu.memref_slice %arg15[%c1_i32_7] : memref<6x!tpu.dma_semaphore, #tpu.memory_space<semaphore_mem>> -> memref<1x!tpu.dma_semaphore, #tpu.memory_space<semaphore_mem>>
    %24 = tpu.memref_squeeze %23 : memref<1x!tpu.dma_semaphore, #tpu.memory_space<semaphore_mem>> -> memref<!tpu.dma_semaphore, #tpu.memory_space<semaphore_mem>>
    tpu.wait_dma2 semaphore(%24 : memref<!tpu.dma_semaphore, #tpu.memory_space<semaphore_mem>>) src(%arg3 : memref<640x400xbf16, #tpu.memory_space<any>>) dst(%arg10 : memref<640x400xbf16, #tpu.memory_space<vmem>>)
    %c0_8 = arith.constant 0 : index
    %c0_9 = arith.constant 0 : index
    %25 = vector.load %arg10[%c0_8, %c0_9] : memref<640x400xbf16, #tpu.memory_space<vmem>>, vector<640x400xbf16>
    %26 = arith.extf %25 : vector<640x400xbf16> to vector<640x400xf32>
    %c1 = arith.constant 1 : index
    %c0_10 = arith.constant 0 : index
    %27 = vector.load %arg1[%c1, %c0_10] : memref<6x640xf32, #tpu.memory_space<vmem>>, vector<1x400xf32>
    %cst_11 = arith.constant dense<0.000000e+00> : vector<2x400xf32>
    %28 = tpu.matmul %22, %26, %cst_11 {dimension_numbers = #tpu.dot_dimension_numbers<[1], [0], [0], [1], [0, 0, 1, 1], [], []>} : vector<2x640xf32>, vector<640x400xf32>, vector<2x400xf32> -> vector<2x400xf32>
    %29 = vector.broadcast %27 : vector<1x400xf32> to vector<2x400xf32>
    %30 = arith.addf %28, %29 : vector<2x400xf32>
    %cst_12 = arith.constant 0.000000e+00 : f32
    %31 = vector.broadcast %cst_12 : f32 to vector<2x400xf32>
    %32 = arith.maximumf %30, %31 : vector<2x400xf32>
    %c2_i32_13 = arith.constant 2 : i32
    %33 = tpu.memref_slice %arg15[%c2_i32_13] : memref<6x!tpu.dma_semaphore, #tpu.memory_space<semaphore_mem>> -> memref<1x!tpu.dma_semaphore, #tpu.memory_space<semaphore_mem>>
    %34 = tpu.memref_squeeze %33 : memref<1x!tpu.dma_semaphore, #tpu.memory_space<semaphore_mem>> -> memref<!tpu.dma_semaphore, #tpu.memory_space<semaphore_mem>>
    tpu.wait_dma2 semaphore(%34 : memref<!tpu.dma_semaphore, #tpu.memory_space<semaphore_mem>>) src(%arg4 : memref<400x280xbf16, #tpu.memory_space<any>>) dst(%arg11 : memref<400x280xbf16, #tpu.memory_space<vmem>>)
    %c0_14 = arith.constant 0 : index
    %c0_15 = arith.constant 0 : index
    %35 = vector.load %arg11[%c0_14, %c0_15] : memref<400x280xbf16, #tpu.memory_space<vmem>>, vector<400x280xbf16>
    %36 = arith.extf %35 : vector<400x280xbf16> to vector<400x280xf32>
    %c2 = arith.constant 2 : index
    %c0_16 = arith.constant 0 : index
    %37 = vector.load %arg1[%c2, %c0_16] : memref<6x640xf32, #tpu.memory_space<vmem>>, vector<1x280xf32>
    %cst_17 = arith.constant dense<0.000000e+00> : vector<2x280xf32>
    %38 = tpu.matmul %32, %36, %cst_17 {dimension_numbers = #tpu.dot_dimension_numbers<[1], [0], [0], [1], [0, 0, 1, 1], [], []>} : vector<2x400xf32>, vector<400x280xf32>, vector<2x280xf32> -> vector<2x280xf32>
    %39 = vector.broadcast %37 : vector<1x280xf32> to vector<2x280xf32>
    %40 = arith.addf %38, %39 : vector<2x280xf32>
    %cst_18 = arith.constant 0.000000e+00 : f32
    %41 = vector.broadcast %cst_18 : f32 to vector<2x280xf32>
    %42 = arith.maximumf %40, %41 : vector<2x280xf32>
    %c3_i32_19 = arith.constant 3 : i32
    %43 = tpu.memref_slice %arg15[%c3_i32_19] : memref<6x!tpu.dma_semaphore, #tpu.memory_space<semaphore_mem>> -> memref<1x!tpu.dma_semaphore, #tpu.memory_space<semaphore_mem>>
    %44 = tpu.memref_squeeze %43 : memref<1x!tpu.dma_semaphore, #tpu.memory_space<semaphore_mem>> -> memref<!tpu.dma_semaphore, #tpu.memory_space<semaphore_mem>>
    tpu.wait_dma2 semaphore(%44 : memref<!tpu.dma_semaphore, #tpu.memory_space<semaphore_mem>>) src(%arg5 : memref<280x180xbf16, #tpu.memory_space<any>>) dst(%arg12 : memref<280x180xbf16, #tpu.memory_space<vmem>>)
    %c0_20 = arith.constant 0 : index
    %c0_21 = arith.constant 0 : index
    %45 = vector.load %arg12[%c0_20, %c0_21] : memref<280x180xbf16, #tpu.memory_space<vmem>>, vector<280x180xbf16>
    %46 = arith.extf %45 : vector<280x180xbf16> to vector<280x180xf32>
    %c3 = arith.constant 3 : index
    %c0_22 = arith.constant 0 : index
    %47 = vector.load %arg1[%c3, %c0_22] : memref<6x640xf32, #tpu.memory_space<vmem>>, vector<1x180xf32>
    %cst_23 = arith.constant dense<0.000000e+00> : vector<2x180xf32>
    %48 = tpu.matmul %42, %46, %cst_23 {dimension_numbers = #tpu.dot_dimension_numbers<[1], [0], [0], [1], [0, 0, 1, 1], [], []>} : vector<2x280xf32>, vector<280x180xf32>, vector<2x180xf32> -> vector<2x180xf32>
    %49 = vector.broadcast %47 : vector<1x180xf32> to vector<2x180xf32>
    %50 = arith.addf %48, %49 : vector<2x180xf32>
    %cst_24 = arith.constant 0.000000e+00 : f32
    %51 = vector.broadcast %cst_24 : f32 to vector<2x180xf32>
    %52 = arith.maximumf %50, %51 : vector<2x180xf32>
    %c4_i32_25 = arith.constant 4 : i32
    %53 = tpu.memref_slice %arg15[%c4_i32_25] : memref<6x!tpu.dma_semaphore, #tpu.memory_space<semaphore_mem>> -> memref<1x!tpu.dma_semaphore, #tpu.memory_space<semaphore_mem>>
    %54 = tpu.memref_squeeze %53 : memref<1x!tpu.dma_semaphore, #tpu.memory_space<semaphore_mem>> -> memref<!tpu.dma_semaphore, #tpu.memory_space<semaphore_mem>>
    tpu.wait_dma2 semaphore(%54 : memref<!tpu.dma_semaphore, #tpu.memory_space<semaphore_mem>>) src(%arg6 : memref<180x100xbf16, #tpu.memory_space<any>>) dst(%arg13 : memref<180x100xbf16, #tpu.memory_space<vmem>>)
    %c0_26 = arith.constant 0 : index
    %c0_27 = arith.constant 0 : index
    %55 = vector.load %arg13[%c0_26, %c0_27] : memref<180x100xbf16, #tpu.memory_space<vmem>>, vector<180x100xbf16>
    %56 = arith.extf %55 : vector<180x100xbf16> to vector<180x100xf32>
    %c4 = arith.constant 4 : index
    %c0_28 = arith.constant 0 : index
    %57 = vector.load %arg1[%c4, %c0_28] : memref<6x640xf32, #tpu.memory_space<vmem>>, vector<1x100xf32>
    %cst_29 = arith.constant dense<0.000000e+00> : vector<2x100xf32>
    %58 = tpu.matmul %52, %56, %cst_29 {dimension_numbers = #tpu.dot_dimension_numbers<[1], [0], [0], [1], [0, 0, 1, 1], [], []>} : vector<2x180xf32>, vector<180x100xf32>, vector<2x100xf32> -> vector<2x100xf32>
    %59 = vector.broadcast %57 : vector<1x100xf32> to vector<2x100xf32>
    %60 = arith.addf %58, %59 : vector<2x100xf32>
    %cst_30 = arith.constant 0.000000e+00 : f32
    %61 = vector.broadcast %cst_30 : f32 to vector<2x100xf32>
    %62 = arith.maximumf %60, %61 : vector<2x100xf32>
    %c5_i32_31 = arith.constant 5 : i32
    %63 = tpu.memref_slice %arg15[%c5_i32_31] : memref<6x!tpu.dma_semaphore, #tpu.memory_space<semaphore_mem>> -> memref<1x!tpu.dma_semaphore, #tpu.memory_space<semaphore_mem>>
    %64 = tpu.memref_squeeze %63 : memref<1x!tpu.dma_semaphore, #tpu.memory_space<semaphore_mem>> -> memref<!tpu.dma_semaphore, #tpu.memory_space<semaphore_mem>>
    tpu.wait_dma2 semaphore(%64 : memref<!tpu.dma_semaphore, #tpu.memory_space<semaphore_mem>>) src(%arg7 : memref<100x4xbf16, #tpu.memory_space<any>>) dst(%arg14 : memref<100x4xbf16, #tpu.memory_space<vmem>>)
    %c0_32 = arith.constant 0 : index
    %c0_33 = arith.constant 0 : index
    %65 = vector.load %arg14[%c0_32, %c0_33] : memref<100x4xbf16, #tpu.memory_space<vmem>>, vector<100x4xbf16>
    %66 = arith.extf %65 : vector<100x4xbf16> to vector<100x4xf32>
    %c5 = arith.constant 5 : index
    %c0_34 = arith.constant 0 : index
    %67 = vector.load %arg1[%c5, %c0_34] : memref<6x640xf32, #tpu.memory_space<vmem>>, vector<1x4xf32>
    %cst_35 = arith.constant dense<0.000000e+00> : vector<2x4xf32>
    %68 = tpu.matmul %62, %66, %cst_35 {dimension_numbers = #tpu.dot_dimension_numbers<[1], [0], [0], [1], [0, 0, 1, 1], [], []>} : vector<2x100xf32>, vector<100x4xf32>, vector<2x4xf32> -> vector<2x4xf32>
    %69 = vector.broadcast %67 : vector<1x4xf32> to vector<2x4xf32>
    %70 = arith.addf %68, %69 : vector<2x4xf32>
    %c0_36 = arith.constant 0 : index
    %c0_37 = arith.constant 0 : index
    %71 = vector.load %arg8[%c0_36, %c0_37] : memref<2x4xf32, #tpu.memory_space<vmem>>, vector<2x4xf32>
    tpu.vector_store %arg8[%c0_36, %c0_37], %70 {strides = array<i32>} : memref<2x4xf32, #tpu.memory_space<vmem>>, vector<2x4xf32>,
    return
  }
}

</mosaic_0001>

<llo_original>
// kernel: tpu_custom_call.1
$region0: #{tpu_custom_call.1}
  #allocation0 [shape = 'u32[]', space=smem, size = 0x4, offset = 0x4, fixed_abs, tag = 'smem constant byte address 0x4 - core index']
  #allocation1 [shape = 'u32[72,128]{1,0:T(1,128)}', space=vmem, size = 0x9000, scoped, tag = 'internal scratch']
  #allocation2 [shape = 'bf16[256,640]{1,0:T(8,128)(2,1)}', space=vmem, size = 0x50000, scoped, tag = 'scratch operand']
  #allocation3 [shape = 'bf16[640,400]{1,0:T(8,128)(2,1)}', space=vmem, size = 0xa0000, scoped, tag = 'scratch operand']
  #allocation4 [shape = 'bf16[400,280]{1,0:T(8,128)(2,1)}', space=vmem, size = 0x4b000, scoped, tag = 'scratch operand']
  #allocation5 [shape = 'bf16[280,180]{1,0:T(8,128)(2,1)}', space=vmem, size = 0x23000, scoped, tag = 'scratch operand']
  #allocation6 [shape = 'bf16[180,100]{1,0:T(8,128)(2,1)}', space=vmem, size = 0xb800, scoped, tag = 'scratch operand']
  #allocation7 [shape = 'bf16[100,4]{1,0:T(8,128)(2,1)}', space=vmem, size = 0x6800, scoped, tag = 'scratch operand']
  #allocation8 [shape = 's32[6]{0}', space=sflag, size = 0x18, scoped, tag = 'scratch operand']
  #allocation11 [shape = 's32[]', space=sflag, size = 0x4, offset = 0, fixed_abs, tag = 'sflag constant byte address 0x0 - dummy sync flag']
  #allocation12 [shape = 's32[]', space=sflag, size = 0x4, offset = 0, fixed_abs, tag = 'sflag constant byte address 0x0 - dummy sync flag']
  #allocation13 [shape = 's32[]', space=sflag, size = 0x4, offset = 0, fixed_abs, tag = 'sflag constant byte address 0x0 - dummy sync flag']
  #allocation14 [shape = 's32[]', space=sflag, size = 0x4, offset = 0, fixed_abs, tag = 'sflag constant byte address 0x0 - dummy sync flag']
  #allocation15 [shape = 's32[]', space=sflag, size = 0x4, offset = 0, fixed_abs, tag = 'sflag constant byte address 0x0 - dummy sync flag']
  #allocation16 [shape = 's32[]', space=sflag, size = 0x4, offset = 0, fixed_abs, tag = 'sflag constant byte address 0x0 - dummy sync flag']
  %s0 = inlined_call_operand.vmem [shape: f32[2,256], index: 0, kind: input, shape index: {}]
  %s1 = inlined_call_operand.vmem [shape: f32[6,640], index: 1, kind: input, shape index: {}]
  %s2 = inlined_call_operand.vmem [shape: bf16[256,640], index: 2, kind: input, shape index: {}]
  %s3 = inlined_call_operand.vmem [shape: bf16[640,400], index: 3, kind: input, shape index: {}]
  %s4 = inlined_call_operand.vmem [shape: bf16[400,280], index: 4, kind: input, shape index: {}]
  %s5 = inlined_call_operand.vmem [shape: bf16[280,180], index: 5, kind: input, shape index: {}]
  %s6 = inlined_call_operand.vmem [shape: bf16[180,100], index: 6, kind: input, shape index: {}]
  %s7 = inlined_call_operand.vmem [shape: bf16[100,4], index: 7, kind: input, shape index: {}]
  %s8 = inlined_call_operand.hbm [shape: f32[2,4], index: 8, kind: output, shape index: {}]
  %s9 = sld [smem:[#allocation0]]
  $region138: #{tpu_custom_call.1} parent=0
    _
  %s11 = ssub.s32 1, %s9
  %s12 = scalar_select 0, %s11, %s9
  $region1: #{tpu_custom_call.1} parent=0
    #allocation9 [shape = 'u8[1024]{0}', space=vmem, size = 0x400, scoped, tag = 'output window, operand 0, single buffered']
    #allocation10 [shape = 's32[1]{0}', space=sflag, size = 0x4, scoped, tag = 'scoped memory for tpu_custom_call.1']
    %13 = vsyncpa [#allocation10], 0
    // Predicated region
    $region2: #{tpu_custom_call.1} parent=1 // pred_check
      _
    $region3: #{tpu_custom_call.1} parent=1 // pred_check_branch
      %15 = sbr.rel (0) target = $region5
    $region4: #{tpu_custom_call.1} parent=1 // pred_region
      _
    $region5: #{tpu_custom_call.1} parent=1 // pred_fallthru
      _
    // Predicated region
    $region6: #{tpu_custom_call.1} parent=1 // pred_check
      _
    $region7: #{tpu_custom_call.1} parent=1 // pred_check_branch
      %17 = sbr.rel (0) target = $region9
    $region8: #{tpu_custom_call.1} parent=1 // pred_region
      _
    $region9: #{tpu_custom_call.1} parent=1 // pred_fallthru
      _
    // Predicated region
    $region10: #{tpu_custom_call.1} parent=1 // pred_check
      _
    $region11: #{tpu_custom_call.1} parent=1 // pred_check_branch
      %19 = sbr.rel (0) target = $region13
    $region12: #{tpu_custom_call.1} parent=1 // pred_region
      loop: start=0, step=1, limit=1
      $region14: #{tpu_custom_call.1} parent=12 // loop_pre_header
        _
      $region15: #{tpu_custom_call.1} parent=12 // loop_header
        %s21 = sphi 0, %s25
        %p22 = scmp.ge.s32.totalorder %s21, 1
        %s26 = sphi %s2, %s2
        %s27 = sphi [#allocation2], [#allocation2]
      $region16: #{tpu_custom_call.1} parent=12 // loop_header_branch
        %24 = sbr.rel (%p22) target = $region20
      $region17: #{tpu_custom_call.1} parent=12 // loop_body
        %v28 = vld [vmem:[%s26] sm:$0xff]
        %29 = vst [vmem:[%s27] sm:$0xff] %v28
        %v30 = vld [vmem:[%s26 + $0x8] sm:$0xff]
        %31 = vst [vmem:[%s27 + $0x8] sm:$0xff] %v30
        %v32 = vld [vmem:[%s26 + $0x10] sm:$0xff]
        %33 = vst [vmem:[%s27 + $0x10] sm:$0xff] %v32
        %v34 = vld [vmem:[%s26 + $0x18] sm:$0xff]
        %35 = vst [vmem:[%s27 + $0x18] sm:$0xff] %v34
        %v36 = vld [vmem:[%s26 + $0x20] sm:$0xff]
        %37 = vst [vmem:[%s27 + $0x20] sm:$0xff] %v36
        %v38 = vld [vmem:[%s26 + $0x28] sm:$0xff]
        %39 = vst [vmem:[%s27 + $0x28] sm:$0xff] %v38
        %v40 = vld [vmem:[%s26 + $0x30] sm:$0xff]
        %41 = vst [vmem:[%s27 + $0x30] sm:$0xff] %v40
        %v42 = vld [vmem:[%s26 + $0x38] sm:$0xff]
        %43 = vst [vmem:[%s27 + $0x38] sm:$0xff] %v42
        %v44 = vld [vmem:[%s26 + $0x40] sm:$0xff]
        %45 = vst [vmem:[%s27 + $0x40] sm:$0xff] %v44
        %v46 = vld [vmem:[%s26 + $0x48] sm:$0xff]
        %47 = vst [vmem:[%s27 + $0x48] sm:$0xff] %v46
        %v48 = vld [vmem:[%s26 + $0x50] sm:$0xff]
        %49 = vst [vmem:[%s27 + $0x50] sm:$0xff] %v48
        %v50 = vld [vmem:[%s26 + $0x58] sm:$0xff]
        %51 = vst [vmem:[%s27 + $0x58] sm:$0xff] %v50
        %v52 = vld [vmem:[%s26 + $0x60] sm:$0xff]
        %53 = vst [vmem:[%s27 + $0x60] sm:$0xff] %v52
        %v54 = vld [vmem:[%s26 + $0x68] sm:$0xff]
        %55 = vst [vmem:[%s27 + $0x68] sm:$0xff] %v54
        %v56 = vld [vmem:[%s26 + $0x70] sm:$0xff]
        %57 = vst [vmem:[%s27 + $0x70] sm:$0xff] %v56
        %v58 = vld [vmem:[%s26 + $0x78] sm:$0xff]
        %59 = vst [vmem:[%s27 + $0x78] sm:$0xff] %v58
        %v60 = vld [vmem:[%s26 + $0x80] sm:$0xff]
        %61 = vst [vmem:[%s27 + $0x80] sm:$0xff] %v60
        %v62 = vld [vmem:[%s26 + $0x88] sm:$0xff]
        %63 = vst [vmem:[%s27 + $0x88] sm:$0xff] %v62
        %v64 = vld [vmem:[%s26 + $0x90] sm:$0xff]
        %65 = vst [vmem:[%s27 + $0x90] sm:$0xff] %v64
        %v66 = vld [vmem:[%s26 + $0x98] sm:$0xff]
        %67 = vst [vmem:[%s27 + $0x98] sm:$0xff] %v66
        %v68 = vld [vmem:[%s26 + $0xa0] sm:$0xff]
        %69 = vst [vmem:[%s27 + $0xa0] sm:$0xff] %v68
        %v70 = vld [vmem:[%s26 + $0xa8] sm:$0xff]
        %71 = vst [vmem:[%s27 + $0xa8] sm:$0xff] %v70
        %v72 = vld [vmem:[%s26 + $0xb0] sm:$0xff]
        %73 = vst [vmem:[%s27 + $0xb0] sm:$0xff] %v72
        %v74 = vld [vmem:[%s26 + $0xb8] sm:$0xff]
        %75 = vst [vmem:[%s27 + $0xb8] sm:$0xff] %v74
        %v76 = vld [vmem:[%s26 + $0xc0] sm:$0xff]
        %77 = vst [vmem:[%s27 + $0xc0] sm:$0xff] %v76
        %v78 = vld [vmem:[%s26 + $0xc8] sm:$0xff]
        %79 = vst [vmem:[%s27 + $0xc8] sm:$0xff] %v78
        %v80 = vld [vmem:[%s26 + $0xd0] sm:$0xff]
        %81 = vst [vmem:[%s27 + $0xd0] sm:$0xff] %v80
        %v82 = vld [vmem:[%s26 + $0xd8] sm:$0xff]
        %83 = vst [vmem:[%s27 + $0xd8] sm:$0xff] %v82
        %v84 = vld [vmem:[%s26 + $0xe0] sm:$0xff]
        %85 = vst [vmem:[%s27 + $0xe0] sm:$0xff] %v84
        %v86 = vld [vmem:[%s26 + $0xe8] sm:$0xff]
        %87 = vst [vmem:[%s27 + $0xe8] sm:$0xff] %v86
        %v88 = vld [vmem:[%s26 + $0xf0] sm:$0xff]
        %89 = vst [vmem:[%s27 + $0xf0] sm:$0xff] %v88
        %v90 = vld [vmem:[%s26 + $0xf8] sm:$0xff]
        %91 = vst [vmem:[%s27 + $0xf8] sm:$0xff] %v90
        %v92 = vld [vmem:[%s26 + $0x100] sm:$0xff]
        %93 = vst [vmem:[%s27 + $0x100] sm:$0xff] %v92
        %v94 = vld [vmem:[%s26 + $0x108] sm:$0xff]
        %95 = vst [vmem:[%s27 + $0x108] sm:$0xff] %v94
        %v96 = vld [vmem:[%s26 + $0x110] sm:$0xff]
        %97 = vst [vmem:[%s27 + $0x110] sm:$0xff] %v96
        %v98 = vld [vmem:[%s26 + $0x118] sm:$0xff]
        %99 = vst [vmem:[%s27 + $0x118] sm:$0xff] %v98
        %v100 = vld [vmem:[%s26 + $0x120] sm:$0xff]
        %101 = vst [vmem:[%s27 + $0x120] sm:$0xff] %v100
        %v102 = vld [vmem:[%s26 + $0x128] sm:$0xff]
        %103 = vst [vmem:[%s27 + $0x128] sm:$0xff] %v102
        %v104 = vld [vmem:[%s26 + $0x130] sm:$0xff]
        %105 = vst [vmem:[%s27 + $0x130] sm:$0xff] %v104
        %v106 = vld [vmem:[%s26 + $0x138] sm:$0xff]
        %107 = vst [vmem:[%s27 + $0x138] sm:$0xff] %v106
        %v108 = vld [vmem:[%s26 + $0x140] sm:$0xff]
        %109 = vst [vmem:[%s27 + $0x140] sm:$0xff] %v108
        %v110 = vld [vmem:[%s26 + $0x148] sm:$0xff]
        %111 = vst [vmem:[%s27 + $0x148] sm:$0xff] %v110
        %v112 = vld [vmem:[%s26 + $0x150] sm:$0xff]
        %113 = vst [vmem:[%s27 + $0x150] sm:$0xff] %v112
        %v114 = vld [vmem:[%s26 + $0x158] sm:$0xff]
        %115 = vst [vmem:[%s27 + $0x158] sm:$0xff] %v114
        %v116 = vld [vmem:[%s26 + $0x160] sm:$0xff]
        %117 = vst [vmem:[%s27 + $0x160] sm:$0xff] %v116
        %v118 = vld [vmem:[%s26 + $0x168] sm:$0xff]
        %119 = vst [vmem:[%s27 + $0x168] sm:$0xff] %v118
        %v120 = vld [vmem:[%s26 + $0x170] sm:$0xff]
        %121 = vst [vmem:[%s27 + $0x170] sm:$0xff] %v120
        %v122 = vld [vmem:[%s26 + $0x178] sm:$0xff]
        %123 = vst [vmem:[%s27 + $0x178] sm:$0xff] %v122
        %v124 = vld [vmem:[%s26 + $0x180] sm:$0xff]
        %125 = vst [vmem:[%s27 + $0x180] sm:$0xff] %v124
        %v126 = vld [vmem:[%s26 + $0x188] sm:$0xff]
        %127 = vst [vmem:[%s27 + $0x188] sm:$0xff] %v126
        %v128 = vld [vmem:[%s26 + $0x190] sm:$0xff]
        %129 = vst [vmem:[%s27 + $0x190] sm:$0xff] %v128
        %v130 = vld [vmem:[%s26 + $0x198] sm:$0xff]
        %131 = vst [vmem:[%s27 + $0x198] sm:$0xff] %v130
        %v132 = vld [vmem:[%s26 + $0x1a0] sm:$0xff]
        %133 = vst [vmem:[%s27 + $0x1a0] sm:$0xff] %v132
        %v134 = vld [vmem:[%s26 + $0x1a8] sm:$0xff]
        %135 = vst [vmem:[%s27 + $0x1a8] sm:$0xff] %v134
        %v136 = vld [vmem:[%s26 + $0x1b0] sm:$0xff]
        %137 = vst [vmem:[%s27 + $0x1b0] sm:$0xff] %v136
        %v138 = vld [vmem:[%s26 + $0x1b8] sm:$0xff]
        %139 = vst [vmem:[%s27 + $0x1b8] sm:$0xff] %v138
        %v140 = vld [vmem:[%s26 + $0x1c0] sm:$0xff]
        %141 = vst [vmem:[%s27 + $0x1c0] sm:$0xff] %v140
        %v142 = vld [vmem:[%s26 + $0x1c8] sm:$0xff]
        %143 = vst [vmem:[%s27 + $0x1c8] sm:$0xff] %v142
        %v144 = vld [vmem:[%s26 + $0x1d0] sm:$0xff]
        %145 = vst [vmem:[%s27 + $0x1d0] sm:$0xff] %v144
        %v146 = vld [vmem:[%s26 + $0x1d8] sm:$0xff]
        %147 = vst [vmem:[%s27 + $0x1d8] sm:$0xff] %v146
        %v148 = vld [vmem:[%s26 + $0x1e0] sm:$0xff]
        %149 = vst [vmem:[%s27 + $0x1e0] sm:$0xff] %v148
        %v150 = vld [vmem:[%s26 + $0x1e8] sm:$0xff]
        %151 = vst [vmem:[%s27 + $0x1e8] sm:$0xff] %v150
        %v152 = vld [vmem:[%s26 + $0x1f0] sm:$0xff]
        %153 = vst [vmem:[%s27 + $0x1f0] sm:$0xff] %v152
        %v154 = vld [vmem:[%s26 + $0x1f8] sm:$0xff]
        %155 = vst [vmem:[%s27 + $0x1f8] sm:$0xff] %v154
        %v156 = vld [vmem:[%s26 + $0x200] sm:$0xff]
        %157 = vst [vmem:[%s27 + $0x200] sm:$0xff] %v156
        %v158 = vld [vmem:[%s26 + $0x208] sm:$0xff]
        %159 = vst [vmem:[%s27 + $0x208] sm:$0xff] %v158
        %v160 = vld [vmem:[%s26 + $0x210] sm:$0xff]
        %161 = vst [vmem:[%s27 + $0x210] sm:$0xff] %v160
        %v162 = vld [vmem:[%s26 + $0x218] sm:$0xff]
        %163 = vst [vmem:[%s27 + $0x218] sm:$0xff] %v162
        %v164 = vld [vmem:[%s26 + $0x220] sm:$0xff]
        %165 = vst [vmem:[%s27 + $0x220] sm:$0xff] %v164
        %v166 = vld [vmem:[%s26 + $0x228] sm:$0xff]
        %167 = vst [vmem:[%s27 + $0x228] sm:$0xff] %v166
        %v168 = vld [vmem:[%s26 + $0x230] sm:$0xff]
        %169 = vst [vmem:[%s27 + $0x230] sm:$0xff] %v168
        %v170 = vld [vmem:[%s26 + $0x238] sm:$0xff]
        %171 = vst [vmem:[%s27 + $0x238] sm:$0xff] %v170
        %v172 = vld [vmem:[%s26 + $0x240] sm:$0xff]
        %173 = vst [vmem:[%s27 + $0x240] sm:$0xff] %v172
        %v174 = vld [vmem:[%s26 + $0x248] sm:$0xff]
        %175 = vst [vmem:[%s27 + $0x248] sm:$0xff] %v174
        %v176 = vld [vmem:[%s26 + $0x250] sm:$0xff]
        %177 = vst [vmem:[%s27 + $0x250] sm:$0xff] %v176
        %v178 = vld [vmem:[%s26 + $0x258] sm:$0xff]
        %179 = vst [vmem:[%s27 + $0x258] sm:$0xff] %v178
        %v180 = vld [vmem:[%s26 + $0x260] sm:$0xff]
        %181 = vst [vmem:[%s27 + $0x260] sm:$0xff] %v180
        %v182 = vld [vmem:[%s26 + $0x268] sm:$0xff]
        %183 = vst [vmem:[%s27 + $0x268] sm:$0xff] %v182
        %v184 = vld [vmem:[%s26 + $0x270] sm:$0xff]
        %185 = vst [vmem:[%s27 + $0x270] sm:$0xff] %v184
        %v186 = vld [vmem:[%s26 + $0x278] sm:$0xff]
        %187 = vst [vmem:[%s27 + $0x278] sm:$0xff] %v186
      $region18: #{tpu_custom_call.1} parent=12 // loop_footer
        %s25 = sadd.s32 1, %s21
      $region19: #{tpu_custom_call.1} parent=12 // loop_footer_branch
        %20 = sbr.rel target = $region15
      $region20: #{tpu_custom_call.1} parent=12 // loop_exit
        _
    $region13: #{tpu_custom_call.1} parent=1 // pred_fallthru
      _
    // Predicated region
    $region21: #{tpu_custom_call.1} parent=1 // pred_check
      _
    $region22: #{tpu_custom_call.1} parent=1 // pred_check_branch
      %189 = sbr.rel target = $region24
    $region23: #{tpu_custom_call.1} parent=1 // pred_region
      _
    $region24: #{tpu_custom_call.1} parent=1 // pred_fallthru
      _
    // Predicated region
    $region25: #{tpu_custom_call.1} parent=1 // pred_check
      _
    $region26: #{tpu_custom_call.1} parent=1 // pred_check_branch
      %192 = sbr.rel (0) target = $region28
    $region27: #{tpu_custom_call.1} parent=1 // pred_region
      %193 = vsyncadd [#allocation8], 10240
    $region28: #{tpu_custom_call.1} parent=1 // pred_fallthru
      _
    %s194 = scalar_lea.sflag [#allocation8], 1
    // Predicated region
    $region29: #{tpu_custom_call.1} parent=1 // pred_check
      _
    $region30: #{tpu_custom_call.1} parent=1 // pred_check_branch
      %196 = sbr.rel (0) target = $region32
    $region31: #{tpu_custom_call.1} parent=1 // pred_region
      loop: start=0, step=1, limit=1
      $region33: #{tpu_custom_call.1} parent=31 // loop_pre_header
        _
      $region34: #{tpu_custom_call.1} parent=31 // loop_header
        %s198 = sphi 0, %s202
        %p199 = scmp.ge.s32.totalorder %s198, 1
        %s203 = sphi %s3, %s3
        %s204 = sphi [#allocation3], [#allocation3]
      $region35: #{tpu_custom_call.1} parent=31 // loop_header_branch
        %201 = sbr.rel (%p199) target = $region39
      $region36: #{tpu_custom_call.1} parent=31 // loop_body
        %v205 = vld [vmem:[%s203] sm:$0xff]
        %206 = vst [vmem:[%s204] sm:$0xff] %v205
        %v207 = vld [vmem:[%s203 + $0x8] sm:$0xff]
        %208 = vst [vmem:[%s204 + $0x8] sm:$0xff] %v207
        %v209 = vld [vmem:[%s203 + $0x10] sm:$0xff]
        %210 = vst [vmem:[%s204 + $0x10] sm:$0xff] %v209
        %v211 = vld [vmem:[%s203 + $0x18] sm:$0xff]
        %212 = vst [vmem:[%s204 + $0x18] sm:$0xff] %v211
        %v213 = vld [vmem:[%s203 + $0x20] sm:$0xff]
        %214 = vst [vmem:[%s204 + $0x20] sm:$0xff] %v213
        %v215 = vld [vmem:[%s203 + $0x28] sm:$0xff]
        %216 = vst [vmem:[%s204 + $0x28] sm:$0xff] %v215
        %v217 = vld [vmem:[%s203 + $0x30] sm:$0xff]
        %218 = vst [vmem:[%s204 + $0x30] sm:$0xff] %v217
        %v219 = vld [vmem:[%s203 + $0x38] sm:$0xff]
        %220 = vst [vmem:[%s204 + $0x38] sm:$0xff] %v219
        %v221 = vld [vmem:[%s203 + $0x40] sm:$0xff]
        %222 = vst [vmem:[%s204 + $0x40] sm:$0xff] %v221
        %v223 = vld [vmem:[%s203 + $0x48] sm:$0xff]
        %224 = vst [vmem:[%s204 + $0x48] sm:$0xff] %v223
        %v225 = vld [vmem:[%s203 + $0x50] sm:$0xff]
        %226 = vst [vmem:[%s204 + $0x50] sm:$0xff] %v225
        %v227 = vld [vmem:[%s203 + $0x58] sm:$0xff]
        %228 = vst [vmem:[%s204 + $0x58] sm:$0xff] %v227
        %v229 = vld [vmem:[%s203 + $0x60] sm:$0xff]
        %230 = vst [vmem:[%s204 + $0x60] sm:$0xff] %v229
        %v231 = vld [vmem:[%s203 + $0x68] sm:$0xff]
        %232 = vst [vmem:[%s204 + $0x68] sm:$0xff] %v231
        %v233 = vld [vmem:[%s203 + $0x70] sm:$0xff]
        %234 = vst [vmem:[%s204 + $0x70] sm:$0xff] %v233
        %v235 = vld [vmem:[%s203 + $0x78] sm:$0xff]
        %236 = vst [vmem:[%s204 + $0x78] sm:$0xff] %v235
        %v237 = vld [vmem:[%s203 + $0x80] sm:$0xff]
        %238 = vst [vmem:[%s204 + $0x80] sm:$0xff] %v237
        %v239 = vld [vmem:[%s203 + $0x88] sm:$0xff]
        %240 = vst [vmem:[%s204 + $0x88] sm:$0xff] %v239
        %v241 = vld [vmem:[%s203 + $0x90] sm:$0xff]
        %242 = vst [vmem:[%s204 + $0x90] sm:$0xff] %v241
        %v243 = vld [vmem:[%s203 + $0x98] sm:$0xff]
        %244 = vst [vmem:[%s204 + $0x98] sm:$0xff] %v243
        %v245 = vld [vmem:[%s203 + $0xa0] sm:$0xff]
        %246 = vst [vmem:[%s204 + $0xa0] sm:$0xff] %v245
        %v247 = vld [vmem:[%s203 + $0xa8] sm:$0xff]
        %248 = vst [vmem:[%s204 + $0xa8] sm:$0xff] %v247
        %v249 = vld [vmem:[%s203 + $0xb0] sm:$0xff]
        %250 = vst [vmem:[%s204 + $0xb0] sm:$0xff] %v249
        %v251 = vld [vmem:[%s203 + $0xb8] sm:$0xff]
        %252 = vst [vmem:[%s204 + $0xb8] sm:$0xff] %v251
        %v253 = vld [vmem:[%s203 + $0xc0] sm:$0xff]
        %254 = vst [vmem:[%s204 + $0xc0] sm:$0xff] %v253
        %v255 = vld [vmem:[%s203 + $0xc8] sm:$0xff]
        %256 = vst [vmem:[%s204 + $0xc8] sm:$0xff] %v255
        %v257 = vld [vmem:[%s203 + $0xd0] sm:$0xff]
        %258 = vst [vmem:[%s204 + $0xd0] sm:$0xff] %v257
        %v259 = vld [vmem:[%s203 + $0xd8] sm:$0xff]
        %260 = vst [vmem:[%s204 + $0xd8] sm:$0xff] %v259
        %v261 = vld [vmem:[%s203 + $0xe0] sm:$0xff]
        %262 = vst [vmem:[%s204 + $0xe0] sm:$0xff] %v261
        %v263 = vld [vmem:[%s203 + $0xe8] sm:$0xff]
        %264 = vst [vmem:[%s204 + $0xe8] sm:$0xff] %v263
        %v265 = vld [vmem:[%s203 + $0xf0] sm:$0xff]
        %266 = vst [vmem:[%s204 + $0xf0] sm:$0xff] %v265
        %v267 = vld [vmem:[%s203 + $0xf8] sm:$0xff]
        %268 = vst [vmem:[%s204 + $0xf8] sm:$0xff] %v267
        %v269 = vld [vmem:[%s203 + $0x100] sm:$0xff]
        %270 = vst [vmem:[%s204 + $0x100] sm:$0xff] %v269
        %v271 = vld [vmem:[%s203 + $0x108] sm:$0xff]
        %272 = vst [vmem:[%s204 + $0x108] sm:$0xff] %v271
        %v273 = vld [vmem:[%s203 + $0x110] sm:$0xff]
        %274 = vst [vmem:[%s204 + $0x110] sm:$0xff] %v273
        %v275 = vld [vmem:[%s203 + $0x118] sm:$0xff]
        %276 = vst [vmem:[%s204 + $0x118] sm:$0xff] %v275
        %v277 = vld [vmem:[%s203 + $0x120] sm:$0xff]
        %278 = vst [vmem:[%s204 + $0x120] sm:$0xff] %v277
        %v279 = vld [vmem:[%s203 + $0x128] sm:$0xff]
        %280 = vst [vmem:[%s204 + $0x128] sm:$0xff] %v279
        %v281 = vld [vmem:[%s203 + $0x130] sm:$0xff]
        %282 = vst [vmem:[%s204 + $0x130] sm:$0xff] %v281
        %v283 = vld [vmem:[%s203 + $0x138] sm:$0xff]
        %284 = vst [vmem:[%s204 + $0x138] sm:$0xff] %v283
        %v285 = vld [vmem:[%s203 + $0x140] sm:$0xff]
        %286 = vst [vmem:[%s204 + $0x140] sm:$0xff] %v285
        %v287 = vld [vmem:[%s203 + $0x148] sm:$0xff]
        %288 = vst [vmem:[%s204 + $0x148] sm:$0xff] %v287
        %v289 = vld [vmem:[%s203 + $0x150] sm:$0xff]
        %290 = vst [vmem:[%s204 + $0x150] sm:$0xff] %v289
        %v291 = vld [vmem:[%s203 + $0x158] sm:$0xff]
        %292 = vst [vmem:[%s204 + $0x158] sm:$0xff] %v291
        %v293 = vld [vmem:[%s203 + $0x160] sm:$0xff]
        %294 = vst [vmem:[%s204 + $0x160] sm:$0xff] %v293
        %v295 = vld [vmem:[%s203 + $0x168] sm:$0xff]
        %296 = vst [vmem:[%s204 + $0x168] sm:$0xff] %v295
        %v297 = vld [vmem:[%s203 + $0x170] sm:$0xff]
        %298 = vst [vmem:[%s204 + $0x170] sm:$0xff] %v297
        %v299 = vld [vmem:[%s203 + $0x178] sm:$0xff]
        %300 = vst [vmem:[%s204 + $0x178] sm:$0xff] %v299
        %v301 = vld [vmem:[%s203 + $0x180] sm:$0xff]
        %302 = vst [vmem:[%s204 + $0x180] sm:$0xff] %v301
        %v303 = vld [vmem:[%s203 + $0x188] sm:$0xff]
        %304 = vst [vmem:[%s204 + $0x188] sm:$0xff] %v303
        %v305 = vld [vmem:[%s203 + $0x190] sm:$0xff]
        %306 = vst [vmem:[%s204 + $0x190] sm:$0xff] %v305
        %v307 = vld [vmem:[%s203 + $0x198] sm:$0xff]
        %308 = vst [vmem:[%s204 + $0x198] sm:$0xff] %v307
        %v309 = vld [vmem:[%s203 + $0x1a0] sm:$0xff]
        %310 = vst [vmem:[%s204 + $0x1a0] sm:$0xff] %v309
        %v311 = vld [vmem:[%s203 + $0x1a8] sm:$0xff]
        %312 = vst [vmem:[%s204 + $0x1a8] sm:$0xff] %v311
        %v313 = vld [vmem:[%s203 + $0x1b0] sm:$0xff]
        %314 = vst [vmem:[%s204 + $0x1b0] sm:$0xff] %v313
        %v315 = vld [vmem:[%s203 + $0x1b8] sm:$0xff]
        %316 = vst [vmem:[%s204 + $0x1b8] sm:$0xff] %v315
        %v317 = vld [vmem:[%s203 + $0x1c0] sm:$0xff]
        %318 = vst [vmem:[%s204 + $0x1c0] sm:$0xff] %v317
        %v319 = vld [vmem:[%s203 + $0x1c8] sm:$0xff]
        %320 = vst [vmem:[%s204 + $0x1c8] sm:$0xff] %v319
        %v321 = vld [vmem:[%s203 + $0x1d0] sm:$0xff]
        %322 = vst [vmem:[%s204 + $0x1d0] sm:$0xff] %v321
        %v323 = vld [vmem:[%s203 + $0x1d8] sm:$0xff]
        %324 = vst [vmem:[%s204 + $0x1d8] sm:$0xff] %v323
        %v325 = vld [vmem:[%s203 + $0x1e0] sm:$0xff]
        %326 = vst [vmem:[%s204 + $0x1e0] sm:$0xff] %v325
        %v327 = vld [vmem:[%s203 + $0x1e8] sm:$0xff]
        %328 = vst [vmem:[%s204 + $0x1e8] sm:$0xff] %v327
        %v329 = vld [vmem:[%s203 + $0x1f0] sm:$0xff]
        %330 = vst [vmem:[%s204 + $0x1f0] sm:$0xff] %v329
        %v331 = vld [vmem:[%s203 + $0x1f8] sm:$0xff]
        %332 = vst [vmem:[%s204 + $0x1f8] sm:$0xff] %v331
        %v333 = vld [vmem:[%s203 + $0x200] sm:$0xff]
        %334 = vst [vmem:[%s204 + $0x200] sm:$0xff] %v333
        %v335 = vld [vmem:[%s203 + $0x208] sm:$0xff]
        %336 = vst [vmem:[%s204 + $0x208] sm:$0xff] %v335
        %v337 = vld [vmem:[%s203 + $0x210] sm:$0xff]
        %338 = vst [vmem:[%s204 + $0x210] sm:$0xff] %v337
        %v339 = vld [vmem:[%s203 + $0x218] sm:$0xff]
        %340 = vst [vmem:[%s204 + $0x218] sm:$0xff] %v339
        %v341 = vld [vmem:[%s203 + $0x220] sm:$0xff]
        %342 = vst [vmem:[%s204 + $0x220] sm:$0xff] %v341
        %v343 = vld [vmem:[%s203 + $0x228] sm:$0xff]
        %344 = vst [vmem:[%s204 + $0x228] sm:$0xff] %v343
        %v345 = vld [vmem:[%s203 + $0x230] sm:$0xff]
        %346 = vst [vmem:[%s204 + $0x230] sm:$0xff] %v345
        %v347 = vld [vmem:[%s203 + $0x238] sm:$0xff]
        %348 = vst [vmem:[%s204 + $0x238] sm:$0xff] %v347
        %v349 = vld [vmem:[%s203 + $0x240] sm:$0xff]
        %350 = vst [vmem:[%s204 + $0x240] sm:$0xff] %v349
        %v351 = vld [vmem:[%s203 + $0x248] sm:$0xff]
        %352 = vst [vmem:[%s204 + $0x248] sm:$0xff] %v351
        %v353 = vld [vmem:[%s203 + $0x250] sm:$0xff]
        %354 = vst [vmem:[%s204 + $0x250] sm:$0xff] %v353
        %v355 = vld [vmem:[%s203 + $0x258] sm:$0xff]
        %356 = vst [vmem:[%s204 + $0x258] sm:$0xff] %v355
        %v357 = vld [vmem:[%s203 + $0x260] sm:$0xff]
        %358 = vst [vmem:[%s204 + $0x260] sm:$0xff] %v357
        %v359 = vld [vmem:[%s203 + $0x268] sm:$0xff]
        %360 = vst [vmem:[%s204 + $0x268] sm:$0xff] %v359
        %v361 = vld [vmem:[%s203 + $0x270] sm:$0xff]
        %362 = vst [vmem:[%s204 + $0x270] sm:$0xff] %v361
        %v363 = vld [vmem:[%s203 + $0x278] sm:$0xff]
        %364 = vst [vmem:[%s204 + $0x278] sm:$0xff] %v363
        %v365 = vld [vmem:[%s203 + $0x280] sm:$0xff]
        %366 = vst [vmem:[%s204 + $0x280] sm:$0xff] %v365
        %v367 = vld [vmem:[%s203 + $0x288] sm:$0xff]
        %368 = vst [vmem:[%s204 + $0x288] sm:$0xff] %v367
        %v369 = vld [vmem:[%s203 + $0x290] sm:$0xff]
        %370 = vst [vmem:[%s204 + $0x290] sm:$0xff] %v369
        %v371 = vld [vmem:[%s203 + $0x298] sm:$0xff]
        %372 = vst [vmem:[%s204 + $0x298] sm:$0xff] %v371
        %v373 = vld [vmem:[%s203 + $0x2a0] sm:$0xff]
        %374 = vst [vmem:[%s204 + $0x2a0] sm:$0xff] %v373
        %v375 = vld [vmem:[%s203 + $0x2a8] sm:$0xff]
        %376 = vst [vmem:[%s204 + $0x2a8] sm:$0xff] %v375
        %v377 = vld [vmem:[%s203 + $0x2b0] sm:$0xff]
        %378 = vst [vmem:[%s204 + $0x2b0] sm:$0xff] %v377
        %v379 = vld [vmem:[%s203 + $0x2b8] sm:$0xff]
        %380 = vst [vmem:[%s204 + $0x2b8] sm:$0xff] %v379
        %v381 = vld [vmem:[%s203 + $0x2c0] sm:$0xff]
        %382 = vst [vmem:[%s204 + $0x2c0] sm:$0xff] %v381
        %v383 = vld [vmem:[%s203 + $0x2c8] sm:$0xff]
        %384 = vst [vmem:[%s204 + $0x2c8] sm:$0xff] %v383
        %v385 = vld [vmem:[%s203 + $0x2d0] sm:$0xff]
        %386 = vst [vmem:[%s204 + $0x2d0] sm:$0xff] %v385
        %v387 = vld [vmem:[%s203 + $0x2d8] sm:$0xff]
        %388 = vst [vmem:[%s204 + $0x2d8] sm:$0xff] %v387
        %v389 = vld [vmem:[%s203 + $0x2e0] sm:$0xff]
        %390 = vst [vmem:[%s204 + $0x2e0] sm:$0xff] %v389
        %v391 = vld [vmem:[%s203 + $0x2e8] sm:$0xff]
        %392 = vst [vmem:[%s204 + $0x2e8] sm:$0xff] %v391
        %v393 = vld [vmem:[%s203 + $0x2f0] sm:$0xff]
        %394 = vst [vmem:[%s204 + $0x2f0] sm:$0xff] %v393
        %v395 = vld [vmem:[%s203 + $0x2f8] sm:$0xff]
        %396 = vst [vmem:[%s204 + $0x2f8] sm:$0xff] %v395
        %v397 = vld [vmem:[%s203 + $0x300] sm:$0xff]
        %398 = vst [vmem:[%s204 + $0x300] sm:$0xff] %v397
        %v399 = vld [vmem:[%s203 + $0x308] sm:$0xff]
        %400 = vst [vmem:[%s204 + $0x308] sm:$0xff] %v399
        %v401 = vld [vmem:[%s203 + $0x310] sm:$0xff]
        %402 = vst [vmem:[%s204 + $0x310] sm:$0xff] %v401
        %v403 = vld [vmem:[%s203 + $0x318] sm:$0xff]
        %404 = vst [vmem:[%s204 + $0x318] sm:$0xff] %v403
        %v405 = vld [vmem:[%s203 + $0x320] sm:$0xff]
        %406 = vst [vmem:[%s204 + $0x320] sm:$0xff] %v405
        %v407 = vld [vmem:[%s203 + $0x328] sm:$0xff]
        %408 = vst [vmem:[%s204 + $0x328] sm:$0xff] %v407
        %v409 = vld [vmem:[%s203 + $0x330] sm:$0xff]
        %410 = vst [vmem:[%s204 + $0x330] sm:$0xff] %v409
        %v411 = vld [vmem:[%s203 + $0x338] sm:$0xff]
        %412 = vst [vmem:[%s204 + $0x338] sm:$0xff] %v411
        %v413 = vld [vmem:[%s203 + $0x340] sm:$0xff]
        %414 = vst [vmem:[%s204 + $0x340] sm:$0xff] %v413
        %v415 = vld [vmem:[%s203 + $0x348] sm:$0xff]
        %416 = vst [vmem:[%s204 + $0x348] sm:$0xff] %v415
        %v417 = vld [vmem:[%s203 + $0x350] sm:$0xff]
        %418 = vst [vmem:[%s204 + $0x350] sm:$0xff] %v417
        %v419 = vld [vmem:[%s203 + $0x358] sm:$0xff]
        %420 = vst [vmem:[%s204 + $0x358] sm:$0xff] %v419
        %v421 = vld [vmem:[%s203 + $0x360] sm:$0xff]
        %422 = vst [vmem:[%s204 + $0x360] sm:$0xff] %v421
        %v423 = vld [vmem:[%s203 + $0x368] sm:$0xff]
        %424 = vst [vmem:[%s204 + $0x368] sm:$0xff] %v423
        %v425 = vld [vmem:[%s203 + $0x370] sm:$0xff]
        %426 = vst [vmem:[%s204 + $0x370] sm:$0xff] %v425
        %v427 = vld [vmem:[%s203 + $0x378] sm:$0xff]
        %428 = vst [vmem:[%s204 + $0x378] sm:$0xff] %v427
        %v429 = vld [vmem:[%s203 + $0x380] sm:$0xff]
        %430 = vst [vmem:[%s204 + $0x380] sm:$0xff] %v429
        %v431 = vld [vmem:[%s203 + $0x388] sm:$0xff]
        %432 = vst [vmem:[%s204 + $0x388] sm:$0xff] %v431
        %v433 = vld [vmem:[%s203 + $0x390] sm:$0xff]
        %434 = vst [vmem:[%s204 + $0x390] sm:$0xff] %v433
        %v435 = vld [vmem:[%s203 + $0x398] sm:$0xff]
        %436 = vst [vmem:[%s204 + $0x398] sm:$0xff] %v435
        %v437 = vld [vmem:[%s203 + $0x3a0] sm:$0xff]
        %438 = vst [vmem:[%s204 + $0x3a0] sm:$0xff] %v437
        %v439 = vld [vmem:[%s203 + $0x3a8] sm:$0xff]
        %440 = vst [vmem:[%s204 + $0x3a8] sm:$0xff] %v439
        %v441 = vld [vmem:[%s203 + $0x3b0] sm:$0xff]
        %442 = vst [vmem:[%s204 + $0x3b0] sm:$0xff] %v441
        %v443 = vld [vmem:[%s203 + $0x3b8] sm:$0xff]
        %444 = vst [vmem:[%s204 + $0x3b8] sm:$0xff] %v443
        %v445 = vld [vmem:[%s203 + $0x3c0] sm:$0xff]
        %446 = vst [vmem:[%s204 + $0x3c0] sm:$0xff] %v445
        %v447 = vld [vmem:[%s203 + $0x3c8] sm:$0xff]
        %448 = vst [vmem:[%s204 + $0x3c8] sm:$0xff] %v447
        %v449 = vld [vmem:[%s203 + $0x3d0] sm:$0xff]
        %450 = vst [vmem:[%s204 + $0x3d0] sm:$0xff] %v449
        %v451 = vld [vmem:[%s203 + $0x3d8] sm:$0xff]
        %452 = vst [vmem:[%s204 + $0x3d8] sm:$0xff] %v451
        %v453 = vld [vmem:[%s203 + $0x3e0] sm:$0xff]
        %454 = vst [vmem:[%s204 + $0x3e0] sm:$0xff] %v453
        %v455 = vld [vmem:[%s203 + $0x3e8] sm:$0xff]
        %456 = vst [vmem:[%s204 + $0x3e8] sm:$0xff] %v455
        %v457 = vld [vmem:[%s203 + $0x3f0] sm:$0xff]
        %458 = vst [vmem:[%s204 + $0x3f0] sm:$0xff] %v457
        %v459 = vld [vmem:[%s203 + $0x3f8] sm:$0xff]
        %460 = vst [vmem:[%s204 + $0x3f8] sm:$0xff] %v459
        %v461 = vld [vmem:[%s203 + $0x400] sm:$0xff]
        %462 = vst [vmem:[%s204 + $0x400] sm:$0xff] %v461
        %v463 = vld [vmem:[%s203 + $0x408] sm:$0xff]
        %464 = vst [vmem:[%s204 + $0x408] sm:$0xff] %v463
        %v465 = vld [vmem:[%s203 + $0x410] sm:$0xff]
        %466 = vst [vmem:[%s204 + $0x410] sm:$0xff] %v465
        %v467 = vld [vmem:[%s203 + $0x418] sm:$0xff]
        %468 = vst [vmem:[%s204 + $0x418] sm:$0xff] %v467
        %v469 = vld [vmem:[%s203 + $0x420] sm:$0xff]
        %470 = vst [vmem:[%s204 + $0x420] sm:$0xff] %v469
        %v471 = vld [vmem:[%s203 + $0x428] sm:$0xff]
        %472 = vst [vmem:[%s204 + $0x428] sm:$0xff] %v471
        %v473 = vld [vmem:[%s203 + $0x430] sm:$0xff]
        %474 = vst [vmem:[%s204 + $0x430] sm:$0xff] %v473
        %v475 = vld [vmem:[%s203 + $0x438] sm:$0xff]
        %476 = vst [vmem:[%s204 + $0x438] sm:$0xff] %v475
        %v477 = vld [vmem:[%s203 + $0x440] sm:$0xff]
        %478 = vst [vmem:[%s204 + $0x440] sm:$0xff] %v477
        %v479 = vld [vmem:[%s203 + $0x448] sm:$0xff]
        %480 = vst [vmem:[%s204 + $0x448] sm:$0xff] %v479
        %v481 = vld [vmem:[%s203 + $0x450] sm:$0xff]
        %482 = vst [vmem:[%s204 + $0x450] sm:$0xff] %v481
        %v483 = vld [vmem:[%s203 + $0x458] sm:$0xff]
        %484 = vst [vmem:[%s204 + $0x458] sm:$0xff] %v483
        %v485 = vld [vmem:[%s203 + $0x460] sm:$0xff]
        %486 = vst [vmem:[%s204 + $0x460] sm:$0xff] %v485
        %v487 = vld [vmem:[%s203 + $0x468] sm:$0xff]
        %488 = vst [vmem:[%s204 + $0x468] sm:$0xff] %v487
        %v489 = vld [vmem:[%s203 + $0x470] sm:$0xff]
        %490 = vst [vmem:[%s204 + $0x470] sm:$0xff] %v489
        %v491 = vld [vmem:[%s203 + $0x478] sm:$0xff]
        %492 = vst [vmem:[%s204 + $0x478] sm:$0xff] %v491
        %v493 = vld [vmem:[%s203 + $0x480] sm:$0xff]
        %494 = vst [vmem:[%s204 + $0x480] sm:$0xff] %v493
        %v495 = vld [vmem:[%s203 + $0x488] sm:$0xff]
        %496 = vst [vmem:[%s204 + $0x488] sm:$0xff] %v495
        %v497 = vld [vmem:[%s203 + $0x490] sm:$0xff]
        %498 = vst [vmem:[%s204 + $0x490] sm:$0xff] %v497
        %v499 = vld [vmem:[%s203 + $0x498] sm:$0xff]
        %500 = vst [vmem:[%s204 + $0x498] sm:$0xff] %v499
        %v501 = vld [vmem:[%s203 + $0x4a0] sm:$0xff]
        %502 = vst [vmem:[%s204 + $0x4a0] sm:$0xff] %v501
        %v503 = vld [vmem:[%s203 + $0x4a8] sm:$0xff]
        %504 = vst [vmem:[%s204 + $0x4a8] sm:$0xff] %v503
        %v505 = vld [vmem:[%s203 + $0x4b0] sm:$0xff]
        %506 = vst [vmem:[%s204 + $0x4b0] sm:$0xff] %v505
        %v507 = vld [vmem:[%s203 + $0x4b8] sm:$0xff]
        %508 = vst [vmem:[%s204 + $0x4b8] sm:$0xff] %v507
        %v509 = vld [vmem:[%s203 + $0x4c0] sm:$0xff]
        %510 = vst [vmem:[%s204 + $0x4c0] sm:$0xff] %v509
        %v511 = vld [vmem:[%s203 + $0x4c8] sm:$0xff]
        %512 = vst [vmem:[%s204 + $0x4c8] sm:$0xff] %v511
        %v513 = vld [vmem:[%s203 + $0x4d0] sm:$0xff]
        %514 = vst [vmem:[%s204 + $0x4d0] sm:$0xff] %v513
        %v515 = vld [vmem:[%s203 + $0x4d8] sm:$0xff]
        %516 = vst [vmem:[%s204 + $0x4d8] sm:$0xff] %v515
        %v517 = vld [vmem:[%s203 + $0x4e0] sm:$0xff]
        %518 = vst [vmem:[%s204 + $0x4e0] sm:$0xff] %v517
        %v519 = vld [vmem:[%s203 + $0x4e8] sm:$0xff]
        %520 = vst [vmem:[%s204 + $0x4e8] sm:$0xff] %v519
        %v521 = vld [vmem:[%s203 + $0x4f0] sm:$0xff]
        %522 = vst [vmem:[%s204 + $0x4f0] sm:$0xff] %v521
        %v523 = vld [vmem:[%s203 + $0x4f8] sm:$0xff]
        %524 = vst [vmem:[%s204 + $0x4f8] sm:$0xff] %v523
      $region37: #{tpu_custom_call.1} parent=31 // loop_footer
        %s202 = sadd.s32 1, %s198
      $region38: #{tpu_custom_call.1} parent=31 // loop_footer_branch
        %197 = sbr.rel target = $region34
      $region39: #{tpu_custom_call.1} parent=31 // loop_exit
        _
    $region32: #{tpu_custom_call.1} parent=1 // pred_fallthru
      _
    // Predicated region
    $region40: #{tpu_custom_call.1} parent=1 // pred_check
      _
    $region41: #{tpu_custom_call.1} parent=1 // pred_check_branch
      %526 = sbr.rel target = $region43
    $region42: #{tpu_custom_call.1} parent=1 // pred_region
      _
    $region43: #{tpu_custom_call.1} parent=1 // pred_fallthru
      _
    // Predicated region
    $region44: #{tpu_custom_call.1} parent=1 // pred_check
      _
    $region45: #{tpu_custom_call.1} parent=1 // pred_check_branch
      %529 = sbr.rel (0) target = $region47
    $region46: #{tpu_custom_call.1} parent=1 // pred_region
      %530 = vsyncadd %s194, 20480
    $region47: #{tpu_custom_call.1} parent=1 // pred_fallthru
      _
    %s531 = scalar_lea.sflag [#allocation8], 2
    // Predicated region
    $region48: #{tpu_custom_call.1} parent=1 // pred_check
      _
    $region49: #{tpu_custom_call.1} parent=1 // pred_check_branch
      %533 = sbr.rel (0) target = $region51
    $region50: #{tpu_custom_call.1} parent=1 // pred_region
      loop: start=0, step=1, limit=1
      $region52: #{tpu_custom_call.1} parent=50 // loop_pre_header
        _
      $region53: #{tpu_custom_call.1} parent=50 // loop_header
        %s535 = sphi 0, %s539
        %p536 = scmp.ge.s32.totalorder %s535, 1
        %s540 = sphi %s4, %s4
        %s541 = sphi [#allocation4], [#allocation4]
      $region54: #{tpu_custom_call.1} parent=50 // loop_header_branch
        %538 = sbr.rel (%p536) target = $region58
      $region55: #{tpu_custom_call.1} parent=50 // loop_body
        %v542 = vld [vmem:[%s540] sm:$0xff]
        %543 = vst [vmem:[%s541] sm:$0xff] %v542
        %v544 = vld [vmem:[%s540 + $0x8] sm:$0xff]
        %545 = vst [vmem:[%s541 + $0x8] sm:$0xff] %v544
        %v546 = vld [vmem:[%s540 + $0x10] sm:$0xff]
        %547 = vst [vmem:[%s541 + $0x10] sm:$0xff] %v546
        %v548 = vld [vmem:[%s540 + $0x18] sm:$0xff]
        %549 = vst [vmem:[%s541 + $0x18] sm:$0xff] %v548
        %v550 = vld [vmem:[%s540 + $0x20] sm:$0xff]
        %551 = vst [vmem:[%s541 + $0x20] sm:$0xff] %v550
        %v552 = vld [vmem:[%s540 + $0x28] sm:$0xff]
        %553 = vst [vmem:[%s541 + $0x28] sm:$0xff] %v552
        %v554 = vld [vmem:[%s540 + $0x30] sm:$0xff]
        %555 = vst [vmem:[%s541 + $0x30] sm:$0xff] %v554
        %v556 = vld [vmem:[%s540 + $0x38] sm:$0xff]
        %557 = vst [vmem:[%s541 + $0x38] sm:$0xff] %v556
        %v558 = vld [vmem:[%s540 + $0x40] sm:$0xff]
        %559 = vst [vmem:[%s541 + $0x40] sm:$0xff] %v558
        %v560 = vld [vmem:[%s540 + $0x48] sm:$0xff]
        %561 = vst [vmem:[%s541 + $0x48] sm:$0xff] %v560
        %v562 = vld [vmem:[%s540 + $0x50] sm:$0xff]
        %563 = vst [vmem:[%s541 + $0x50] sm:$0xff] %v562
        %v564 = vld [vmem:[%s540 + $0x58] sm:$0xff]
        %565 = vst [vmem:[%s541 + $0x58] sm:$0xff] %v564
        %v566 = vld [vmem:[%s540 + $0x60] sm:$0xff]
        %567 = vst [vmem:[%s541 + $0x60] sm:$0xff] %v566
        %v568 = vld [vmem:[%s540 + $0x68] sm:$0xff]
        %569 = vst [vmem:[%s541 + $0x68] sm:$0xff] %v568
        %v570 = vld [vmem:[%s540 + $0x70] sm:$0xff]
        %571 = vst [vmem:[%s541 + $0x70] sm:$0xff] %v570
        %v572 = vld [vmem:[%s540 + $0x78] sm:$0xff]
        %573 = vst [vmem:[%s541 + $0x78] sm:$0xff] %v572
        %v574 = vld [vmem:[%s540 + $0x80] sm:$0xff]
        %575 = vst [vmem:[%s541 + $0x80] sm:$0xff] %v574
        %v576 = vld [vmem:[%s540 + $0x88] sm:$0xff]
        %577 = vst [vmem:[%s541 + $0x88] sm:$0xff] %v576
        %v578 = vld [vmem:[%s540 + $0x90] sm:$0xff]
        %579 = vst [vmem:[%s541 + $0x90] sm:$0xff] %v578
        %v580 = vld [vmem:[%s540 + $0x98] sm:$0xff]
        %581 = vst [vmem:[%s541 + $0x98] sm:$0xff] %v580
        %v582 = vld [vmem:[%s540 + $0xa0] sm:$0xff]
        %583 = vst [vmem:[%s541 + $0xa0] sm:$0xff] %v582
        %v584 = vld [vmem:[%s540 + $0xa8] sm:$0xff]
        %585 = vst [vmem:[%s541 + $0xa8] sm:$0xff] %v584
        %v586 = vld [vmem:[%s540 + $0xb0] sm:$0xff]
        %587 = vst [vmem:[%s541 + $0xb0] sm:$0xff] %v586
        %v588 = vld [vmem:[%s540 + $0xb8] sm:$0xff]
        %589 = vst [vmem:[%s541 + $0xb8] sm:$0xff] %v588
        %v590 = vld [vmem:[%s540 + $0xc0] sm:$0xff]
        %591 = vst [vmem:[%s541 + $0xc0] sm:$0xff] %v590
        %v592 = vld [vmem:[%s540 + $0xc8] sm:$0xff]
        %593 = vst [vmem:[%s541 + $0xc8] sm:$0xff] %v592
        %v594 = vld [vmem:[%s540 + $0xd0] sm:$0xff]
        %595 = vst [vmem:[%s541 + $0xd0] sm:$0xff] %v594
        %v596 = vld [vmem:[%s540 + $0xd8] sm:$0xff]
        %597 = vst [vmem:[%s541 + $0xd8] sm:$0xff] %v596
        %v598 = vld [vmem:[%s540 + $0xe0] sm:$0xff]
        %599 = vst [vmem:[%s541 + $0xe0] sm:$0xff] %v598
        %v600 = vld [vmem:[%s540 + $0xe8] sm:$0xff]
        %601 = vst [vmem:[%s541 + $0xe8] sm:$0xff] %v600
        %v602 = vld [vmem:[%s540 + $0xf0] sm:$0xff]
        %603 = vst [vmem:[%s541 + $0xf0] sm:$0xff] %v602
        %v604 = vld [vmem:[%s540 + $0xf8] sm:$0xff]
        %605 = vst [vmem:[%s541 + $0xf8] sm:$0xff] %v604
        %v606 = vld [vmem:[%s540 + $0x100] sm:$0xff]
        %607 = vst [vmem:[%s541 + $0x100] sm:$0xff] %v606
        %v608 = vld [vmem:[%s540 + $0x108] sm:$0xff]
        %609 = vst [vmem:[%s541 + $0x108] sm:$0xff] %v608
        %v610 = vld [vmem:[%s540 + $0x110] sm:$0xff]
        %611 = vst [vmem:[%s541 + $0x110] sm:$0xff] %v610
        %v612 = vld [vmem:[%s540 + $0x118] sm:$0xff]
        %613 = vst [vmem:[%s541 + $0x118] sm:$0xff] %v612
        %v614 = vld [vmem:[%s540 + $0x120] sm:$0xff]
        %615 = vst [vmem:[%s541 + $0x120] sm:$0xff] %v614
        %v616 = vld [vmem:[%s540 + $0x128] sm:$0xff]
        %617 = vst [vmem:[%s541 + $0x128] sm:$0xff] %v616
        %v618 = vld [vmem:[%s540 + $0x130] sm:$0xff]
        %619 = vst [vmem:[%s541 + $0x130] sm:$0xff] %v618
        %v620 = vld [vmem:[%s540 + $0x138] sm:$0xff]
        %621 = vst [vmem:[%s541 + $0x138] sm:$0xff] %v620
        %v622 = vld [vmem:[%s540 + $0x140] sm:$0xff]
        %623 = vst [vmem:[%s541 + $0x140] sm:$0xff] %v622
        %v624 = vld [vmem:[%s540 + $0x148] sm:$0xff]
        %625 = vst [vmem:[%s541 + $0x148] sm:$0xff] %v624
        %v626 = vld [vmem:[%s540 + $0x150] sm:$0xff]
        %627 = vst [vmem:[%s541 + $0x150] sm:$0xff] %v626
        %v628 = vld [vmem:[%s540 + $0x158] sm:$0xff]
        %629 = vst [vmem:[%s541 + $0x158] sm:$0xff] %v628
        %v630 = vld [vmem:[%s540 + $0x160] sm:$0xff]
        %631 = vst [vmem:[%s541 + $0x160] sm:$0xff] %v630
        %v632 = vld [vmem:[%s540 + $0x168] sm:$0xff]
        %633 = vst [vmem:[%s541 + $0x168] sm:$0xff] %v632
        %v634 = vld [vmem:[%s540 + $0x170] sm:$0xff]
        %635 = vst [vmem:[%s541 + $0x170] sm:$0xff] %v634
        %v636 = vld [vmem:[%s540 + $0x178] sm:$0xff]
        %637 = vst [vmem:[%s541 + $0x178] sm:$0xff] %v636
        %v638 = vld [vmem:[%s540 + $0x180] sm:$0xff]
        %639 = vst [vmem:[%s541 + $0x180] sm:$0xff] %v638
        %v640 = vld [vmem:[%s540 + $0x188] sm:$0xff]
        %641 = vst [vmem:[%s541 + $0x188] sm:$0xff] %v640
        %v642 = vld [vmem:[%s540 + $0x190] sm:$0xff]
        %643 = vst [vmem:[%s541 + $0x190] sm:$0xff] %v642
        %v644 = vld [vmem:[%s540 + $0x198] sm:$0xff]
        %645 = vst [vmem:[%s541 + $0x198] sm:$0xff] %v644
        %v646 = vld [vmem:[%s540 + $0x1a0] sm:$0xff]
        %647 = vst [vmem:[%s541 + $0x1a0] sm:$0xff] %v646
        %v648 = vld [vmem:[%s540 + $0x1a8] sm:$0xff]
        %649 = vst [vmem:[%s541 + $0x1a8] sm:$0xff] %v648
        %v650 = vld [vmem:[%s540 + $0x1b0] sm:$0xff]
        %651 = vst [vmem:[%s541 + $0x1b0] sm:$0xff] %v650
        %v652 = vld [vmem:[%s540 + $0x1b8] sm:$0xff]
        %653 = vst [vmem:[%s541 + $0x1b8] sm:$0xff] %v652
        %v654 = vld [vmem:[%s540 + $0x1c0] sm:$0xff]
        %655 = vst [vmem:[%s541 + $0x1c0] sm:$0xff] %v654
        %v656 = vld [vmem:[%s540 + $0x1c8] sm:$0xff]
        %657 = vst [vmem:[%s541 + $0x1c8] sm:$0xff] %v656
        %v658 = vld [vmem:[%s540 + $0x1d0] sm:$0xff]
        %659 = vst [vmem:[%s541 + $0x1d0] sm:$0xff] %v658
        %v660 = vld [vmem:[%s540 + $0x1d8] sm:$0xff]
        %661 = vst [vmem:[%s541 + $0x1d8] sm:$0xff] %v660
        %v662 = vld [vmem:[%s540 + $0x1e0] sm:$0xff]
        %663 = vst [vmem:[%s541 + $0x1e0] sm:$0xff] %v662
        %v664 = vld [vmem:[%s540 + $0x1e8] sm:$0xff]
        %665 = vst [vmem:[%s541 + $0x1e8] sm:$0xff] %v664
        %v666 = vld [vmem:[%s540 + $0x1f0] sm:$0xff]
        %667 = vst [vmem:[%s541 + $0x1f0] sm:$0xff] %v666
        %v668 = vld [vmem:[%s540 + $0x1f8] sm:$0xff]
        %669 = vst [vmem:[%s541 + $0x1f8] sm:$0xff] %v668
        %v670 = vld [vmem:[%s540 + $0x200] sm:$0xff]
        %671 = vst [vmem:[%s541 + $0x200] sm:$0xff] %v670
        %v672 = vld [vmem:[%s540 + $0x208] sm:$0xff]
        %673 = vst [vmem:[%s541 + $0x208] sm:$0xff] %v672
        %v674 = vld [vmem:[%s540 + $0x210] sm:$0xff]
        %675 = vst [vmem:[%s541 + $0x210] sm:$0xff] %v674
        %v676 = vld [vmem:[%s540 + $0x218] sm:$0xff]
        %677 = vst [vmem:[%s541 + $0x218] sm:$0xff] %v676
        %v678 = vld [vmem:[%s540 + $0x220] sm:$0xff]
        %679 = vst [vmem:[%s541 + $0x220] sm:$0xff] %v678
        %v680 = vld [vmem:[%s540 + $0x228] sm:$0xff]
        %681 = vst [vmem:[%s541 + $0x228] sm:$0xff] %v680
        %v682 = vld [vmem:[%s540 + $0x230] sm:$0xff]
        %683 = vst [vmem:[%s541 + $0x230] sm:$0xff] %v682
        %v684 = vld [vmem:[%s540 + $0x238] sm:$0xff]
        %685 = vst [vmem:[%s541 + $0x238] sm:$0xff] %v684
        %v686 = vld [vmem:[%s540 + $0x240] sm:$0xff]
        %687 = vst [vmem:[%s541 + $0x240] sm:$0xff] %v686
        %v688 = vld [vmem:[%s540 + $0x248] sm:$0xff]
        %689 = vst [vmem:[%s541 + $0x248] sm:$0xff] %v688
        %v690 = vld [vmem:[%s540 + $0x250] sm:$0xff]
        %691 = vst [vmem:[%s541 + $0x250] sm:$0xff] %v690
      $region56: #{tpu_custom_call.1} parent=50 // loop_footer
        %s539 = sadd.s32 1, %s535
      $region57: #{tpu_custom_call.1} parent=50 // loop_footer_branch
        %534 = sbr.rel target = $region53
      $region58: #{tpu_custom_call.1} parent=50 // loop_exit
        _
    $region51: #{tpu_custom_call.1} parent=1 // pred_fallthru
      _
    // Predicated region
    $region59: #{tpu_custom_call.1} parent=1 // pred_check
      _
    $region60: #{tpu_custom_call.1} parent=1 // pred_check_branch
      %693 = sbr.rel target = $region62
    $region61: #{tpu_custom_call.1} parent=1 // pred_region
      _
    $region62: #{tpu_custom_call.1} parent=1 // pred_fallthru
      _
    // Predicated region
    $region63: #{tpu_custom_call.1} parent=1 // pred_check
      _
    $region64: #{tpu_custom_call.1} parent=1 // pred_check_branch
      %696 = sbr.rel (0) target = $region66
    $region65: #{tpu_custom_call.1} parent=1 // pred_region
      %697 = vsyncadd %s531, 9600
    $region66: #{tpu_custom_call.1} parent=1 // pred_fallthru
      _
    %s698 = scalar_lea.sflag [#allocation8], 3
    // Predicated region
    $region67: #{tpu_custom_call.1} parent=1 // pred_check
      _
    $region68: #{tpu_custom_call.1} parent=1 // pred_check_branch
      %700 = sbr.rel (0) target = $region70
    $region69: #{tpu_custom_call.1} parent=1 // pred_region
      loop: start=0, step=1, limit=1
      $region71: #{tpu_custom_call.1} parent=69 // loop_pre_header
        _
      $region72: #{tpu_custom_call.1} parent=69 // loop_header
        %s702 = sphi 0, %s706
        %p703 = scmp.ge.s32.totalorder %s702, 1
        %s707 = sphi %s5, %s5
        %s708 = sphi [#allocation5], [#allocation5]
      $region73: #{tpu_custom_call.1} parent=69 // loop_header_branch
        %705 = sbr.rel (%p703) target = $region77
      $region74: #{tpu_custom_call.1} parent=69 // loop_body
        %v709 = vld [vmem:[%s707] sm:$0xff]
        %710 = vst [vmem:[%s708] sm:$0xff] %v709
        %v711 = vld [vmem:[%s707 + $0x8] sm:$0xff]
        %712 = vst [vmem:[%s708 + $0x8] sm:$0xff] %v711
        %v713 = vld [vmem:[%s707 + $0x10] sm:$0xff]
        %714 = vst [vmem:[%s708 + $0x10] sm:$0xff] %v713
        %v715 = vld [vmem:[%s707 + $0x18] sm:$0xff]
        %716 = vst [vmem:[%s708 + $0x18] sm:$0xff] %v715
        %v717 = vld [vmem:[%s707 + $0x20] sm:$0xff]
        %718 = vst [vmem:[%s708 + $0x20] sm:$0xff] %v717
        %v719 = vld [vmem:[%s707 + $0x28] sm:$0xff]
        %720 = vst [vmem:[%s708 + $0x28] sm:$0xff] %v719
        %v721 = vld [vmem:[%s707 + $0x30] sm:$0xff]
        %722 = vst [vmem:[%s708 + $0x30] sm:$0xff] %v721
        %v723 = vld [vmem:[%s707 + $0x38] sm:$0xff]
        %724 = vst [vmem:[%s708 + $0x38] sm:$0xff] %v723
        %v725 = vld [vmem:[%s707 + $0x40] sm:$0xff]
        %726 = vst [vmem:[%s708 + $0x40] sm:$0xff] %v725
        %v727 = vld [vmem:[%s707 + $0x48] sm:$0xff]
        %728 = vst [vmem:[%s708 + $0x48] sm:$0xff] %v727
        %v729 = vld [vmem:[%s707 + $0x50] sm:$0xff]
        %730 = vst [vmem:[%s708 + $0x50] sm:$0xff] %v729
        %v731 = vld [vmem:[%s707 + $0x58] sm:$0xff]
        %732 = vst [vmem:[%s708 + $0x58] sm:$0xff] %v731
        %v733 = vld [vmem:[%s707 + $0x60] sm:$0xff]
        %734 = vst [vmem:[%s708 + $0x60] sm:$0xff] %v733
        %v735 = vld [vmem:[%s707 + $0x68] sm:$0xff]
        %736 = vst [vmem:[%s708 + $0x68] sm:$0xff] %v735
        %v737 = vld [vmem:[%s707 + $0x70] sm:$0xff]
        %738 = vst [vmem:[%s708 + $0x70] sm:$0xff] %v737
        %v739 = vld [vmem:[%s707 + $0x78] sm:$0xff]
        %740 = vst [vmem:[%s708 + $0x78] sm:$0xff] %v739
        %v741 = vld [vmem:[%s707 + $0x80] sm:$0xff]
        %742 = vst [vmem:[%s708 + $0x80] sm:$0xff] %v741
        %v743 = vld [vmem:[%s707 + $0x88] sm:$0xff]
        %744 = vst [vmem:[%s708 + $0x88] sm:$0xff] %v743
        %v745 = vld [vmem:[%s707 + $0x90] sm:$0xff]
        %746 = vst [vmem:[%s708 + $0x90] sm:$0xff] %v745
        %v747 = vld [vmem:[%s707 + $0x98] sm:$0xff]
        %748 = vst [vmem:[%s708 + $0x98] sm:$0xff] %v747
        %v749 = vld [vmem:[%s707 + $0xa0] sm:$0xff]
        %750 = vst [vmem:[%s708 + $0xa0] sm:$0xff] %v749
        %v751 = vld [vmem:[%s707 + $0xa8] sm:$0xff]
        %752 = vst [vmem:[%s708 + $0xa8] sm:$0xff] %v751
        %v753 = vld [vmem:[%s707 + $0xb0] sm:$0xff]
        %754 = vst [vmem:[%s708 + $0xb0] sm:$0xff] %v753
        %v755 = vld [vmem:[%s707 + $0xb8] sm:$0xff]
        %756 = vst [vmem:[%s708 + $0xb8] sm:$0xff] %v755
        %v757 = vld [vmem:[%s707 + $0xc0] sm:$0xff]
        %758 = vst [vmem:[%s708 + $0xc0] sm:$0xff] %v757
        %v759 = vld [vmem:[%s707 + $0xc8] sm:$0xff]
        %760 = vst [vmem:[%s708 + $0xc8] sm:$0xff] %v759
        %v761 = vld [vmem:[%s707 + $0xd0] sm:$0xff]
        %762 = vst [vmem:[%s708 + $0xd0] sm:$0xff] %v761
        %v763 = vld [vmem:[%s707 + $0xd8] sm:$0xff]
        %764 = vst [vmem:[%s708 + $0xd8] sm:$0xff] %v763
        %v765 = vld [vmem:[%s707 + $0xe0] sm:$0xff]
        %766 = vst [vmem:[%s708 + $0xe0] sm:$0xff] %v765
        %v767 = vld [vmem:[%s707 + $0xe8] sm:$0xff]
        %768 = vst [vmem:[%s708 + $0xe8] sm:$0xff] %v767
        %v769 = vld [vmem:[%s707 + $0xf0] sm:$0xff]
        %770 = vst [vmem:[%s708 + $0xf0] sm:$0xff] %v769
        %v771 = vld [vmem:[%s707 + $0xf8] sm:$0xff]
        %772 = vst [vmem:[%s708 + $0xf8] sm:$0xff] %v771
        %v773 = vld [vmem:[%s707 + $0x100] sm:$0xff]
        %774 = vst [vmem:[%s708 + $0x100] sm:$0xff] %v773
        %v775 = vld [vmem:[%s707 + $0x108] sm:$0xff]
        %776 = vst [vmem:[%s708 + $0x108] sm:$0xff] %v775
        %v777 = vld [vmem:[%s707 + $0x110] sm:$0xff]
        %778 = vst [vmem:[%s708 + $0x110] sm:$0xff] %v777
      $region75: #{tpu_custom_call.1} parent=69 // loop_footer
        %s706 = sadd.s32 1, %s702
      $region76: #{tpu_custom_call.1} parent=69 // loop_footer_branch
        %701 = sbr.rel target = $region72
      $region77: #{tpu_custom_call.1} parent=69 // loop_exit
        _
    $region70: #{tpu_custom_call.1} parent=1 // pred_fallthru
      _
    // Predicated region
    $region78: #{tpu_custom_call.1} parent=1 // pred_check
      _
    $region79: #{tpu_custom_call.1} parent=1 // pred_check_branch
      %780 = sbr.rel target = $region81
    $region80: #{tpu_custom_call.1} parent=1 // pred_region
      _
    $region81: #{tpu_custom_call.1} parent=1 // pred_fallthru
      _
    // Predicated region
    $region82: #{tpu_custom_call.1} parent=1 // pred_check
      _
    $region83: #{tpu_custom_call.1} parent=1 // pred_check_branch
      %783 = sbr.rel (0) target = $region85
    $region84: #{tpu_custom_call.1} parent=1 // pred_region
      %784 = vsyncadd %s698, 4480
    $region85: #{tpu_custom_call.1} parent=1 // pred_fallthru
      _
    %s785 = scalar_lea.sflag [#allocation8], 4
    // Predicated region
    $region86: #{tpu_custom_call.1} parent=1 // pred_check
      _
    $region87: #{tpu_custom_call.1} parent=1 // pred_check_branch
      %787 = sbr.rel (0) target = $region89
    $region88: #{tpu_custom_call.1} parent=1 // pred_region
      %s788 = scalar_lea.vmem %s6, 88
      %s789 = scalar_lea.vmem [#allocation6], 88
      loop: start=0, step=1, limit=1
      $region90: #{tpu_custom_call.1} parent=88 // loop_pre_header
        _
      $region91: #{tpu_custom_call.1} parent=88 // loop_header
        %s791 = sphi 0, %s795
        %p792 = scmp.ge.s32.totalorder %s791, 1
        %s796 = sphi %s6, %s6
        %s797 = sphi [#allocation6], [#allocation6]
      $region92: #{tpu_custom_call.1} parent=88 // loop_header_branch
        %794 = sbr.rel (%p792) target = $region96
      $region93: #{tpu_custom_call.1} parent=88 // loop_body
        %v798 = vld [vmem:[%s796] sm:$0xff]
        %799 = vst [vmem:[%s797] sm:$0xff] %v798
        %v800 = vld [vmem:[%s796 + $0x8] sm:$0xff]
        %801 = vst [vmem:[%s797 + $0x8] sm:$0xff] %v800
        %v802 = vld [vmem:[%s796 + $0x10] sm:$0xff]
        %803 = vst [vmem:[%s797 + $0x10] sm:$0xff] %v802
        %v804 = vld [vmem:[%s796 + $0x18] sm:$0xff]
        %805 = vst [vmem:[%s797 + $0x18] sm:$0xff] %v804
        %v806 = vld [vmem:[%s796 + $0x20] sm:$0xff]
        %807 = vst [vmem:[%s797 + $0x20] sm:$0xff] %v806
        %v808 = vld [vmem:[%s796 + $0x28] sm:$0xff]
        %809 = vst [vmem:[%s797 + $0x28] sm:$0xff] %v808
        %v810 = vld [vmem:[%s796 + $0x30] sm:$0xff]
        %811 = vst [vmem:[%s797 + $0x30] sm:$0xff] %v810
        %v812 = vld [vmem:[%s796 + $0x38] sm:$0xff]
        %813 = vst [vmem:[%s797 + $0x38] sm:$0xff] %v812
        %v814 = vld [vmem:[%s796 + $0x40] sm:$0xff]
        %815 = vst [vmem:[%s797 + $0x40] sm:$0xff] %v814
        %v816 = vld [vmem:[%s796 + $0x48] sm:$0xff]
        %817 = vst [vmem:[%s797 + $0x48] sm:$0xff] %v816
        %v818 = vld [vmem:[%s796 + $0x50] sm:$0xff]
        %819 = vst [vmem:[%s797 + $0x50] sm:$0xff] %v818
      $region94: #{tpu_custom_call.1} parent=88 // loop_footer
        %s795 = sadd.s32 1, %s791
      $region95: #{tpu_custom_call.1} parent=88 // loop_footer_branch
        %790 = sbr.rel target = $region91
      $region96: #{tpu_custom_call.1} parent=88 // loop_exit
        _
      %s821 = ssub.s32 16, 1
      loop: start=0, step=1, limit=1
      $region97: #{tpu_custom_call.1} parent=88 // loop_pre_header
        _
      $region98: #{tpu_custom_call.1} parent=88 // loop_header
        %s823 = sphi 0, %s827
        %p824 = scmp.ge.s32.totalorder %s823, 1
        %s828 = sphi %s788, %s788
        %s829 = sphi %s789, %s789
      $region99: #{tpu_custom_call.1} parent=88 // loop_header_branch
        %826 = sbr.rel (%p824) target = $region103
      $region100: #{tpu_custom_call.1} parent=88 // loop_body
        %v830 = vld [vmem:[%s828] sm:%s821]
        %831 = vst [vmem:[%s829] sm:%s821] %v830
      $region101: #{tpu_custom_call.1} parent=88 // loop_footer
        %s827 = sadd.s32 1, %s823
      $region102: #{tpu_custom_call.1} parent=88 // loop_footer_branch
        %822 = sbr.rel target = $region98
      $region103: #{tpu_custom_call.1} parent=88 // loop_exit
        _
    $region89: #{tpu_custom_call.1} parent=1 // pred_fallthru
      _
    // Predicated region
    $region104: #{tpu_custom_call.1} parent=1 // pred_check
      _
    $region105: #{tpu_custom_call.1} parent=1 // pred_check_branch
      %834 = sbr.rel (0) target = $region107
    $region106: #{tpu_custom_call.1} parent=1 // pred_region
      %835 = vsyncadd %s785, 1472
    $region107: #{tpu_custom_call.1} parent=1 // pred_fallthru
      _
    %s836 = scalar_lea.sflag [#allocation8], 5
    // Predicated region
    $region108: #{tpu_custom_call.1} parent=1 // pred_check
      _
    $region109: #{tpu_custom_call.1} parent=1 // pred_check_branch
      %838 = sbr.rel (0) target = $region111
    $region110: #{tpu_custom_call.1} parent=1 // pred_region
      %s839 = scalar_lea.vmem %s7, 48
      %s840 = scalar_lea.vmem [#allocation7], 48
      loop: start=0, step=1, limit=1
      $region112: #{tpu_custom_call.1} parent=110 // loop_pre_header
        _
      $region113: #{tpu_custom_call.1} parent=110 // loop_header
        %s842 = sphi 0, %s846
        %p843 = scmp.ge.s32.totalorder %s842, 1
        %s847 = sphi %s7, %s7
        %s848 = sphi [#allocation7], [#allocation7]
      $region114: #{tpu_custom_call.1} parent=110 // loop_header_branch
        %845 = sbr.rel (%p843) target = $region118
      $region115: #{tpu_custom_call.1} parent=110 // loop_body
        %v849 = vld [vmem:[%s847] sm:$0xff]
        %850 = vst [vmem:[%s848] sm:$0xff] %v849
        %v851 = vld [vmem:[%s847 + $0x8] sm:$0xff]
        %852 = vst [vmem:[%s848 + $0x8] sm:$0xff] %v851
        %v853 = vld [vmem:[%s847 + $0x10] sm:$0xff]
        %854 = vst [vmem:[%s848 + $0x10] sm:$0xff] %v853
        %v855 = vld [vmem:[%s847 + $0x18] sm:$0xff]
        %856 = vst [vmem:[%s848 + $0x18] sm:$0xff] %v855
        %v857 = vld [vmem:[%s847 + $0x20] sm:$0xff]
        %858 = vst [vmem:[%s848 + $0x20] sm:$0xff] %v857
        %v859 = vld [vmem:[%s847 + $0x28] sm:$0xff]
        %860 = vst [vmem:[%s848 + $0x28] sm:$0xff] %v859
      $region116: #{tpu_custom_call.1} parent=110 // loop_footer
        %s846 = sadd.s32 1, %s842
      $region117: #{tpu_custom_call.1} parent=110 // loop_footer_branch
        %841 = sbr.rel target = $region113
      $region118: #{tpu_custom_call.1} parent=110 // loop_exit
        _
      %s862 = ssub.s32 16, 1
      loop: start=0, step=1, limit=1
      $region119: #{tpu_custom_call.1} parent=110 // loop_pre_header
        _
      $region120: #{tpu_custom_call.1} parent=110 // loop_header
        %s864 = sphi 0, %s868
        %p865 = scmp.ge.s32.totalorder %s864, 1
        %s869 = sphi %s839, %s839
        %s870 = sphi %s840, %s840
      $region121: #{tpu_custom_call.1} parent=110 // loop_header_branch
        %867 = sbr.rel (%p865) target = $region125
      $region122: #{tpu_custom_call.1} parent=110 // loop_body
        %v871 = vld [vmem:[%s869] sm:%s862]
        %872 = vst [vmem:[%s870] sm:%s862] %v871
      $region123: #{tpu_custom_call.1} parent=110 // loop_footer
        %s868 = sadd.s32 1, %s864
      $region124: #{tpu_custom_call.1} parent=110 // loop_footer_branch
        %863 = sbr.rel target = $region120
      $region125: #{tpu_custom_call.1} parent=110 // loop_exit
        _
    $region111: #{tpu_custom_call.1} parent=1 // pred_fallthru
      _
    // Predicated region
    $region126: #{tpu_custom_call.1} parent=1 // pred_check
      _
    $region127: #{tpu_custom_call.1} parent=1 // pred_check_branch
      %875 = sbr.rel (0) target = $region129
    $region128: #{tpu_custom_call.1} parent=1 // pred_region
      %876 = vsyncadd %s836, 832
    $region129: #{tpu_custom_call.1} parent=1 // pred_fallthru
      _
    %v877 = vld [vmem:[%s0] sm:$0xf]
    %s878 = smul.u32 4, 32
    %s879 = smul.u32 %s878, 5
    %s880 = sshll.u32 %s879, 4
    %881 = dma.done [#allocation8], %s880
    %v882 = vld [vmem:[#allocation2] sm:$0xff]
    %v883 = vld [vmem:[#allocation2 + $0x8] sm:$0xff]
    %v884 = vld [vmem:[#allocation2 + $0x10] sm:$0xf]
    %v885 = vld [vmem:[#allocation2 + $0x14] sm:$0xff]
    %v886 = vld [vmem:[#allocation2 + $0x1c] sm:$0xff]
    %v887 = vld [vmem:[#allocation2 + $0x24] sm:$0xf]
    %v888 = vld [vmem:[#allocation2 + $0x28] sm:$0xff]
    %v889 = vld [vmem:[#allocation2 + $0x30] sm:$0xff]
    %v890 = vld [vmem:[#allocation2 + $0x38] sm:$0xf]
    %v891 = vld [vmem:[#allocation2 + $0x3c] sm:$0xff]
    %v892 = vld [vmem:[#allocation2 + $0x44] sm:$0xff]
    %v893 = vld [vmem:[#allocation2 + $0x4c] sm:$0xf]
    %v894 = vld [vmem:[#allocation2 + $0x50] sm:$0xff]
    %v895 = vld [vmem:[#allocation2 + $0x58] sm:$0xff]
    %v896 = vld [vmem:[#allocation2 + $0x60] sm:$0xf]
    %v897 = vld [vmem:[#allocation2 + $0x64] sm:$0xff]
    %v898 = vld [vmem:[#allocation2 + $0x6c] sm:$0xff]
    %v899 = vld [vmem:[#allocation2 + $0x74] sm:$0xf]
    %v900 = vld [vmem:[#allocation2 + $0x78] sm:$0xff]
    %v901 = vld [vmem:[#allocation2 + $0x80] sm:$0xff]
    %v902 = vld [vmem:[#allocation2 + $0x88] sm:$0xf]
    %v903 = vld [vmem:[#allocation2 + $0x8c] sm:$0xff]
    %v904 = vld [vmem:[#allocation2 + $0x94] sm:$0xff]
    %v905 = vld [vmem:[#allocation2 + $0x9c] sm:$0xf]
    %v906 = vld [vmem:[#allocation2 + $0xa0] sm:$0xff]
    %v907 = vld [vmem:[#allocation2 + $0xa8] sm:$0xff]
    %v908 = vld [vmem:[#allocation2 + $0xb0] sm:$0xf]
    %v909 = vld [vmem:[#allocation2 + $0xb4] sm:$0xff]
    %v910 = vld [vmem:[#allocation2 + $0xbc] sm:$0xff]
    %v911 = vld [vmem:[#allocation2 + $0xc4] sm:$0xf]
    %v912 = vld [vmem:[#allocation2 + $0xc8] sm:$0xff]
    %v913 = vld [vmem:[#allocation2 + $0xd0] sm:$0xff]
    %v914 = vld [vmem:[#allocation2 + $0xd8] sm:$0xf]
    %v915 = vld [vmem:[#allocation2 + $0xdc] sm:$0xff]
    %v916 = vld [vmem:[#allocation2 + $0xe4] sm:$0xff]
    %v917 = vld [vmem:[#allocation2 + $0xec] sm:$0xf]
    %v918 = vld [vmem:[#allocation2 + $0xf0] sm:$0xff]
    %v919 = vld [vmem:[#allocation2 + $0xf8] sm:$0xff]
    %v920 = vld [vmem:[#allocation2 + $0x100] sm:$0xf]
    %v921 = vld [vmem:[#allocation2 + $0x104] sm:$0xff]
    %v922 = vld [vmem:[#allocation2 + $0x10c] sm:$0xff]
    %v923 = vld [vmem:[#allocation2 + $0x114] sm:$0xf]
    %v924 = vld [vmem:[#allocation2 + $0x118] sm:$0xff]
    %v925 = vld [vmem:[#allocation2 + $0x120] sm:$0xff]
    %v926 = vld [vmem:[#allocation2 + $0x128] sm:$0xf]
    %v927 = vld [vmem:[#allocation2 + $0x12c] sm:$0xff]
    %v928 = vld [vmem:[#allocation2 + $0x134] sm:$0xff]
    %v929 = vld [vmem:[#allocation2 + $0x13c] sm:$0xf]
    %v930 = vld [vmem:[#allocation2 + $0x140] sm:$0xff]
    %v931 = vld [vmem:[#allocation2 + $0x148] sm:$0xff]
    %v932 = vld [vmem:[#allocation2 + $0x150] sm:$0xf]
    %v933 = vld [vmem:[#allocation2 + $0x154] sm:$0xff]
    %v934 = vld [vmem:[#allocation2 + $0x15c] sm:$0xff]
    %v935 = vld [vmem:[#allocation2 + $0x164] sm:$0xf]
    %v936 = vld [vmem:[#allocation2 + $0x168] sm:$0xff]
    %v937 = vld [vmem:[#allocation2 + $0x170] sm:$0xff]
    %v938 = vld [vmem:[#allocation2 + $0x178] sm:$0xf]
    %v939 = vld [vmem:[#allocation2 + $0x17c] sm:$0xff]
    %v940 = vld [vmem:[#allocation2 + $0x184] sm:$0xff]
    %v941 = vld [vmem:[#allocation2 + $0x18c] sm:$0xf]
    %v942 = vld [vmem:[#allocation2 + $0x190] sm:$0xff]
    %v943 = vld [vmem:[#allocation2 + $0x198] sm:$0xff]
    %v944 = vld [vmem:[#allocation2 + $0x1a0] sm:$0xf]
    %v945 = vld [vmem:[#allocation2 + $0x1a4] sm:$0xff]
    %v946 = vld [vmem:[#allocation2 + $0x1ac] sm:$0xff]
    %v947 = vld [vmem:[#allocation2 + $0x1b4] sm:$0xf]
    %v948 = vld [vmem:[#allocation2 + $0x1b8] sm:$0xff]
    %v949 = vld [vmem:[#allocation2 + $0x1c0] sm:$0xff]
    %v950 = vld [vmem:[#allocation2 + $0x1c8] sm:$0xf]
    %v951 = vld [vmem:[#allocation2 + $0x1cc] sm:$0xff]
    %v952 = vld [vmem:[#allocation2 + $0x1d4] sm:$0xff]
    %v953 = vld [vmem:[#allocation2 + $0x1dc] sm:$0xf]
    %v954 = vld [vmem:[#allocation2 + $0x1e0] sm:$0xff]
    %v955 = vld [vmem:[#allocation2 + $0x1e8] sm:$0xff]
    %v956 = vld [vmem:[#allocation2 + $0x1f0] sm:$0xf]
    %v957 = vld [vmem:[#allocation2 + $0x1f4] sm:$0xff]
    %v958 = vld [vmem:[#allocation2 + $0x1fc] sm:$0xff]
    %v959 = vld [vmem:[#allocation2 + $0x204] sm:$0xf]
    %v960 = vld [vmem:[#allocation2 + $0x208] sm:$0xff]
    %v961 = vld [vmem:[#allocation2 + $0x210] sm:$0xff]
    %v962 = vld [vmem:[#allocation2 + $0x218] sm:$0xf]
    %v963 = vld [vmem:[#allocation2 + $0x21c] sm:$0xff]
    %v964 = vld [vmem:[#allocation2 + $0x224] sm:$0xff]
    %v965 = vld [vmem:[#allocation2 + $0x22c] sm:$0xf]
    %v966 = vld [vmem:[#allocation2 + $0x230] sm:$0xff]
    %v967 = vld [vmem:[#allocation2 + $0x238] sm:$0xff]
    %v968 = vld [vmem:[#allocation2 + $0x240] sm:$0xf]
    %v969 = vld [vmem:[#allocation2 + $0x244] sm:$0xff]
    %v970 = vld [vmem:[#allocation2 + $0x24c] sm:$0xff]
    %v971 = vld [vmem:[#allocation2 + $0x254] sm:$0xf]
    %v972 = vld [vmem:[#allocation2 + $0x258] sm:$0xff]
    %v973 = vld [vmem:[#allocation2 + $0x260] sm:$0xff]
    %v974 = vld [vmem:[#allocation2 + $0x268] sm:$0xf]
    %v975 = vld [vmem:[#allocation2 + $0x26c] sm:$0xff]
    %v976 = vld [vmem:[#allocation2 + $0x274] sm:$0xff]
    %v977 = vld [vmem:[#allocation2 + $0x27c] sm:$0xf]
    %v978 = vunpack.c.l.bf16 %v882
    %v979 = vunpack.c.h.bf16 %v882
    %v980 = vunpack.c.l.bf16 %v883
    %v981 = vunpack.c.h.bf16 %v883
    %v982 = vunpack.c.l.bf16 %v884
    %v983 = vunpack.c.l.bf16 %v885
    %v984 = vunpack.c.h.bf16 %v885
    %v985 = vunpack.c.l.bf16 %v886
    %v986 = vunpack.c.h.bf16 %v886
    %v987 = vunpack.c.l.bf16 %v887
    %v988 = vunpack.c.l.bf16 %v888
    %v989 = vunpack.c.h.bf16 %v888
    %v990 = vunpack.c.l.bf16 %v889
    %v991 = vunpack.c.h.bf16 %v889
    %v992 = vunpack.c.l.bf16 %v890
    %v993 = vunpack.c.l.bf16 %v891
    %v994 = vunpack.c.h.bf16 %v891
    %v995 = vunpack.c.l.bf16 %v892
    %v996 = vunpack.c.h.bf16 %v892
    %v997 = vunpack.c.l.bf16 %v893
    %v998 = vunpack.c.l.bf16 %v894
    %v999 = vunpack.c.h.bf16 %v894
    %v1000 = vunpack.c.l.bf16 %v895
    %v1001 = vunpack.c.h.bf16 %v895
    %v1002 = vunpack.c.l.bf16 %v896
    %v1003 = vunpack.c.l.bf16 %v897
    %v1004 = vunpack.c.h.bf16 %v897
    %v1005 = vunpack.c.l.bf16 %v898
    %v1006 = vunpack.c.h.bf16 %v898
    %v1007 = vunpack.c.l.bf16 %v899
    %v1008 = vunpack.c.l.bf16 %v900
    %v1009 = vunpack.c.h.bf16 %v900
    %v1010 = vunpack.c.l.bf16 %v901
    %v1011 = vunpack.c.h.bf16 %v901
    %v1012 = vunpack.c.l.bf16 %v902
    %v1013 = vunpack.c.l.bf16 %v903
    %v1014 = vunpack.c.h.bf16 %v903
    %v1015 = vunpack.c.l.bf16 %v904
    %v1016 = vunpack.c.h.bf16 %v904
    %v1017 = vunpack.c.l.bf16 %v905
    %v1018 = vunpack.c.l.bf16 %v906
    %v1019 = vunpack.c.h.bf16 %v906
    %v1020 = vunpack.c.l.bf16 %v907
    %v1021 = vunpack.c.h.bf16 %v907
    %v1022 = vunpack.c.l.bf16 %v908
    %v1023 = vunpack.c.l.bf16 %v909
    %v1024 = vunpack.c.h.bf16 %v909
    %v1025 = vunpack.c.l.bf16 %v910
    %v1026 = vunpack.c.h.bf16 %v910
    %v1027 = vunpack.c.l.bf16 %v911
    %v1028 = vunpack.c.l.bf16 %v912
    %v1029 = vunpack.c.h.bf16 %v912
    %v1030 = vunpack.c.l.bf16 %v913
    %v1031 = vunpack.c.h.bf16 %v913
    %v1032 = vunpack.c.l.bf16 %v914
    %v1033 = vunpack.c.l.bf16 %v915
    %v1034 = vunpack.c.h.bf16 %v915
    %v1035 = vunpack.c.l.bf16 %v916
    %v1036 = vunpack.c.h.bf16 %v916
    %v1037 = vunpack.c.l.bf16 %v917
    %v1038 = vunpack.c.l.bf16 %v918
    %v1039 = vunpack.c.h.bf16 %v918
    %v1040 = vunpack.c.l.bf16 %v919
    %v1041 = vunpack.c.h.bf16 %v919
    %v1042 = vunpack.c.l.bf16 %v920
    %v1043 = vunpack.c.l.bf16 %v921
    %v1044 = vunpack.c.h.bf16 %v921
    %v1045 = vunpack.c.l.bf16 %v922
    %v1046 = vunpack.c.h.bf16 %v922
    %v1047 = vunpack.c.l.bf16 %v923
    %v1048 = vunpack.c.l.bf16 %v924
    %v1049 = vunpack.c.h.bf16 %v924
    %v1050 = vunpack.c.l.bf16 %v925
    %v1051 = vunpack.c.h.bf16 %v925
    %v1052 = vunpack.c.l.bf16 %v926
    %v1053 = vunpack.c.l.bf16 %v927
    %v1054 = vunpack.c.h.bf16 %v927
    %v1055 = vunpack.c.l.bf16 %v928
    %v1056 = vunpack.c.h.bf16 %v928
    %v1057 = vunpack.c.l.bf16 %v929
    %v1058 = vunpack.c.l.bf16 %v930
    %v1059 = vunpack.c.h.bf16 %v930
    %v1060 = vunpack.c.l.bf16 %v931
    %v1061 = vunpack.c.h.bf16 %v931
    %v1062 = vunpack.c.l.bf16 %v932
    %v1063 = vunpack.c.l.bf16 %v933
    %v1064 = vunpack.c.h.bf16 %v933
    %v1065 = vunpack.c.l.bf16 %v934
    %v1066 = vunpack.c.h.bf16 %v934
    %v1067 = vunpack.c.l.bf16 %v935
    %v1068 = vunpack.c.l.bf16 %v936
    %v1069 = vunpack.c.h.bf16 %v936
    %v1070 = vunpack.c.l.bf16 %v937
    %v1071 = vunpack.c.h.bf16 %v937
    %v1072 = vunpack.c.l.bf16 %v938
    %v1073 = vunpack.c.l.bf16 %v939
    %v1074 = vunpack.c.h.bf16 %v939
    %v1075 = vunpack.c.l.bf16 %v940
    %v1076 = vunpack.c.h.bf16 %v940
    %v1077 = vunpack.c.l.bf16 %v941
    %v1078 = vunpack.c.l.bf16 %v942
    %v1079 = vunpack.c.h.bf16 %v942
    %v1080 = vunpack.c.l.bf16 %v943
    %v1081 = vunpack.c.h.bf16 %v943
    %v1082 = vunpack.c.l.bf16 %v944
    %v1083 = vunpack.c.l.bf16 %v945
    %v1084 = vunpack.c.h.bf16 %v945
    %v1085 = vunpack.c.l.bf16 %v946
    %v1086 = vunpack.c.h.bf16 %v946
    %v1087 = vunpack.c.l.bf16 %v947
    %v1088 = vunpack.c.l.bf16 %v948
    %v1089 = vunpack.c.h.bf16 %v948
    %v1090 = vunpack.c.l.bf16 %v949
    %v1091 = vunpack.c.h.bf16 %v949
    %v1092 = vunpack.c.l.bf16 %v950
    %v1093 = vunpack.c.l.bf16 %v951
    %v1094 = vunpack.c.h.bf16 %v951
    %v1095 = vunpack.c.l.bf16 %v952
    %v1096 = vunpack.c.h.bf16 %v952
    %v1097 = vunpack.c.l.bf16 %v953
    %v1098 = vunpack.c.l.bf16 %v954
    %v1099 = vunpack.c.h.bf16 %v954
    %v1100 = vunpack.c.l.bf16 %v955
    %v1101 = vunpack.c.h.bf16 %v955
    %v1102 = vunpack.c.l.bf16 %v956
    %v1103 = vunpack.c.l.bf16 %v957
    %v1104 = vunpack.c.h.bf16 %v957
    %v1105 = vunpack.c.l.bf16 %v958
    %v1106 = vunpack.c.h.bf16 %v958
    %v1107 = vunpack.c.l.bf16 %v959
    %v1108 = vunpack.c.l.bf16 %v960
    %v1109 = vunpack.c.h.bf16 %v960
    %v1110 = vunpack.c.l.bf16 %v961
    %v1111 = vunpack.c.h.bf16 %v961
    %v1112 = vunpack.c.l.bf16 %v962
    %v1113 = vunpack.c.l.bf16 %v963
    %v1114 = vunpack.c.h.bf16 %v963
    %v1115 = vunpack.c.l.bf16 %v964
    %v1116 = vunpack.c.h.bf16 %v964
    %v1117 = vunpack.c.l.bf16 %v965
    %v1118 = vunpack.c.l.bf16 %v966
    %v1119 = vunpack.c.h.bf16 %v966
    %v1120 = vunpack.c.l.bf16 %v967
    %v1121 = vunpack.c.h.bf16 %v967
    %v1122 = vunpack.c.l.bf16 %v968
    %v1123 = vunpack.c.l.bf16 %v969
    %v1124 = vunpack.c.h.bf16 %v969
    %v1125 = vunpack.c.l.bf16 %v970
    %v1126 = vunpack.c.h.bf16 %v970
    %v1127 = vunpack.c.l.bf16 %v971
    %v1128 = vunpack.c.l.bf16 %v972
    %v1129 = vunpack.c.h.bf16 %v972
    %v1130 = vunpack.c.l.bf16 %v973
    %v1131 = vunpack.c.h.bf16 %v973
    %v1132 = vunpack.c.l.bf16 %v974
    %v1133 = vunpack.c.l.bf16 %v975
    %v1134 = vunpack.c.h.bf16 %v975
    %v1135 = vunpack.c.l.bf16 %v976
    %v1136 = vunpack.c.h.bf16 %v976
    %v1137 = vunpack.c.l.bf16 %v977
    %v1138 = vld [vmem:[%s1] ss:$8 sm:$0xf]
    %v1139 = vld [vmem:[%s1] ss:$8 sm:$0x10]
    %v1140 = vor.u32 %v1138, %v1139
    %v1142 = vperm.slane %v1140, 0
    %v1143 = vperm.slane %v1140, 1
    %v1144 = vperm.slane %v1140, 2
    %v1145 = vperm.slane %v1140, 3
    %v1146 = vperm.slane %v1140, 4
    %1153 = vst [vmem:[#allocation1] ss:$4 sm:$0xff] %v877
    %v1154 = vld.sshfl [vmem:[#allocation1] sm:$0xff pattern:$0x73625140]
    %v1155 = vld.sshfl [vmem:[#allocation1 + $0x8] sm:$0xff pattern:$0x73625140]
    %1158 = vmatpush.msra.mxu0 %v1053
    %1159 = vmatpush.msra.mxu0 %v1048
    %1160 = vmatpush.msra.mxu0 %v1043
    %1161 = vmatpush.msra.mxu0 %v1038
    %1162 = vmatpush.msra.mxu0 %v1033
    %1163 = vmatpush.msra.mxu0 %v1028
    %1164 = vmatpush.msra.mxu0 %v1023
    %1165 = vmatpush.msra.mxu0 %v1018
    %1166 = vmatpush.msra.mxu0 %v1013
    %1167 = vmatpush.msra.mxu0 %v1008
    %1168 = vmatpush.msra.mxu0 %v1003
    %1169 = vmatpush.msra.mxu0 %v998
    %1170 = vmatpush.msra.mxu0 %v993
    %1171 = vmatpush.msra.mxu0 %v988
    %1172 = vmatpush.msra.mxu0 %v983
    %1173 = vmatpush.msra.mxu0 %v978
    %1174 = vmatmul.f32.gmra.mxu0 %v1154
    %v1175 = vpop.f32.mrf.mxu0
    %v1176 = vadd.f32 %v1142, %v1175
    %1177 = vdwg.mxu0
    %1178 = vmatpush.msra.mxu0 %v1133
    %1179 = vmatpush.msra.mxu0 %v1128
    %1180 = vmatpush.msra.mxu0 %v1123
    %1181 = vmatpush.msra.mxu0 %v1118
    %1182 = vmatpush.msra.mxu0 %v1113
    %1183 = vmatpush.msra.mxu0 %v1108
    %1184 = vmatpush.msra.mxu0 %v1103
    %1185 = vmatpush.msra.mxu0 %v1098
    %1186 = vmatpush.msra.mxu0 %v1093
    %1187 = vmatpush.msra.mxu0 %v1088
    %1188 = vmatpush.msra.mxu0 %v1083
    %1189 = vmatpush.msra.mxu0 %v1078
    %1190 = vmatpush.msra.mxu0 %v1073
    %1191 = vmatpush.msra.mxu0 %v1068
    %1192 = vmatpush.msra.mxu0 %v1063
    %1193 = vmatpush.msra.mxu0 %v1058
    %1194 = vmatmul.f32.gmra.mxu0 %v1155
    %v1195 = vpop.f32.mrf.mxu0
    %v1196 = vadd.f32 %v1176, %v1195
    %1197 = vdwg.mxu0
    %1198 = vmatpush.msra.mxu0 %v1054
    %1199 = vmatpush.msra.mxu0 %v1049
    %1200 = vmatpush.msra.mxu0 %v1044
    %1201 = vmatpush.msra.mxu0 %v1039
    %1202 = vmatpush.msra.mxu0 %v1034
    %1203 = vmatpush.msra.mxu0 %v1029
    %1204 = vmatpush.msra.mxu0 %v1024
    %1205 = vmatpush.msra.mxu0 %v1019
    %1206 = vmatpush.msra.mxu0 %v1014
    %1207 = vmatpush.msra.mxu0 %v1009
    %1208 = vmatpush.msra.mxu0 %v1004
    %1209 = vmatpush.msra.mxu0 %v999
    %1210 = vmatpush.msra.mxu0 %v994
    %1211 = vmatpush.msra.mxu0 %v989
    %1212 = vmatpush.msra.mxu0 %v984
    %1213 = vmatpush.msra.mxu0 %v979
    %1214 = vmatmul.f32.gmra.mxu0 %v1154
    %v1215 = vpop.f32.mrf.mxu0
    %v1216 = vadd.f32 %v1143, %v1215
    %1217 = vdwg.mxu0
    %1218 = vmatpush.msra.mxu0 %v1134
    %1219 = vmatpush.msra.mxu0 %v1129
    %1220 = vmatpush.msra.mxu0 %v1124
    %1221 = vmatpush.msra.mxu0 %v1119
    %1222 = vmatpush.msra.mxu0 %v1114
    %1223 = vmatpush.msra.mxu0 %v1109
    %1224 = vmatpush.msra.mxu0 %v1104
    %1225 = vmatpush.msra.mxu0 %v1099
    %1226 = vmatpush.msra.mxu0 %v1094
    %1227 = vmatpush.msra.mxu0 %v1089
    %1228 = vmatpush.msra.mxu0 %v1084
    %1229 = vmatpush.msra.mxu0 %v1079
    %1230 = vmatpush.msra.mxu0 %v1074
    %1231 = vmatpush.msra.mxu0 %v1069
    %1232 = vmatpush.msra.mxu0 %v1064
    %1233 = vmatpush.msra.mxu0 %v1059
    %1234 = vmatmul.f32.gmra.mxu0 %v1155
    %v1235 = vpop.f32.mrf.mxu0
    %v1236 = vadd.f32 %v1216, %v1235
    %1237 = vdwg.mxu0
    %1238 = vmatpush.msra.mxu0 %v1055
    %1239 = vmatpush.msra.mxu0 %v1050
    %1240 = vmatpush.msra.mxu0 %v1045
    %1241 = vmatpush.msra.mxu0 %v1040
    %1242 = vmatpush.msra.mxu0 %v1035
    %1243 = vmatpush.msra.mxu0 %v1030
    %1244 = vmatpush.msra.mxu0 %v1025
    %1245 = vmatpush.msra.mxu0 %v1020
    %1246 = vmatpush.msra.mxu0 %v1015
    %1247 = vmatpush.msra.mxu0 %v1010
    %1248 = vmatpush.msra.mxu0 %v1005
    %1249 = vmatpush.msra.mxu0 %v1000
    %1250 = vmatpush.msra.mxu0 %v995
    %1251 = vmatpush.msra.mxu0 %v990
    %1252 = vmatpush.msra.mxu0 %v985
    %1253 = vmatpush.msra.mxu0 %v980
    %1254 = vmatmul.f32.gmra.mxu0 %v1154
    %v1255 = vpop.f32.mrf.mxu0
    %v1256 = vadd.f32 %v1144, %v1255
    %1257 = vdwg.mxu0
    %1258 = vmatpush.msra.mxu0 %v1135
    %1259 = vmatpush.msra.mxu0 %v1130
    %1260 = vmatpush.msra.mxu0 %v1125
    %1261 = vmatpush.msra.mxu0 %v1120
    %1262 = vmatpush.msra.mxu0 %v1115
    %1263 = vmatpush.msra.mxu0 %v1110
    %1264 = vmatpush.msra.mxu0 %v1105
    %1265 = vmatpush.msra.mxu0 %v1100
    %1266 = vmatpush.msra.mxu0 %v1095
    %1267 = vmatpush.msra.mxu0 %v1090
    %1268 = vmatpush.msra.mxu0 %v1085
    %1269 = vmatpush.msra.mxu0 %v1080
    %1270 = vmatpush.msra.mxu0 %v1075
    %1271 = vmatpush.msra.mxu0 %v1070
    %1272 = vmatpush.msra.mxu0 %v1065
    %1273 = vmatpush.msra.mxu0 %v1060
    %1274 = vmatmul.f32.gmra.mxu0 %v1155
    %v1275 = vpop.f32.mrf.mxu0
    %v1276 = vadd.f32 %v1256, %v1275
    %1277 = vdwg.mxu0
    %1278 = vmatpush.msra.mxu0 %v1056
    %1279 = vmatpush.msra.mxu0 %v1051
    %1280 = vmatpush.msra.mxu0 %v1046
    %1281 = vmatpush.msra.mxu0 %v1041
    %1282 = vmatpush.msra.mxu0 %v1036
    %1283 = vmatpush.msra.mxu0 %v1031
    %1284 = vmatpush.msra.mxu0 %v1026
    %1285 = vmatpush.msra.mxu0 %v1021
    %1286 = vmatpush.msra.mxu0 %v1016
    %1287 = vmatpush.msra.mxu0 %v1011
    %1288 = vmatpush.msra.mxu0 %v1006
    %1289 = vmatpush.msra.mxu0 %v1001
    %1290 = vmatpush.msra.mxu0 %v996
    %1291 = vmatpush.msra.mxu0 %v991
    %1292 = vmatpush.msra.mxu0 %v986
    %1293 = vmatpush.msra.mxu0 %v981
    %1294 = vmatmul.f32.gmra.mxu0 %v1154
    %v1295 = vpop.f32.mrf.mxu0
    %v1296 = vadd.f32 %v1145, %v1295
    %1297 = vdwg.mxu0
    %1298 = vmatpush.msra.mxu0 %v1136
    %1299 = vmatpush.msra.mxu0 %v1131
    %1300 = vmatpush.msra.mxu0 %v1126
    %1301 = vmatpush.msra.mxu0 %v1121
    %1302 = vmatpush.msra.mxu0 %v1116
    %1303 = vmatpush.msra.mxu0 %v1111
    %1304 = vmatpush.msra.mxu0 %v1106
    %1305 = vmatpush.msra.mxu0 %v1101
    %1306 = vmatpush.msra.mxu0 %v1096
    %1307 = vmatpush.msra.mxu0 %v1091
    %1308 = vmatpush.msra.mxu0 %v1086
    %1309 = vmatpush.msra.mxu0 %v1081
    %1310 = vmatpush.msra.mxu0 %v1076
    %1311 = vmatpush.msra.mxu0 %v1071
    %1312 = vmatpush.msra.mxu0 %v1066
    %1313 = vmatpush.msra.mxu0 %v1061
    %1314 = vmatmul.f32.gmra.mxu0 %v1155
    %v1315 = vpop.f32.mrf.mxu0
    %v1316 = vadd.f32 %v1296, %v1315
    %1317 = vdwg.mxu0
    %1318 = vmatpush.msra.mxu0 %v1057
    %1319 = vmatpush.msra.mxu0 %v1052
    %1320 = vmatpush.msra.mxu0 %v1047
    %1321 = vmatpush.msra.mxu0 %v1042
    %1322 = vmatpush.msra.mxu0 %v1037
    %1323 = vmatpush.msra.mxu0 %v1032
    %1324 = vmatpush.msra.mxu0 %v1027
    %1325 = vmatpush.msra.mxu0 %v1022
    %1326 = vmatpush.msra.mxu0 %v1017
    %1327 = vmatpush.msra.mxu0 %v1012
    %1328 = vmatpush.msra.mxu0 %v1007
    %1329 = vmatpush.msra.mxu0 %v1002
    %1330 = vmatpush.msra.mxu0 %v997
    %1331 = vmatpush.msra.mxu0 %v992
    %1332 = vmatpush.msra.mxu0 %v987
    %1333 = vmatpush.msra.mxu0 %v982
    %1334 = vmatmul.f32.gmra.mxu0 %v1154
    %v1335 = vpop.f32.mrf.mxu0
    %v1336 = vadd.f32 %v1146, %v1335
    %1337 = vdwg.mxu0
    %1338 = vmatpush.msra.mxu0 %v1137
    %1339 = vmatpush.msra.mxu0 %v1132
    %1340 = vmatpush.msra.mxu0 %v1127
    %1341 = vmatpush.msra.mxu0 %v1122
    %1342 = vmatpush.msra.mxu0 %v1117
    %1343 = vmatpush.msra.mxu0 %v1112
    %1344 = vmatpush.msra.mxu0 %v1107
    %1345 = vmatpush.msra.mxu0 %v1102
    %1346 = vmatpush.msra.mxu0 %v1097
    %1347 = vmatpush.msra.mxu0 %v1092
    %1348 = vmatpush.msra.mxu0 %v1087
    %1349 = vmatpush.msra.mxu0 %v1082
    %1350 = vmatpush.msra.mxu0 %v1077
    %1351 = vmatpush.msra.mxu0 %v1072
    %1352 = vmatpush.msra.mxu0 %v1067
    %1353 = vmatpush.msra.mxu0 %v1062
    %1354 = vmatmul.f32.gmra.mxu0 %v1155
    %v1355 = vpop.f32.mrf.mxu0
    %v1356 = vadd.f32 %v1336, %v1355
    %1357 = vdwg.mxu0
    %v1358 = vmax.f32 %v1196, 0.0
    %v1359 = vmax.f32 %v1236, 0.0
    %v1360 = vmax.f32 %v1276, 0.0
    %v1361 = vmax.f32 %v1316, 0.0
    %v1362 = vmax.f32 %v1356, 0.0
    %s1363 = smul.u32 4, 80
    %s1364 = smul.u32 %s1363, 4
    %s1365 = sshll.u32 %s1364, 4
    %1366 = dma.done %s194, %s1365
    %v1367 = vld [vmem:[#allocation3] sm:$0xff]
    %v1368 = vld [vmem:[#allocation3 + $0x8] sm:$0xff]
    %v1369 = vld [vmem:[#allocation3 + $0x10] sm:$0xff]
    %v1370 = vld [vmem:[#allocation3 + $0x18] sm:$0xff]
    %v1371 = vld [vmem:[#allocation3 + $0x20] sm:$0xff]
    %v1372 = vld [vmem:[#allocation3 + $0x28] sm:$0xff]
    %v1373 = vld [vmem:[#allocation3 + $0x30] sm:$0xff]
    %v1374 = vld [vmem:[#allocation3 + $0x38] sm:$0xff]
    %v1375 = vld [vmem:[#allocation3 + $0x40] sm:$0xff]
    %v1376 = vld [vmem:[#allocation3 + $0x48] sm:$0xff]
    %v1377 = vld [vmem:[#allocation3 + $0x50] sm:$0xff]
    %v1378 = vld [vmem:[#allocation3 + $0x58] sm:$0xff]
    %v1379 = vld [vmem:[#allocation3 + $0x60] sm:$0xff]
    %v1380 = vld [vmem:[#allocation3 + $0x68] sm:$0xff]
    %v1381 = vld [vmem:[#allocation3 + $0x70] sm:$0xff]
    %v1382 = vld [vmem:[#allocation3 + $0x78] sm:$0xff]
    %v1383 = vld [vmem:[#allocation3 + $0x80] sm:$0xff]
    %v1384 = vld [vmem:[#allocation3 + $0x88] sm:$0xff]
    %v1385 = vld [vmem:[#allocation3 + $0x90] sm:$0xff]
    %v1386 = vld [vmem:[#allocation3 + $0x98] sm:$0xff]
    %v1387 = vld [vmem:[#allocation3 + $0xa0] sm:$0xff]
    %v1388 = vld [vmem:[#allocation3 + $0xa8] sm:$0xff]
    %v1389 = vld [vmem:[#allocation3 + $0xb0] sm:$0xff]
    %v1390 = vld [vmem:[#allocation3 + $0xb8] sm:$0xff]
    %v1391 = vld [vmem:[#allocation3 + $0xc0] sm:$0xff]
    %v1392 = vld [vmem:[#allocation3 + $0xc8] sm:$0xff]
    %v1393 = vld [vmem:[#allocation3 + $0xd0] sm:$0xff]
    %v1394 = vld [vmem:[#allocation3 + $0xd8] sm:$0xff]
    %v1395 = vld [vmem:[#allocation3 + $0xe0] sm:$0xff]
    %v1396 = vld [vmem:[#allocation3 + $0xe8] sm:$0xff]
    %v1397 = vld [vmem:[#allocation3 + $0xf0] sm:$0xff]
    %v1398 = vld [vmem:[#allocation3 + $0xf8] sm:$0xff]
    %v1399 = vld [vmem:[#allocation3 + $0x100] sm:$0xff]
    %v1400 = vld [vmem:[#allocation3 + $0x108] sm:$0xff]
    %v1401 = vld [vmem:[#allocation3 + $0x110] sm:$0xff]
    %v1402 = vld [vmem:[#allocation3 + $0x118] sm:$0xff]
    %v1403 = vld [vmem:[#allocation3 + $0x120] sm:$0xff]
    %v1404 = vld [vmem:[#allocation3 + $0x128] sm:$0xff]
    %v1405 = vld [vmem:[#allocation3 + $0x130] sm:$0xff]
    %v1406 = vld [vmem:[#allocation3 + $0x138] sm:$0xff]
    %v1407 = vld [vmem:[#allocation3 + $0x140] sm:$0xff]
    %v1408 = vld [vmem:[#allocation3 + $0x148] sm:$0xff]
    %v1409 = vld [vmem:[#allocation3 + $0x150] sm:$0xff]
    %v1410 = vld [vmem:[#allocation3 + $0x158] sm:$0xff]
    %v1411 = vld [vmem:[#allocation3 + $0x160] sm:$0xff]
    %v1412 = vld [vmem:[#allocation3 + $0x168] sm:$0xff]
    %v1413 = vld [vmem:[#allocation3 + $0x170] sm:$0xff]
    %v1414 = vld [vmem:[#allocation3 + $0x178] sm:$0xff]
    %v1415 = vld [vmem:[#allocation3 + $0x180] sm:$0xff]
    %v1416 = vld [vmem:[#allocation3 + $0x188] sm:$0xff]
    %v1417 = vld [vmem:[#allocation3 + $0x190] sm:$0xff]
    %v1418 = vld [vmem:[#allocation3 + $0x198] sm:$0xff]
    %v1419 = vld [vmem:[#allocation3 + $0x1a0] sm:$0xff]
    %v1420 = vld [vmem:[#allocation3 + $0x1a8] sm:$0xff]
    %v1421 = vld [vmem:[#allocation3 + $0x1b0] sm:$0xff]
    %v1422 = vld [vmem:[#allocation3 + $0x1b8] sm:$0xff]
    %v1423 = vld [vmem:[#allocation3 + $0x1c0] sm:$0xff]
    %v1424 = vld [vmem:[#allocation3 + $0x1c8] sm:$0xff]
    %v1425 = vld [vmem:[#allocation3 + $0x1d0] sm:$0xff]
    %v1426 = vld [vmem:[#allocation3 + $0x1d8] sm:$0xff]
    %v1427 = vld [vmem:[#allocation3 + $0x1e0] sm:$0xff]
    %v1428 = vld [vmem:[#allocation3 + $0x1e8] sm:$0xff]
    %v1429 = vld [vmem:[#allocation3 + $0x1f0] sm:$0xff]
    %v1430 = vld [vmem:[#allocation3 + $0x1f8] sm:$0xff]
    %v1431 = vld [vmem:[#allocation3 + $0x200] sm:$0xff]
    %v1432 = vld [vmem:[#allocation3 + $0x208] sm:$0xff]
    %v1433 = vld [vmem:[#allocation3 + $0x210] sm:$0xff]
    %v1434 = vld [vmem:[#allocation3 + $0x218] sm:$0xff]
    %v1435 = vld [vmem:[#allocation3 + $0x220] sm:$0xff]
    %v1436 = vld [vmem:[#allocation3 + $0x228] sm:$0xff]
    %v1437 = vld [vmem:[#allocation3 + $0x230] sm:$0xff]
    %v1438 = vld [vmem:[#allocation3 + $0x238] sm:$0xff]
    %v1439 = vld [vmem:[#allocation3 + $0x240] sm:$0xff]
    %v1440 = vld [vmem:[#allocation3 + $0x248] sm:$0xff]
    %v1441 = vld [vmem:[#allocation3 + $0x250] sm:$0xff]
    %v1442 = vld [vmem:[#allocation3 + $0x258] sm:$0xff]
    %v1443 = vld [vmem:[#allocation3 + $0x260] sm:$0xff]
    %v1444 = vld [vmem:[#allocation3 + $0x268] sm:$0xff]
    %v1445 = vld [vmem:[#allocation3 + $0x270] sm:$0xff]
    %v1446 = vld [vmem:[#allocation3 + $0x278] sm:$0xff]
    %v1447 = vld [vmem:[#allocation3 + $0x280] sm:$0xff]
    %v1448 = vld [vmem:[#allocation3 + $0x288] sm:$0xff]
    %v1449 = vld [vmem:[#allocation3 + $0x290] sm:$0xff]
    %v1450 = vld [vmem:[#allocation3 + $0x298] sm:$0xff]
    %v1451 = vld [vmem:[#allocation3 + $0x2a0] sm:$0xff]
    %v1452 = vld [vmem:[#allocation3 + $0x2a8] sm:$0xff]
    %v1453 = vld [vmem:[#allocation3 + $0x2b0] sm:$0xff]
    %v1454 = vld [vmem:[#allocation3 + $0x2b8] sm:$0xff]
    %v1455 = vld [vmem:[#allocation3 + $0x2c0] sm:$0xff]
    %v1456 = vld [vmem:[#allocation3 + $0x2c8] sm:$0xff]
    %v1457 = vld [vmem:[#allocation3 + $0x2d0] sm:$0xff]
    %v1458 = vld [vmem:[#allocation3 + $0x2d8] sm:$0xff]
    %v1459 = vld [vmem:[#allocation3 + $0x2e0] sm:$0xff]
    %v1460 = vld [vmem:[#allocation3 + $0x2e8] sm:$0xff]
    %v1461 = vld [vmem:[#allocation3 + $0x2f0] sm:$0xff]
    %v1462 = vld [vmem:[#allocation3 + $0x2f8] sm:$0xff]
    %v1463 = vld [vmem:[#allocation3 + $0x300] sm:$0xff]
    %v1464 = vld [vmem:[#allocation3 + $0x308] sm:$0xff]
    %v1465 = vld [vmem:[#allocation3 + $0x310] sm:$0xff]
    %v1466 = vld [vmem:[#allocation3 + $0x318] sm:$0xff]
    %v1467 = vld [vmem:[#allocation3 + $0x320] sm:$0xff]
    %v1468 = vld [vmem:[#allocation3 + $0x328] sm:$0xff]
    %v1469 = vld [vmem:[#allocation3 + $0x330] sm:$0xff]
    %v1470 = vld [vmem:[#allocation3 + $0x338] sm:$0xff]
    %v1471 = vld [vmem:[#allocation3 + $0x340] sm:$0xff]
    %v1472 = vld [vmem:[#allocation3 + $0x348] sm:$0xff]
    %v1473 = vld [vmem:[#allocation3 + $0x350] sm:$0xff]
    %v1474 = vld [vmem:[#allocation3 + $0x358] sm:$0xff]
    %v1475 = vld [vmem:[#allocation3 + $0x360] sm:$0xff]
    %v1476 = vld [vmem:[#allocation3 + $0x368] sm:$0xff]
    %v1477 = vld [vmem:[#allocation3 + $0x370] sm:$0xff]
    %v1478 = vld [vmem:[#allocation3 + $0x378] sm:$0xff]
    %v1479 = vld [vmem:[#allocation3 + $0x380] sm:$0xff]
    %v1480 = vld [vmem:[#allocation3 + $0x388] sm:$0xff]
    %v1481 = vld [vmem:[#allocation3 + $0x390] sm:$0xff]
    %v1482 = vld [vmem:[#allocation3 + $0x398] sm:$0xff]
    %v1483 = vld [vmem:[#allocation3 + $0x3a0] sm:$0xff]
    %v1484 = vld [vmem:[#allocation3 + $0x3a8] sm:$0xff]
    %v1485 = vld [vmem:[#allocation3 + $0x3b0] sm:$0xff]
    %v1486 = vld [vmem:[#allocation3 + $0x3b8] sm:$0xff]
    %v1487 = vld [vmem:[#allocation3 + $0x3c0] sm:$0xff]
    %v1488 = vld [vmem:[#allocation3 + $0x3c8] sm:$0xff]
    %v1489 = vld [vmem:[#allocation3 + $0x3d0] sm:$0xff]
    %v1490 = vld [vmem:[#allocation3 + $0x3d8] sm:$0xff]
    %v1491 = vld [vmem:[#allocation3 + $0x3e0] sm:$0xff]
    %v1492 = vld [vmem:[#allocation3 + $0x3e8] sm:$0xff]
    %v1493 = vld [vmem:[#allocation3 + $0x3f0] sm:$0xff]
    %v1494 = vld [vmem:[#allocation3 + $0x3f8] sm:$0xff]
    %v1495 = vld [vmem:[#allocation3 + $0x400] sm:$0xff]
    %v1496 = vld [vmem:[#allocation3 + $0x408] sm:$0xff]
    %v1497 = vld [vmem:[#allocation3 + $0x410] sm:$0xff]
    %v1498 = vld [vmem:[#allocation3 + $0x418] sm:$0xff]
    %v1499 = vld [vmem:[#allocation3 + $0x420] sm:$0xff]
    %v1500 = vld [vmem:[#allocation3 + $0x428] sm:$0xff]
    %v1501 = vld [vmem:[#allocation3 + $0x430] sm:$0xff]
    %v1502 = vld [vmem:[#allocation3 + $0x438] sm:$0xff]
    %v1503 = vld [vmem:[#allocation3 + $0x440] sm:$0xff]
    %v1504 = vld [vmem:[#allocation3 + $0x448] sm:$0xff]
    %v1505 = vld [vmem:[#allocation3 + $0x450] sm:$0xff]
    %v1506 = vld [vmem:[#allocation3 + $0x458] sm:$0xff]
    %v1507 = vld [vmem:[#allocation3 + $0x460] sm:$0xff]
    %v1508 = vld [vmem:[#allocation3 + $0x468] sm:$0xff]
    %v1509 = vld [vmem:[#allocation3 + $0x470] sm:$0xff]
    %v1510 = vld [vmem:[#allocation3 + $0x478] sm:$0xff]
    %v1511 = vld [vmem:[#allocation3 + $0x480] sm:$0xff]
    %v1512 = vld [vmem:[#allocation3 + $0x488] sm:$0xff]
    %v1513 = vld [vmem:[#allocation3 + $0x490] sm:$0xff]
    %v1514 = vld [vmem:[#allocation3 + $0x498] sm:$0xff]
    %v1515 = vld [vmem:[#allocation3 + $0x4a0] sm:$0xff]
    %v1516 = vld [vmem:[#allocation3 + $0x4a8] sm:$0xff]
    %v1517 = vld [vmem:[#allocation3 + $0x4b0] sm:$0xff]
    %v1518 = vld [vmem:[#allocation3 + $0x4b8] sm:$0xff]
    %v1519 = vld [vmem:[#allocation3 + $0x4c0] sm:$0xff]
    %v1520 = vld [vmem:[#allocation3 + $0x4c8] sm:$0xff]
    %v1521 = vld [vmem:[#allocation3 + $0x4d0] sm:$0xff]
    %v1522 = vld [vmem:[#allocation3 + $0x4d8] sm:$0xff]
    %v1523 = vld [vmem:[#allocation3 + $0x4e0] sm:$0xff]
    %v1524 = vld [vmem:[#allocation3 + $0x4e8] sm:$0xff]
    %v1525 = vld [vmem:[#allocation3 + $0x4f0] sm:$0xff]
    %v1526 = vld [vmem:[#allocation3 + $0x4f8] sm:$0xff]
    %v1527 = vunpack.c.l.bf16 %v1367
    %v1528 = vunpack.c.h.bf16 %v1367
    %v1529 = vunpack.c.l.bf16 %v1368
    %v1530 = vunpack.c.h.bf16 %v1368
    %v1531 = vunpack.c.l.bf16 %v1369
    %v1532 = vunpack.c.h.bf16 %v1369
    %v1533 = vunpack.c.l.bf16 %v1370
    %v1534 = vunpack.c.h.bf16 %v1370
    %v1535 = vunpack.c.l.bf16 %v1371
    %v1536 = vunpack.c.h.bf16 %v1371
    %v1537 = vunpack.c.l.bf16 %v1372
    %v1538 = vunpack.c.h.bf16 %v1372
    %v1539 = vunpack.c.l.bf16 %v1373
    %v1540 = vunpack.c.h.bf16 %v1373
    %v1541 = vunpack.c.l.bf16 %v1374
    %v1542 = vunpack.c.h.bf16 %v1374
    %v1543 = vunpack.c.l.bf16 %v1375
    %v1544 = vunpack.c.h.bf16 %v1375
    %v1545 = vunpack.c.l.bf16 %v1376
    %v1546 = vunpack.c.h.bf16 %v1376
    %v1547 = vunpack.c.l.bf16 %v1377
    %v1548 = vunpack.c.h.bf16 %v1377
    %v1549 = vunpack.c.l.bf16 %v1378
    %v1550 = vunpack.c.h.bf16 %v1378
    %v1551 = vunpack.c.l.bf16 %v1379
    %v1552 = vunpack.c.h.bf16 %v1379
    %v1553 = vunpack.c.l.bf16 %v1380
    %v1554 = vunpack.c.h.bf16 %v1380
    %v1555 = vunpack.c.l.bf16 %v1381
    %v1556 = vunpack.c.h.bf16 %v1381
    %v1557 = vunpack.c.l.bf16 %v1382
    %v1558 = vunpack.c.h.bf16 %v1382
    %v1559 = vunpack.c.l.bf16 %v1383
    %v1560 = vunpack.c.h.bf16 %v1383
    %v1561 = vunpack.c.l.bf16 %v1384
    %v1562 = vunpack.c.h.bf16 %v1384
    %v1563 = vunpack.c.l.bf16 %v1385
    %v1564 = vunpack.c.h.bf16 %v1385
    %v1565 = vunpack.c.l.bf16 %v1386
    %v1566 = vunpack.c.h.bf16 %v1386
    %v1567 = vunpack.c.l.bf16 %v1387
    %v1568 = vunpack.c.h.bf16 %v1387
    %v1569 = vunpack.c.l.bf16 %v1388
    %v1570 = vunpack.c.h.bf16 %v1388
    %v1571 = vunpack.c.l.bf16 %v1389
    %v1572 = vunpack.c.h.bf16 %v1389
    %v1573 = vunpack.c.l.bf16 %v1390
    %v1574 = vunpack.c.h.bf16 %v1390
    %v1575 = vunpack.c.l.bf16 %v1391
    %v1576 = vunpack.c.h.bf16 %v1391
    %v1577 = vunpack.c.l.bf16 %v1392
    %v1578 = vunpack.c.h.bf16 %v1392
    %v1579 = vunpack.c.l.bf16 %v1393
    %v1580 = vunpack.c.h.bf16 %v1393
    %v1581 = vunpack.c.l.bf16 %v1394
    %v1582 = vunpack.c.h.bf16 %v1394
    %v1583 = vunpack.c.l.bf16 %v1395
    %v1584 = vunpack.c.h.bf16 %v1395
    %v1585 = vunpack.c.l.bf16 %v1396
    %v1586 = vunpack.c.h.bf16 %v1396
    %v1587 = vunpack.c.l.bf16 %v1397
    %v1588 = vunpack.c.h.bf16 %v1397
    %v1589 = vunpack.c.l.bf16 %v1398
    %v1590 = vunpack.c.h.bf16 %v1398
    %v1591 = vunpack.c.l.bf16 %v1399
    %v1592 = vunpack.c.h.bf16 %v1399
    %v1593 = vunpack.c.l.bf16 %v1400
    %v1594 = vunpack.c.h.bf16 %v1400
    %v1595 = vunpack.c.l.bf16 %v1401
    %v1596 = vunpack.c.h.bf16 %v1401
    %v1597 = vunpack.c.l.bf16 %v1402
    %v1598 = vunpack.c.h.bf16 %v1402
    %v1599 = vunpack.c.l.bf16 %v1403
    %v1600 = vunpack.c.h.bf16 %v1403
    %v1601 = vunpack.c.l.bf16 %v1404
    %v1602 = vunpack.c.h.bf16 %v1404
    %v1603 = vunpack.c.l.bf16 %v1405
    %v1604 = vunpack.c.h.bf16 %v1405
    %v1605 = vunpack.c.l.bf16 %v1406
    %v1606 = vunpack.c.h.bf16 %v1406
    %v1607 = vunpack.c.l.bf16 %v1407
    %v1608 = vunpack.c.h.bf16 %v1407
    %v1609 = vunpack.c.l.bf16 %v1408
    %v1610 = vunpack.c.h.bf16 %v1408
    %v1611 = vunpack.c.l.bf16 %v1409
    %v1612 = vunpack.c.h.bf16 %v1409
    %v1613 = vunpack.c.l.bf16 %v1410
    %v1614 = vunpack.c.h.bf16 %v1410
    %v1615 = vunpack.c.l.bf16 %v1411
    %v1616 = vunpack.c.h.bf16 %v1411
    %v1617 = vunpack.c.l.bf16 %v1412
    %v1618 = vunpack.c.h.bf16 %v1412
    %v1619 = vunpack.c.l.bf16 %v1413
    %v1620 = vunpack.c.h.bf16 %v1413
    %v1621 = vunpack.c.l.bf16 %v1414
    %v1622 = vunpack.c.h.bf16 %v1414
    %v1623 = vunpack.c.l.bf16 %v1415
    %v1624 = vunpack.c.h.bf16 %v1415
    %v1625 = vunpack.c.l.bf16 %v1416
    %v1626 = vunpack.c.h.bf16 %v1416
    %v1627 = vunpack.c.l.bf16 %v1417
    %v1628 = vunpack.c.h.bf16 %v1417
    %v1629 = vunpack.c.l.bf16 %v1418
    %v1630 = vunpack.c.h.bf16 %v1418
    %v1631 = vunpack.c.l.bf16 %v1419
    %v1632 = vunpack.c.h.bf16 %v1419
    %v1633 = vunpack.c.l.bf16 %v1420
    %v1634 = vunpack.c.h.bf16 %v1420
    %v1635 = vunpack.c.l.bf16 %v1421
    %v1636 = vunpack.c.h.bf16 %v1421
    %v1637 = vunpack.c.l.bf16 %v1422
    %v1638 = vunpack.c.h.bf16 %v1422
    %v1639 = vunpack.c.l.bf16 %v1423
    %v1640 = vunpack.c.h.bf16 %v1423
    %v1641 = vunpack.c.l.bf16 %v1424
    %v1642 = vunpack.c.h.bf16 %v1424
    %v1643 = vunpack.c.l.bf16 %v1425
    %v1644 = vunpack.c.h.bf16 %v1425
    %v1645 = vunpack.c.l.bf16 %v1426
    %v1646 = vunpack.c.h.bf16 %v1426
    %v1647 = vunpack.c.l.bf16 %v1427
    %v1648 = vunpack.c.h.bf16 %v1427
    %v1649 = vunpack.c.l.bf16 %v1428
    %v1650 = vunpack.c.h.bf16 %v1428
    %v1651 = vunpack.c.l.bf16 %v1429
    %v1652 = vunpack.c.h.bf16 %v1429
    %v1653 = vunpack.c.l.bf16 %v1430
    %v1654 = vunpack.c.h.bf16 %v1430
    %v1655 = vunpack.c.l.bf16 %v1431
    %v1656 = vunpack.c.h.bf16 %v1431
    %v1657 = vunpack.c.l.bf16 %v1432
    %v1658 = vunpack.c.h.bf16 %v1432
    %v1659 = vunpack.c.l.bf16 %v1433
    %v1660 = vunpack.c.h.bf16 %v1433
    %v1661 = vunpack.c.l.bf16 %v1434
    %v1662 = vunpack.c.h.bf16 %v1434
    %v1663 = vunpack.c.l.bf16 %v1435
    %v1664 = vunpack.c.h.bf16 %v1435
    %v1665 = vunpack.c.l.bf16 %v1436
    %v1666 = vunpack.c.h.bf16 %v1436
    %v1667 = vunpack.c.l.bf16 %v1437
    %v1668 = vunpack.c.h.bf16 %v1437
    %v1669 = vunpack.c.l.bf16 %v1438
    %v1670 = vunpack.c.h.bf16 %v1438
    %v1671 = vunpack.c.l.bf16 %v1439
    %v1672 = vunpack.c.h.bf16 %v1439
    %v1673 = vunpack.c.l.bf16 %v1440
    %v1674 = vunpack.c.h.bf16 %v1440
    %v1675 = vunpack.c.l.bf16 %v1441
    %v1676 = vunpack.c.h.bf16 %v1441
    %v1677 = vunpack.c.l.bf16 %v1442
    %v1678 = vunpack.c.h.bf16 %v1442
    %v1679 = vunpack.c.l.bf16 %v1443
    %v1680 = vunpack.c.h.bf16 %v1443
    %v1681 = vunpack.c.l.bf16 %v1444
    %v1682 = vunpack.c.h.bf16 %v1444
    %v1683 = vunpack.c.l.bf16 %v1445
    %v1684 = vunpack.c.h.bf16 %v1445
    %v1685 = vunpack.c.l.bf16 %v1446
    %v1686 = vunpack.c.h.bf16 %v1446
    %v1687 = vunpack.c.l.bf16 %v1447
    %v1688 = vunpack.c.h.bf16 %v1447
    %v1689 = vunpack.c.l.bf16 %v1448
    %v1690 = vunpack.c.h.bf16 %v1448
    %v1691 = vunpack.c.l.bf16 %v1449
    %v1692 = vunpack.c.h.bf16 %v1449
    %v1693 = vunpack.c.l.bf16 %v1450
    %v1694 = vunpack.c.h.bf16 %v1450
    %v1695 = vunpack.c.l.bf16 %v1451
    %v1696 = vunpack.c.h.bf16 %v1451
    %v1697 = vunpack.c.l.bf16 %v1452
    %v1698 = vunpack.c.h.bf16 %v1452
    %v1699 = vunpack.c.l.bf16 %v1453
    %v1700 = vunpack.c.h.bf16 %v1453
    %v1701 = vunpack.c.l.bf16 %v1454
    %v1702 = vunpack.c.h.bf16 %v1454
    %v1703 = vunpack.c.l.bf16 %v1455
    %v1704 = vunpack.c.h.bf16 %v1455
    %v1705 = vunpack.c.l.bf16 %v1456
    %v1706 = vunpack.c.h.bf16 %v1456
    %v1707 = vunpack.c.l.bf16 %v1457
    %v1708 = vunpack.c.h.bf16 %v1457
    %v1709 = vunpack.c.l.bf16 %v1458
    %v1710 = vunpack.c.h.bf16 %v1458
    %v1711 = vunpack.c.l.bf16 %v1459
    %v1712 = vunpack.c.h.bf16 %v1459
    %v1713 = vunpack.c.l.bf16 %v1460
    %v1714 = vunpack.c.h.bf16 %v1460
    %v1715 = vunpack.c.l.bf16 %v1461
    %v1716 = vunpack.c.h.bf16 %v1461
    %v1717 = vunpack.c.l.bf16 %v1462
    %v1718 = vunpack.c.h.bf16 %v1462
    %v1719 = vunpack.c.l.bf16 %v1463
    %v1720 = vunpack.c.h.bf16 %v1463
    %v1721 = vunpack.c.l.bf16 %v1464
    %v1722 = vunpack.c.h.bf16 %v1464
    %v1723 = vunpack.c.l.bf16 %v1465
    %v1724 = vunpack.c.h.bf16 %v1465
    %v1725 = vunpack.c.l.bf16 %v1466
    %v1726 = vunpack.c.h.bf16 %v1466
    %v1727 = vunpack.c.l.bf16 %v1467
    %v1728 = vunpack.c.h.bf16 %v1467
    %v1729 = vunpack.c.l.bf16 %v1468
    %v1730 = vunpack.c.h.bf16 %v1468
    %v1731 = vunpack.c.l.bf16 %v1469
    %v1732 = vunpack.c.h.bf16 %v1469
    %v1733 = vunpack.c.l.bf16 %v1470
    %v1734 = vunpack.c.h.bf16 %v1470
    %v1735 = vunpack.c.l.bf16 %v1471
    %v1736 = vunpack.c.h.bf16 %v1471
    %v1737 = vunpack.c.l.bf16 %v1472
    %v1738 = vunpack.c.h.bf16 %v1472
    %v1739 = vunpack.c.l.bf16 %v1473
    %v1740 = vunpack.c.h.bf16 %v1473
    %v1741 = vunpack.c.l.bf16 %v1474
    %v1742 = vunpack.c.h.bf16 %v1474
    %v1743 = vunpack.c.l.bf16 %v1475
    %v1744 = vunpack.c.h.bf16 %v1475
    %v1745 = vunpack.c.l.bf16 %v1476
    %v1746 = vunpack.c.h.bf16 %v1476
    %v1747 = vunpack.c.l.bf16 %v1477
    %v1748 = vunpack.c.h.bf16 %v1477
    %v1749 = vunpack.c.l.bf16 %v1478
    %v1750 = vunpack.c.h.bf16 %v1478
    %v1751 = vunpack.c.l.bf16 %v1479
    %v1752 = vunpack.c.h.bf16 %v1479
    %v1753 = vunpack.c.l.bf16 %v1480
    %v1754 = vunpack.c.h.bf16 %v1480
    %v1755 = vunpack.c.l.bf16 %v1481
    %v1756 = vunpack.c.h.bf16 %v1481
    %v1757 = vunpack.c.l.bf16 %v1482
    %v1758 = vunpack.c.h.bf16 %v1482
    %v1759 = vunpack.c.l.bf16 %v1483
    %v1760 = vunpack.c.h.bf16 %v1483
    %v1761 = vunpack.c.l.bf16 %v1484
    %v1762 = vunpack.c.h.bf16 %v1484
    %v1763 = vunpack.c.l.bf16 %v1485
    %v1764 = vunpack.c.h.bf16 %v1485
    %v1765 = vunpack.c.l.bf16 %v1486
    %v1766 = vunpack.c.h.bf16 %v1486
    %v1767 = vunpack.c.l.bf16 %v1487
    %v1768 = vunpack.c.h.bf16 %v1487
    %v1769 = vunpack.c.l.bf16 %v1488
    %v1770 = vunpack.c.h.bf16 %v1488
    %v1771 = vunpack.c.l.bf16 %v1489
    %v1772 = vunpack.c.h.bf16 %v1489
    %v1773 = vunpack.c.l.bf16 %v1490
    %v1774 = vunpack.c.h.bf16 %v1490
    %v1775 = vunpack.c.l.bf16 %v1491
    %v1776 = vunpack.c.h.bf16 %v1491
    %v1777 = vunpack.c.l.bf16 %v1492
    %v1778 = vunpack.c.h.bf16 %v1492
    %v1779 = vunpack.c.l.bf16 %v1493
    %v1780 = vunpack.c.h.bf16 %v1493
    %v1781 = vunpack.c.l.bf16 %v1494
    %v1782 = vunpack.c.h.bf16 %v1494
    %v1783 = vunpack.c.l.bf16 %v1495
    %v1784 = vunpack.c.h.bf16 %v1495
    %v1785 = vunpack.c.l.bf16 %v1496
    %v1786 = vunpack.c.h.bf16 %v1496
    %v1787 = vunpack.c.l.bf16 %v1497
    %v1788 = vunpack.c.h.bf16 %v1497
    %v1789 = vunpack.c.l.bf16 %v1498
    %v1790 = vunpack.c.h.bf16 %v1498
    %v1791 = vunpack.c.l.bf16 %v1499
    %v1792 = vunpack.c.h.bf16 %v1499
    %v1793 = vunpack.c.l.bf16 %v1500
    %v1794 = vunpack.c.h.bf16 %v1500
    %v1795 = vunpack.c.l.bf16 %v1501
    %v1796 = vunpack.c.h.bf16 %v1501
    %v1797 = vunpack.c.l.bf16 %v1502
    %v1798 = vunpack.c.h.bf16 %v1502
    %v1799 = vunpack.c.l.bf16 %v1503
    %v1800 = vunpack.c.h.bf16 %v1503
    %v1801 = vunpack.c.l.bf16 %v1504
    %v1802 = vunpack.c.h.bf16 %v1504
    %v1803 = vunpack.c.l.bf16 %v1505
    %v1804 = vunpack.c.h.bf16 %v1505
    %v1805 = vunpack.c.l.bf16 %v1506
    %v1806 = vunpack.c.h.bf16 %v1506
    %v1807 = vunpack.c.l.bf16 %v1507
    %v1808 = vunpack.c.h.bf16 %v1507
    %v1809 = vunpack.c.l.bf16 %v1508
    %v1810 = vunpack.c.h.bf16 %v1508
    %v1811 = vunpack.c.l.bf16 %v1509
    %v1812 = vunpack.c.h.bf16 %v1509
    %v1813 = vunpack.c.l.bf16 %v1510
    %v1814 = vunpack.c.h.bf16 %v1510
    %v1815 = vunpack.c.l.bf16 %v1511
    %v1816 = vunpack.c.h.bf16 %v1511
    %v1817 = vunpack.c.l.bf16 %v1512
    %v1818 = vunpack.c.h.bf16 %v1512
    %v1819 = vunpack.c.l.bf16 %v1513
    %v1820 = vunpack.c.h.bf16 %v1513
    %v1821 = vunpack.c.l.bf16 %v1514
    %v1822 = vunpack.c.h.bf16 %v1514
    %v1823 = vunpack.c.l.bf16 %v1515
    %v1824 = vunpack.c.h.bf16 %v1515
    %v1825 = vunpack.c.l.bf16 %v1516
    %v1826 = vunpack.c.h.bf16 %v1516
    %v1827 = vunpack.c.l.bf16 %v1517
    %v1828 = vunpack.c.h.bf16 %v1517
    %v1829 = vunpack.c.l.bf16 %v1518
    %v1830 = vunpack.c.h.bf16 %v1518
    %v1831 = vunpack.c.l.bf16 %v1519
    %v1832 = vunpack.c.h.bf16 %v1519
    %v1833 = vunpack.c.l.bf16 %v1520
    %v1834 = vunpack.c.h.bf16 %v1520
    %v1835 = vunpack.c.l.bf16 %v1521
    %v1836 = vunpack.c.h.bf16 %v1521
    %v1837 = vunpack.c.l.bf16 %v1522
    %v1838 = vunpack.c.h.bf16 %v1522
    %v1839 = vunpack.c.l.bf16 %v1523
    %v1840 = vunpack.c.h.bf16 %v1523
    %v1841 = vunpack.c.l.bf16 %v1524
    %v1842 = vunpack.c.h.bf16 %v1524
    %v1843 = vunpack.c.l.bf16 %v1525
    %v1844 = vunpack.c.h.bf16 %v1525
    %v1845 = vunpack.c.l.bf16 %v1526
    %v1846 = vunpack.c.h.bf16 %v1526
    %s1847 = scalar_lea.vmem %s1, 1
    %v1848 = vld [vmem:[%s1847] ss:$8 sm:$0xf]
    %v1850 = vperm.slane %v1848, 0
    %v1851 = vperm.slane %v1848, 1
    %v1852 = vperm.slane %v1848, 2
    %v1853 = vperm.slane %v1848, 3
    %1858 = vmatpush.msra.mxu0 %v1587
    %1859 = vmatpush.msra.mxu0 %v1583
    %1860 = vmatpush.msra.mxu0 %v1579
    %1861 = vmatpush.msra.mxu0 %v1575
    %1862 = vmatpush.msra.mxu0 %v1571
    %1863 = vmatpush.msra.mxu0 %v1567
    %1864 = vmatpush.msra.mxu0 %v1563
    %1865 = vmatpush.msra.mxu0 %v1559
    %1866 = vmatpush.msra.mxu0 %v1555
    %1867 = vmatpush.msra.mxu0 %v1551
    %1868 = vmatpush.msra.mxu0 %v1547
    %1869 = vmatpush.msra.mxu0 %v1543
    %1870 = vmatpush.msra.mxu0 %v1539
    %1871 = vmatpush.msra.mxu0 %v1535
    %1872 = vmatpush.msra.mxu0 %v1531
    %1873 = vmatpush.msra.mxu0 %v1527
    %1874 = vmatmul.f32.gmra.mxu0 %v1358
    %v1875 = vpop.f32.mrf.mxu0
    %v1876 = vadd.f32 %v1850, %v1875
    %1877 = vdwg.mxu0
    %1878 = vmatpush.msra.mxu0 %v1651
    %1879 = vmatpush.msra.mxu0 %v1647
    %1880 = vmatpush.msra.mxu0 %v1643
    %1881 = vmatpush.msra.mxu0 %v1639
    %1882 = vmatpush.msra.mxu0 %v1635
    %1883 = vmatpush.msra.mxu0 %v1631
    %1884 = vmatpush.msra.mxu0 %v1627
    %1885 = vmatpush.msra.mxu0 %v1623
    %1886 = vmatpush.msra.mxu0 %v1619
    %1887 = vmatpush.msra.mxu0 %v1615
    %1888 = vmatpush.msra.mxu0 %v1611
    %1889 = vmatpush.msra.mxu0 %v1607
    %1890 = vmatpush.msra.mxu0 %v1603
    %1891 = vmatpush.msra.mxu0 %v1599
    %1892 = vmatpush.msra.mxu0 %v1595
    %1893 = vmatpush.msra.mxu0 %v1591
    %1894 = vmatmul.f32.gmra.mxu0 %v1359
    %v1895 = vpop.f32.mrf.mxu0
    %v1896 = vadd.f32 %v1876, %v1895
    %1897 = vdwg.mxu0
    %1898 = vmatpush.msra.mxu0 %v1715
    %1899 = vmatpush.msra.mxu0 %v1711
    %1900 = vmatpush.msra.mxu0 %v1707
    %1901 = vmatpush.msra.mxu0 %v1703
    %1902 = vmatpush.msra.mxu0 %v1699
    %1903 = vmatpush.msra.mxu0 %v1695
    %1904 = vmatpush.msra.mxu0 %v1691
    %1905 = vmatpush.msra.mxu0 %v1687
    %1906 = vmatpush.msra.mxu0 %v1683
    %1907 = vmatpush.msra.mxu0 %v1679
    %1908 = vmatpush.msra.mxu0 %v1675
    %1909 = vmatpush.msra.mxu0 %v1671
    %1910 = vmatpush.msra.mxu0 %v1667
    %1911 = vmatpush.msra.mxu0 %v1663
    %1912 = vmatpush.msra.mxu0 %v1659
    %1913 = vmatpush.msra.mxu0 %v1655
    %1914 = vmatmul.f32.gmra.mxu0 %v1360
    %v1915 = vpop.f32.mrf.mxu0
    %v1916 = vadd.f32 %v1896, %v1915
    %1917 = vdwg.mxu0
    %1918 = vmatpush.msra.mxu0 %v1779
    %1919 = vmatpush.msra.mxu0 %v1775
    %1920 = vmatpush.msra.mxu0 %v1771
    %1921 = vmatpush.msra.mxu0 %v1767
    %1922 = vmatpush.msra.mxu0 %v1763
    %1923 = vmatpush.msra.mxu0 %v1759
    %1924 = vmatpush.msra.mxu0 %v1755
    %1925 = vmatpush.msra.mxu0 %v1751
    %1926 = vmatpush.msra.mxu0 %v1747
    %1927 = vmatpush.msra.mxu0 %v1743
    %1928 = vmatpush.msra.mxu0 %v1739
    %1929 = vmatpush.msra.mxu0 %v1735
    %1930 = vmatpush.msra.mxu0 %v1731
    %1931 = vmatpush.msra.mxu0 %v1727
    %1932 = vmatpush.msra.mxu0 %v1723
    %1933 = vmatpush.msra.mxu0 %v1719
    %1934 = vmatmul.f32.gmra.mxu0 %v1361
    %v1935 = vpop.f32.mrf.mxu0
    %v1936 = vadd.f32 %v1916, %v1935
    %1937 = vdwg.mxu0
    %1938 = vmatpush.msra.mxu0 %v1843
    %1939 = vmatpush.msra.mxu0 %v1839
    %1940 = vmatpush.msra.mxu0 %v1835
    %1941 = vmatpush.msra.mxu0 %v1831
    %1942 = vmatpush.msra.mxu0 %v1827
    %1943 = vmatpush.msra.mxu0 %v1823
    %1944 = vmatpush.msra.mxu0 %v1819
    %1945 = vmatpush.msra.mxu0 %v1815
    %1946 = vmatpush.msra.mxu0 %v1811
    %1947 = vmatpush.msra.mxu0 %v1807
    %1948 = vmatpush.msra.mxu0 %v1803
    %1949 = vmatpush.msra.mxu0 %v1799
    %1950 = vmatpush.msra.mxu0 %v1795
    %1951 = vmatpush.msra.mxu0 %v1791
    %1952 = vmatpush.msra.mxu0 %v1787
    %1953 = vmatpush.msra.mxu0 %v1783
    %1954 = vmatmul.f32.gmra.mxu0 %v1362
    %v1955 = vpop.f32.mrf.mxu0
    %v1956 = vadd.f32 %v1936, %v1955
    %1957 = vdwg.mxu0
    %1958 = vmatpush.msra.mxu0 %v1588
    %1959 = vmatpush.msra.mxu0 %v1584
    %1960 = vmatpush.msra.mxu0 %v1580
    %1961 = vmatpush.msra.mxu0 %v1576
    %1962 = vmatpush.msra.mxu0 %v1572
    %1963 = vmatpush.msra.mxu0 %v1568
    %1964 = vmatpush.msra.mxu0 %v1564
    %1965 = vmatpush.msra.mxu0 %v1560
    %1966 = vmatpush.msra.mxu0 %v1556
    %1967 = vmatpush.msra.mxu0 %v1552
    %1968 = vmatpush.msra.mxu0 %v1548
    %1969 = vmatpush.msra.mxu0 %v1544
    %1970 = vmatpush.msra.mxu0 %v1540
    %1971 = vmatpush.msra.mxu0 %v1536
    %1972 = vmatpush.msra.mxu0 %v1532
    %1973 = vmatpush.msra.mxu0 %v1528
    %1974 = vmatmul.f32.gmra.mxu0 %v1358
    %v1975 = vpop.f32.mrf.mxu0
    %v1976 = vadd.f32 %v1851, %v1975
    %1977 = vdwg.mxu0
    %1978 = vmatpush.msra.mxu0 %v1652
    %1979 = vmatpush.msra.mxu0 %v1648
    %1980 = vmatpush.msra.mxu0 %v1644
    %1981 = vmatpush.msra.mxu0 %v1640
    %1982 = vmatpush.msra.mxu0 %v1636
    %1983 = vmatpush.msra.mxu0 %v1632
    %1984 = vmatpush.msra.mxu0 %v1628
    %1985 = vmatpush.msra.mxu0 %v1624
    %1986 = vmatpush.msra.mxu0 %v1620
    %1987 = vmatpush.msra.mxu0 %v1616
    %1988 = vmatpush.msra.mxu0 %v1612
    %1989 = vmatpush.msra.mxu0 %v1608
    %1990 = vmatpush.msra.mxu0 %v1604
    %1991 = vmatpush.msra.mxu0 %v1600
    %1992 = vmatpush.msra.mxu0 %v1596
    %1993 = vmatpush.msra.mxu0 %v1592
    %1994 = vmatmul.f32.gmra.mxu0 %v1359
    %v1995 = vpop.f32.mrf.mxu0
    %v1996 = vadd.f32 %v1976, %v1995
    %1997 = vdwg.mxu0
    %1998 = vmatpush.msra.mxu0 %v1716
    %1999 = vmatpush.msra.mxu0 %v1712
    %2000 = vmatpush.msra.mxu0 %v1708
    %2001 = vmatpush.msra.mxu0 %v1704
    %2002 = vmatpush.msra.mxu0 %v1700
    %2003 = vmatpush.msra.mxu0 %v1696
    %2004 = vmatpush.msra.mxu0 %v1692
    %2005 = vmatpush.msra.mxu0 %v1688
    %2006 = vmatpush.msra.mxu0 %v1684
    %2007 = vmatpush.msra.mxu0 %v1680
    %2008 = vmatpush.msra.mxu0 %v1676
    %2009 = vmatpush.msra.mxu0 %v1672
    %2010 = vmatpush.msra.mxu0 %v1668
    %2011 = vmatpush.msra.mxu0 %v1664
    %2012 = vmatpush.msra.mxu0 %v1660
    %2013 = vmatpush.msra.mxu0 %v1656
    %2014 = vmatmul.f32.gmra.mxu0 %v1360
    %v2015 = vpop.f32.mrf.mxu0
    %v2016 = vadd.f32 %v1996, %v2015
    %2017 = vdwg.mxu0
    %2018 = vmatpush.msra.mxu0 %v1780
    %2019 = vmatpush.msra.mxu0 %v1776
    %2020 = vmatpush.msra.mxu0 %v1772
    %2021 = vmatpush.msra.mxu0 %v1768
    %2022 = vmatpush.msra.mxu0 %v1764
    %2023 = vmatpush.msra.mxu0 %v1760
    %2024 = vmatpush.msra.mxu0 %v1756
    %2025 = vmatpush.msra.mxu0 %v1752
    %2026 = vmatpush.msra.mxu0 %v1748
    %2027 = vmatpush.msra.mxu0 %v1744
    %2028 = vmatpush.msra.mxu0 %v1740
    %2029 = vmatpush.msra.mxu0 %v1736
    %2030 = vmatpush.msra.mxu0 %v1732
    %2031 = vmatpush.msra.mxu0 %v1728
    %2032 = vmatpush.msra.mxu0 %v1724
    %2033 = vmatpush.msra.mxu0 %v1720
    %2034 = vmatmul.f32.gmra.mxu0 %v1361
    %v2035 = vpop.f32.mrf.mxu0
    %v2036 = vadd.f32 %v2016, %v2035
    %2037 = vdwg.mxu0
    %2038 = vmatpush.msra.mxu0 %v1844
    %2039 = vmatpush.msra.mxu0 %v1840
    %2040 = vmatpush.msra.mxu0 %v1836
    %2041 = vmatpush.msra.mxu0 %v1832
    %2042 = vmatpush.msra.mxu0 %v1828
    %2043 = vmatpush.msra.mxu0 %v1824
    %2044 = vmatpush.msra.mxu0 %v1820
    %2045 = vmatpush.msra.mxu0 %v1816
    %2046 = vmatpush.msra.mxu0 %v1812
    %2047 = vmatpush.msra.mxu0 %v1808
    %2048 = vmatpush.msra.mxu0 %v1804
    %2049 = vmatpush.msra.mxu0 %v1800
    %2050 = vmatpush.msra.mxu0 %v1796
    %2051 = vmatpush.msra.mxu0 %v1792
    %2052 = vmatpush.msra.mxu0 %v1788
    %2053 = vmatpush.msra.mxu0 %v1784
    %2054 = vmatmul.f32.gmra.mxu0 %v1362
    %v2055 = vpop.f32.mrf.mxu0
    %v2056 = vadd.f32 %v2036, %v2055
    %2057 = vdwg.mxu0
    %2058 = vmatpush.msra.mxu0 %v1589
    %2059 = vmatpush.msra.mxu0 %v1585
    %2060 = vmatpush.msra.mxu0 %v1581
    %2061 = vmatpush.msra.mxu0 %v1577
    %2062 = vmatpush.msra.mxu0 %v1573
    %2063 = vmatpush.msra.mxu0 %v1569
    %2064 = vmatpush.msra.mxu0 %v1565
    %2065 = vmatpush.msra.mxu0 %v1561
    %2066 = vmatpush.msra.mxu0 %v1557
    %2067 = vmatpush.msra.mxu0 %v1553
    %2068 = vmatpush.msra.mxu0 %v1549
    %2069 = vmatpush.msra.mxu0 %v1545
    %2070 = vmatpush.msra.mxu0 %v1541
    %2071 = vmatpush.msra.mxu0 %v1537
    %2072 = vmatpush.msra.mxu0 %v1533
    %2073 = vmatpush.msra.mxu0 %v1529
    %2074 = vmatmul.f32.gmra.mxu0 %v1358
    %v2075 = vpop.f32.mrf.mxu0
    %v2076 = vadd.f32 %v1852, %v2075
    %2077 = vdwg.mxu0
    %2078 = vmatpush.msra.mxu0 %v1653
    %2079 = vmatpush.msra.mxu0 %v1649
    %2080 = vmatpush.msra.mxu0 %v1645
    %2081 = vmatpush.msra.mxu0 %v1641
    %2082 = vmatpush.msra.mxu0 %v1637
    %2083 = vmatpush.msra.mxu0 %v1633
    %2084 = vmatpush.msra.mxu0 %v1629
    %2085 = vmatpush.msra.mxu0 %v1625
    %2086 = vmatpush.msra.mxu0 %v1621
    %2087 = vmatpush.msra.mxu0 %v1617
    %2088 = vmatpush.msra.mxu0 %v1613
    %2089 = vmatpush.msra.mxu0 %v1609
    %2090 = vmatpush.msra.mxu0 %v1605
    %2091 = vmatpush.msra.mxu0 %v1601
    %2092 = vmatpush.msra.mxu0 %v1597
    %2093 = vmatpush.msra.mxu0 %v1593
    %2094 = vmatmul.f32.gmra.mxu0 %v1359
    %v2095 = vpop.f32.mrf.mxu0
    %v2096 = vadd.f32 %v2076, %v2095
    %2097 = vdwg.mxu0
    %2098 = vmatpush.msra.mxu0 %v1717
    %2099 = vmatpush.msra.mxu0 %v1713
    %2100 = vmatpush.msra.mxu0 %v1709
    %2101 = vmatpush.msra.mxu0 %v1705
    %2102 = vmatpush.msra.mxu0 %v1701
    %2103 = vmatpush.msra.mxu0 %v1697
    %2104 = vmatpush.msra.mxu0 %v1693
    %2105 = vmatpush.msra.mxu0 %v1689
    %2106 = vmatpush.msra.mxu0 %v1685
    %2107 = vmatpush.msra.mxu0 %v1681
    %2108 = vmatpush.msra.mxu0 %v1677
    %2109 = vmatpush.msra.mxu0 %v1673
    %2110 = vmatpush.msra.mxu0 %v1669
    %2111 = vmatpush.msra.mxu0 %v1665
    %2112 = vmatpush.msra.mxu0 %v1661
    %2113 = vmatpush.msra.mxu0 %v1657
    %2114 = vmatmul.f32.gmra.mxu0 %v1360
    %v2115 = vpop.f32.mrf.mxu0
    %v2116 = vadd.f32 %v2096, %v2115
    %2117 = vdwg.mxu0
    %2118 = vmatpush.msra.mxu0 %v1781
    %2119 = vmatpush.msra.mxu0 %v1777
    %2120 = vmatpush.msra.mxu0 %v1773
    %2121 = vmatpush.msra.mxu0 %v1769
    %2122 = vmatpush.msra.mxu0 %v1765
    %2123 = vmatpush.msra.mxu0 %v1761
    %2124 = vmatpush.msra.mxu0 %v1757
    %2125 = vmatpush.msra.mxu0 %v1753
    %2126 = vmatpush.msra.mxu0 %v1749
    %2127 = vmatpush.msra.mxu0 %v1745
    %2128 = vmatpush.msra.mxu0 %v1741
    %2129 = vmatpush.msra.mxu0 %v1737
    %2130 = vmatpush.msra.mxu0 %v1733
    %2131 = vmatpush.msra.mxu0 %v1729
    %2132 = vmatpush.msra.mxu0 %v1725
    %2133 = vmatpush.msra.mxu0 %v1721
    %2134 = vmatmul.f32.gmra.mxu0 %v1361
    %v2135 = vpop.f32.mrf.mxu0
    %v2136 = vadd.f32 %v2116, %v2135
    %2137 = vdwg.mxu0
    %2138 = vmatpush.msra.mxu0 %v1845
    %2139 = vmatpush.msra.mxu0 %v1841
    %2140 = vmatpush.msra.mxu0 %v1837
    %2141 = vmatpush.msra.mxu0 %v1833
    %2142 = vmatpush.msra.mxu0 %v1829
    %2143 = vmatpush.msra.mxu0 %v1825
    %2144 = vmatpush.msra.mxu0 %v1821
    %2145 = vmatpush.msra.mxu0 %v1817
    %2146 = vmatpush.msra.mxu0 %v1813
    %2147 = vmatpush.msra.mxu0 %v1809
    %2148 = vmatpush.msra.mxu0 %v1805
    %2149 = vmatpush.msra.mxu0 %v1801
    %2150 = vmatpush.msra.mxu0 %v1797
    %2151 = vmatpush.msra.mxu0 %v1793
    %2152 = vmatpush.msra.mxu0 %v1789
    %2153 = vmatpush.msra.mxu0 %v1785
    %2154 = vmatmul.f32.gmra.mxu0 %v1362
    %v2155 = vpop.f32.mrf.mxu0
    %v2156 = vadd.f32 %v2136, %v2155
    %2157 = vdwg.mxu0
    %2158 = vmatpush.msra.mxu0 %v1590
    %2159 = vmatpush.msra.mxu0 %v1586
    %2160 = vmatpush.msra.mxu0 %v1582
    %2161 = vmatpush.msra.mxu0 %v1578
    %2162 = vmatpush.msra.mxu0 %v1574
    %2163 = vmatpush.msra.mxu0 %v1570
    %2164 = vmatpush.msra.mxu0 %v1566
    %2165 = vmatpush.msra.mxu0 %v1562
    %2166 = vmatpush.msra.mxu0 %v1558
    %2167 = vmatpush.msra.mxu0 %v1554
    %2168 = vmatpush.msra.mxu0 %v1550
    %2169 = vmatpush.msra.mxu0 %v1546
    %2170 = vmatpush.msra.mxu0 %v1542
    %2171 = vmatpush.msra.mxu0 %v1538
    %2172 = vmatpush.msra.mxu0 %v1534
    %2173 = vmatpush.msra.mxu0 %v1530
    %2174 = vmatmul.f32.gmra.mxu0 %v1358
    %v2175 = vpop.f32.mrf.mxu0
    %v2176 = vadd.f32 %v1853, %v2175
    %2177 = vdwg.mxu0
    %2178 = vmatpush.msra.mxu0 %v1654
    %2179 = vmatpush.msra.mxu0 %v1650
    %2180 = vmatpush.msra.mxu0 %v1646
    %2181 = vmatpush.msra.mxu0 %v1642
    %2182 = vmatpush.msra.mxu0 %v1638
    %2183 = vmatpush.msra.mxu0 %v1634
    %2184 = vmatpush.msra.mxu0 %v1630
    %2185 = vmatpush.msra.mxu0 %v1626
    %2186 = vmatpush.msra.mxu0 %v1622
    %2187 = vmatpush.msra.mxu0 %v1618
    %2188 = vmatpush.msra.mxu0 %v1614
    %2189 = vmatpush.msra.mxu0 %v1610
    %2190 = vmatpush.msra.mxu0 %v1606
    %2191 = vmatpush.msra.mxu0 %v1602
    %2192 = vmatpush.msra.mxu0 %v1598
    %2193 = vmatpush.msra.mxu0 %v1594
    %2194 = vmatmul.f32.gmra.mxu0 %v1359
    %v2195 = vpop.f32.mrf.mxu0
    %v2196 = vadd.f32 %v2176, %v2195
    %2197 = vdwg.mxu0
    %2198 = vmatpush.msra.mxu0 %v1718
    %2199 = vmatpush.msra.mxu0 %v1714
    %2200 = vmatpush.msra.mxu0 %v1710
    %2201 = vmatpush.msra.mxu0 %v1706
    %2202 = vmatpush.msra.mxu0 %v1702
    %2203 = vmatpush.msra.mxu0 %v1698
    %2204 = vmatpush.msra.mxu0 %v1694
    %2205 = vmatpush.msra.mxu0 %v1690
    %2206 = vmatpush.msra.mxu0 %v1686
    %2207 = vmatpush.msra.mxu0 %v1682
    %2208 = vmatpush.msra.mxu0 %v1678
    %2209 = vmatpush.msra.mxu0 %v1674
    %2210 = vmatpush.msra.mxu0 %v1670
    %2211 = vmatpush.msra.mxu0 %v1666
    %2212 = vmatpush.msra.mxu0 %v1662
    %2213 = vmatpush.msra.mxu0 %v1658
    %2214 = vmatmul.f32.gmra.mxu0 %v1360
    %v2215 = vpop.f32.mrf.mxu0
    %v2216 = vadd.f32 %v2196, %v2215
    %2217 = vdwg.mxu0
    %2218 = vmatpush.msra.mxu0 %v1782
    %2219 = vmatpush.msra.mxu0 %v1778
    %2220 = vmatpush.msra.mxu0 %v1774
    %2221 = vmatpush.msra.mxu0 %v1770
    %2222 = vmatpush.msra.mxu0 %v1766
    %2223 = vmatpush.msra.mxu0 %v1762
    %2224 = vmatpush.msra.mxu0 %v1758
    %2225 = vmatpush.msra.mxu0 %v1754
    %2226 = vmatpush.msra.mxu0 %v1750
    %2227 = vmatpush.msra.mxu0 %v1746
    %2228 = vmatpush.msra.mxu0 %v1742
    %2229 = vmatpush.msra.mxu0 %v1738
    %2230 = vmatpush.msra.mxu0 %v1734
    %2231 = vmatpush.msra.mxu0 %v1730
    %2232 = vmatpush.msra.mxu0 %v1726
    %2233 = vmatpush.msra.mxu0 %v1722
    %2234 = vmatmul.f32.gmra.mxu0 %v1361
    %v2235 = vpop.f32.mrf.mxu0
    %v2236 = vadd.f32 %v2216, %v2235
    %2237 = vdwg.mxu0
    %2238 = vmatpush.msra.mxu0 %v1846
    %2239 = vmatpush.msra.mxu0 %v1842
    %2240 = vmatpush.msra.mxu0 %v1838
    %2241 = vmatpush.msra.mxu0 %v1834
    %2242 = vmatpush.msra.mxu0 %v1830
    %2243 = vmatpush.msra.mxu0 %v1826
    %2244 = vmatpush.msra.mxu0 %v1822
    %2245 = vmatpush.msra.mxu0 %v1818
    %2246 = vmatpush.msra.mxu0 %v1814
    %2247 = vmatpush.msra.mxu0 %v1810
    %2248 = vmatpush.msra.mxu0 %v1806
    %2249 = vmatpush.msra.mxu0 %v1802
    %2250 = vmatpush.msra.mxu0 %v1798
    %2251 = vmatpush.msra.mxu0 %v1794
    %2252 = vmatpush.msra.mxu0 %v1790
    %2253 = vmatpush.msra.mxu0 %v1786
    %2254 = vmatmul.f32.gmra.mxu0 %v1362
    %v2255 = vpop.f32.mrf.mxu0
    %v2256 = vadd.f32 %v2236, %v2255
    %2257 = vdwg.mxu0
    %v2258 = vmax.f32 %v1956, 0.0
    %v2259 = vmax.f32 %v2056, 0.0
    %v2260 = vmax.f32 %v2156, 0.0
    %v2261 = vmax.f32 %v2256, 0.0
    %s2262 = smul.u32 4, 50
    %s2263 = smul.u32 %s2262, 3
    %s2264 = sshll.u32 %s2263, 4
    %2265 = dma.done %s531, %s2264
    %v2266 = vld [vmem:[#allocation4] sm:$0xff]
    %v2267 = vld [vmem:[#allocation4 + $0x8] sm:$0xf]
    %v2268 = vld [vmem:[#allocation4 + $0xc] sm:$0xff]
    %v2269 = vld [vmem:[#allocation4 + $0x14] sm:$0xf]
    %v2270 = vld [vmem:[#allocation4 + $0x18] sm:$0xff]
    %v2271 = vld [vmem:[#allocation4 + $0x20] sm:$0xf]
    %v2272 = vld [vmem:[#allocation4 + $0x24] sm:$0xff]
    %v2273 = vld [vmem:[#allocation4 + $0x2c] sm:$0xf]
    %v2274 = vld [vmem:[#allocation4 + $0x30] sm:$0xff]
    %v2275 = vld [vmem:[#allocation4 + $0x38] sm:$0xf]
    %v2276 = vld [vmem:[#allocation4 + $0x3c] sm:$0xff]
    %v2277 = vld [vmem:[#allocation4 + $0x44] sm:$0xf]
    %v2278 = vld [vmem:[#allocation4 + $0x48] sm:$0xff]
    %v2279 = vld [vmem:[#allocation4 + $0x50] sm:$0xf]
    %v2280 = vld [vmem:[#allocation4 + $0x54] sm:$0xff]
    %v2281 = vld [vmem:[#allocation4 + $0x5c] sm:$0xf]
    %v2282 = vld [vmem:[#allocation4 + $0x60] sm:$0xff]
    %v2283 = vld [vmem:[#allocation4 + $0x68] sm:$0xf]
    %v2284 = vld [vmem:[#allocation4 + $0x6c] sm:$0xff]
    %v2285 = vld [vmem:[#allocation4 + $0x74] sm:$0xf]
    %v2286 = vld [vmem:[#allocation4 + $0x78] sm:$0xff]
    %v2287 = vld [vmem:[#allocation4 + $0x80] sm:$0xf]
    %v2288 = vld [vmem:[#allocation4 + $0x84] sm:$0xff]
    %v2289 = vld [vmem:[#allocation4 + $0x8c] sm:$0xf]
    %v2290 = vld [vmem:[#allocation4 + $0x90] sm:$0xff]
    %v2291 = vld [vmem:[#allocation4 + $0x98] sm:$0xf]
    %v2292 = vld [vmem:[#allocation4 + $0x9c] sm:$0xff]
    %v2293 = vld [vmem:[#allocation4 + $0xa4] sm:$0xf]
    %v2294 = vld [vmem:[#allocation4 + $0xa8] sm:$0xff]
    %v2295 = vld [vmem:[#allocation4 + $0xb0] sm:$0xf]
    %v2296 = vld [vmem:[#allocation4 + $0xb4] sm:$0xff]
    %v2297 = vld [vmem:[#allocation4 + $0xbc] sm:$0xf]
    %v2298 = vld [vmem:[#allocation4 + $0xc0] sm:$0xff]
    %v2299 = vld [vmem:[#allocation4 + $0xc8] sm:$0xf]
    %v2300 = vld [vmem:[#allocation4 + $0xcc] sm:$0xff]
    %v2301 = vld [vmem:[#allocation4 + $0xd4] sm:$0xf]
    %v2302 = vld [vmem:[#allocation4 + $0xd8] sm:$0xff]
    %v2303 = vld [vmem:[#allocation4 + $0xe0] sm:$0xf]
    %v2304 = vld [vmem:[#allocation4 + $0xe4] sm:$0xff]
    %v2305 = vld [vmem:[#allocation4 + $0xec] sm:$0xf]
    %v2306 = vld [vmem:[#allocation4 + $0xf0] sm:$0xff]
    %v2307 = vld [vmem:[#allocation4 + $0xf8] sm:$0xf]
    %v2308 = vld [vmem:[#allocation4 + $0xfc] sm:$0xff]
    %v2309 = vld [vmem:[#allocation4 + $0x104] sm:$0xf]
    %v2310 = vld [vmem:[#allocation4 + $0x108] sm:$0xff]
    %v2311 = vld [vmem:[#allocation4 + $0x110] sm:$0xf]
    %v2312 = vld [vmem:[#allocation4 + $0x114] sm:$0xff]
    %v2313 = vld [vmem:[#allocation4 + $0x11c] sm:$0xf]
    %v2314 = vld [vmem:[#allocation4 + $0x120] sm:$0xff]
    %v2315 = vld [vmem:[#allocation4 + $0x128] sm:$0xf]
    %v2316 = vld [vmem:[#allocation4 + $0x12c] sm:$0xff]
    %v2317 = vld [vmem:[#allocation4 + $0x134] sm:$0xf]
    %v2318 = vld [vmem:[#allocation4 + $0x138] sm:$0xff]
    %v2319 = vld [vmem:[#allocation4 + $0x140] sm:$0xf]
    %v2320 = vld [vmem:[#allocation4 + $0x144] sm:$0xff]
    %v2321 = vld [vmem:[#allocation4 + $0x14c] sm:$0xf]
    %v2322 = vld [vmem:[#allocation4 + $0x150] sm:$0xff]
    %v2323 = vld [vmem:[#allocation4 + $0x158] sm:$0xf]
    %v2324 = vld [vmem:[#allocation4 + $0x15c] sm:$0xff]
    %v2325 = vld [vmem:[#allocation4 + $0x164] sm:$0xf]
    %v2326 = vld [vmem:[#allocation4 + $0x168] sm:$0xff]
    %v2327 = vld [vmem:[#allocation4 + $0x170] sm:$0xf]
    %v2328 = vld [vmem:[#allocation4 + $0x174] sm:$0xff]
    %v2329 = vld [vmem:[#allocation4 + $0x17c] sm:$0xf]
    %v2330 = vld [vmem:[#allocation4 + $0x180] sm:$0xff]
    %v2331 = vld [vmem:[#allocation4 + $0x188] sm:$0xf]
    %v2332 = vld [vmem:[#allocation4 + $0x18c] sm:$0xff]
    %v2333 = vld [vmem:[#allocation4 + $0x194] sm:$0xf]
    %v2334 = vld [vmem:[#allocation4 + $0x198] sm:$0xff]
    %v2335 = vld [vmem:[#allocation4 + $0x1a0] sm:$0xf]
    %v2336 = vld [vmem:[#allocation4 + $0x1a4] sm:$0xff]
    %v2337 = vld [vmem:[#allocation4 + $0x1ac] sm:$0xf]
    %v2338 = vld [vmem:[#allocation4 + $0x1b0] sm:$0xff]
    %v2339 = vld [vmem:[#allocation4 + $0x1b8] sm:$0xf]
    %v2340 = vld [vmem:[#allocation4 + $0x1bc] sm:$0xff]
    %v2341 = vld [vmem:[#allocation4 + $0x1c4] sm:$0xf]
    %v2342 = vld [vmem:[#allocation4 + $0x1c8] sm:$0xff]
    %v2343 = vld [vmem:[#allocation4 + $0x1d0] sm:$0xf]
    %v2344 = vld [vmem:[#allocation4 + $0x1d4] sm:$0xff]
    %v2345 = vld [vmem:[#allocation4 + $0x1dc] sm:$0xf]
    %v2346 = vld [vmem:[#allocation4 + $0x1e0] sm:$0xff]
    %v2347 = vld [vmem:[#allocation4 + $0x1e8] sm:$0xf]
    %v2348 = vld [vmem:[#allocation4 + $0x1ec] sm:$0xff]
    %v2349 = vld [vmem:[#allocation4 + $0x1f4] sm:$0xf]
    %v2350 = vld [vmem:[#allocation4 + $0x1f8] sm:$0xff]
    %v2351 = vld [vmem:[#allocation4 + $0x200] sm:$0xf]
    %v2352 = vld [vmem:[#allocation4 + $0x204] sm:$0xff]
    %v2353 = vld [vmem:[#allocation4 + $0x20c] sm:$0xf]
    %v2354 = vld [vmem:[#allocation4 + $0x210] sm:$0xff]
    %v2355 = vld [vmem:[#allocation4 + $0x218] sm:$0xf]
    %v2356 = vld [vmem:[#allocation4 + $0x21c] sm:$0xff]
    %v2357 = vld [vmem:[#allocation4 + $0x224] sm:$0xf]
    %v2358 = vld [vmem:[#allocation4 + $0x228] sm:$0xff]
    %v2359 = vld [vmem:[#allocation4 + $0x230] sm:$0xf]
    %v2360 = vld [vmem:[#allocation4 + $0x234] sm:$0xff]
    %v2361 = vld [vmem:[#allocation4 + $0x23c] sm:$0xf]
    %v2362 = vld [vmem:[#allocation4 + $0x240] sm:$0xff]
    %v2363 = vld [vmem:[#allocation4 + $0x248] sm:$0xf]
    %v2364 = vld [vmem:[#allocation4 + $0x24c] sm:$0xff]
    %v2365 = vld [vmem:[#allocation4 + $0x254] sm:$0xf]
    %v2366 = vunpack.c.l.bf16 %v2266
    %v2367 = vunpack.c.h.bf16 %v2266
    %v2368 = vunpack.c.l.bf16 %v2267
    %v2369 = vunpack.c.l.bf16 %v2268
    %v2370 = vunpack.c.h.bf16 %v2268
    %v2371 = vunpack.c.l.bf16 %v2269
    %v2372 = vunpack.c.l.bf16 %v2270
    %v2373 = vunpack.c.h.bf16 %v2270
    %v2374 = vunpack.c.l.bf16 %v2271
    %v2375 = vunpack.c.l.bf16 %v2272
    %v2376 = vunpack.c.h.bf16 %v2272
    %v2377 = vunpack.c.l.bf16 %v2273
    %v2378 = vunpack.c.l.bf16 %v2274
    %v2379 = vunpack.c.h.bf16 %v2274
    %v2380 = vunpack.c.l.bf16 %v2275
    %v2381 = vunpack.c.l.bf16 %v2276
    %v2382 = vunpack.c.h.bf16 %v2276
    %v2383 = vunpack.c.l.bf16 %v2277
    %v2384 = vunpack.c.l.bf16 %v2278
    %v2385 = vunpack.c.h.bf16 %v2278
    %v2386 = vunpack.c.l.bf16 %v2279
    %v2387 = vunpack.c.l.bf16 %v2280
    %v2388 = vunpack.c.h.bf16 %v2280
    %v2389 = vunpack.c.l.bf16 %v2281
    %v2390 = vunpack.c.l.bf16 %v2282
    %v2391 = vunpack.c.h.bf16 %v2282
    %v2392 = vunpack.c.l.bf16 %v2283
    %v2393 = vunpack.c.l.bf16 %v2284
    %v2394 = vunpack.c.h.bf16 %v2284
    %v2395 = vunpack.c.l.bf16 %v2285
    %v2396 = vunpack.c.l.bf16 %v2286
    %v2397 = vunpack.c.h.bf16 %v2286
    %v2398 = vunpack.c.l.bf16 %v2287
    %v2399 = vunpack.c.l.bf16 %v2288
    %v2400 = vunpack.c.h.bf16 %v2288
    %v2401 = vunpack.c.l.bf16 %v2289
    %v2402 = vunpack.c.l.bf16 %v2290
    %v2403 = vunpack.c.h.bf16 %v2290
    %v2404 = vunpack.c.l.bf16 %v2291
    %v2405 = vunpack.c.l.bf16 %v2292
    %v2406 = vunpack.c.h.bf16 %v2292
    %v2407 = vunpack.c.l.bf16 %v2293
    %v2408 = vunpack.c.l.bf16 %v2294
    %v2409 = vunpack.c.h.bf16 %v2294
    %v2410 = vunpack.c.l.bf16 %v2295
    %v2411 = vunpack.c.l.bf16 %v2296
    %v2412 = vunpack.c.h.bf16 %v2296
    %v2413 = vunpack.c.l.bf16 %v2297
    %v2414 = vunpack.c.l.bf16 %v2298
    %v2415 = vunpack.c.h.bf16 %v2298
    %v2416 = vunpack.c.l.bf16 %v2299
    %v2417 = vunpack.c.l.bf16 %v2300
    %v2418 = vunpack.c.h.bf16 %v2300
    %v2419 = vunpack.c.l.bf16 %v2301
    %v2420 = vunpack.c.l.bf16 %v2302
    %v2421 = vunpack.c.h.bf16 %v2302
    %v2422 = vunpack.c.l.bf16 %v2303
    %v2423 = vunpack.c.l.bf16 %v2304
    %v2424 = vunpack.c.h.bf16 %v2304
    %v2425 = vunpack.c.l.bf16 %v2305
    %v2426 = vunpack.c.l.bf16 %v2306
    %v2427 = vunpack.c.h.bf16 %v2306
    %v2428 = vunpack.c.l.bf16 %v2307
    %v2429 = vunpack.c.l.bf16 %v2308
    %v2430 = vunpack.c.h.bf16 %v2308
    %v2431 = vunpack.c.l.bf16 %v2309
    %v2432 = vunpack.c.l.bf16 %v2310
    %v2433 = vunpack.c.h.bf16 %v2310
    %v2434 = vunpack.c.l.bf16 %v2311
    %v2435 = vunpack.c.l.bf16 %v2312
    %v2436 = vunpack.c.h.bf16 %v2312
    %v2437 = vunpack.c.l.bf16 %v2313
    %v2438 = vunpack.c.l.bf16 %v2314
    %v2439 = vunpack.c.h.bf16 %v2314
    %v2440 = vunpack.c.l.bf16 %v2315
    %v2441 = vunpack.c.l.bf16 %v2316
    %v2442 = vunpack.c.h.bf16 %v2316
    %v2443 = vunpack.c.l.bf16 %v2317
    %v2444 = vunpack.c.l.bf16 %v2318
    %v2445 = vunpack.c.h.bf16 %v2318
    %v2446 = vunpack.c.l.bf16 %v2319
    %v2447 = vunpack.c.l.bf16 %v2320
    %v2448 = vunpack.c.h.bf16 %v2320
    %v2449 = vunpack.c.l.bf16 %v2321
    %v2450 = vunpack.c.l.bf16 %v2322
    %v2451 = vunpack.c.h.bf16 %v2322
    %v2452 = vunpack.c.l.bf16 %v2323
    %v2453 = vunpack.c.l.bf16 %v2324
    %v2454 = vunpack.c.h.bf16 %v2324
    %v2455 = vunpack.c.l.bf16 %v2325
    %v2456 = vunpack.c.l.bf16 %v2326
    %v2457 = vunpack.c.h.bf16 %v2326
    %v2458 = vunpack.c.l.bf16 %v2327
    %v2459 = vunpack.c.l.bf16 %v2328
    %v2460 = vunpack.c.h.bf16 %v2328
    %v2461 = vunpack.c.l.bf16 %v2329
    %v2462 = vunpack.c.l.bf16 %v2330
    %v2463 = vunpack.c.h.bf16 %v2330
    %v2464 = vunpack.c.l.bf16 %v2331
    %v2465 = vunpack.c.l.bf16 %v2332
    %v2466 = vunpack.c.h.bf16 %v2332
    %v2467 = vunpack.c.l.bf16 %v2333
    %v2468 = vunpack.c.l.bf16 %v2334
    %v2469 = vunpack.c.h.bf16 %v2334
    %v2470 = vunpack.c.l.bf16 %v2335
    %v2471 = vunpack.c.l.bf16 %v2336
    %v2472 = vunpack.c.h.bf16 %v2336
    %v2473 = vunpack.c.l.bf16 %v2337
    %v2474 = vunpack.c.l.bf16 %v2338
    %v2475 = vunpack.c.h.bf16 %v2338
    %v2476 = vunpack.c.l.bf16 %v2339
    %v2477 = vunpack.c.l.bf16 %v2340
    %v2478 = vunpack.c.h.bf16 %v2340
    %v2479 = vunpack.c.l.bf16 %v2341
    %v2480 = vunpack.c.l.bf16 %v2342
    %v2481 = vunpack.c.h.bf16 %v2342
    %v2482 = vunpack.c.l.bf16 %v2343
    %v2483 = vunpack.c.l.bf16 %v2344
    %v2484 = vunpack.c.h.bf16 %v2344
    %v2485 = vunpack.c.l.bf16 %v2345
    %v2486 = vunpack.c.l.bf16 %v2346
    %v2487 = vunpack.c.h.bf16 %v2346
    %v2488 = vunpack.c.l.bf16 %v2347
    %v2489 = vunpack.c.l.bf16 %v2348
    %v2490 = vunpack.c.h.bf16 %v2348
    %v2491 = vunpack.c.l.bf16 %v2349
    %v2492 = vunpack.c.l.bf16 %v2350
    %v2493 = vunpack.c.h.bf16 %v2350
    %v2494 = vunpack.c.l.bf16 %v2351
    %v2495 = vunpack.c.l.bf16 %v2352
    %v2496 = vunpack.c.h.bf16 %v2352
    %v2497 = vunpack.c.l.bf16 %v2353
    %v2498 = vunpack.c.l.bf16 %v2354
    %v2499 = vunpack.c.h.bf16 %v2354
    %v2500 = vunpack.c.l.bf16 %v2355
    %v2501 = vunpack.c.l.bf16 %v2356
    %v2502 = vunpack.c.h.bf16 %v2356
    %v2503 = vunpack.c.l.bf16 %v2357
    %v2504 = vunpack.c.l.bf16 %v2358
    %v2505 = vunpack.c.h.bf16 %v2358
    %v2506 = vunpack.c.l.bf16 %v2359
    %v2507 = vunpack.c.l.bf16 %v2360
    %v2508 = vunpack.c.h.bf16 %v2360
    %v2509 = vunpack.c.l.bf16 %v2361
    %v2510 = vunpack.c.l.bf16 %v2362
    %v2511 = vunpack.c.h.bf16 %v2362
    %v2512 = vunpack.c.l.bf16 %v2363
    %v2513 = vunpack.c.l.bf16 %v2364
    %v2514 = vunpack.c.h.bf16 %v2364
    %v2515 = vunpack.c.l.bf16 %v2365
    %s2516 = scalar_lea.vmem %s1, 2
    %v2517 = vld [vmem:[%s2516] ss:$8 sm:$0x7]
    %v2519 = vperm.slane %v2517, 0
    %v2520 = vperm.slane %v2517, 1
    %v2521 = vperm.slane %v2517, 2
    %vm2525 = vcmask 130048
    %v2527 = vsel %vm2525, %v2261, 0
    %2529 = vmatpush.msra.mxu0 %v2411
    %2530 = vmatpush.msra.mxu0 %v2408
    %2531 = vmatpush.msra.mxu0 %v2405
    %2532 = vmatpush.msra.mxu0 %v2402
    %2533 = vmatpush.msra.mxu0 %v2399
    %2534 = vmatpush.msra.mxu0 %v2396
    %2535 = vmatpush.msra.mxu0 %v2393
    %2536 = vmatpush.msra.mxu0 %v2390
    %2537 = vmatpush.msra.mxu0 %v2387
    %2538 = vmatpush.msra.mxu0 %v2384
    %2539 = vmatpush.msra.mxu0 %v2381
    %2540 = vmatpush.msra.mxu0 %v2378
    %2541 = vmatpush.msra.mxu0 %v2375
    %2542 = vmatpush.msra.mxu0 %v2372
    %2543 = vmatpush.msra.mxu0 %v2369
    %2544 = vmatpush.msra.mxu0 %v2366
    %2545 = vmatmul.f32.gmra.mxu0 %v2258
    %v2546 = vpop.f32.mrf.mxu0
    %v2547 = vadd.f32 %v2519, %v2546
    %2548 = vdwg.mxu0
    %2549 = vmatpush.msra.mxu0 %v2459
    %2550 = vmatpush.msra.mxu0 %v2456
    %2551 = vmatpush.msra.mxu0 %v2453
    %2552 = vmatpush.msra.mxu0 %v2450
    %2553 = vmatpush.msra.mxu0 %v2447
    %2554 = vmatpush.msra.mxu0 %v2444
    %2555 = vmatpush.msra.mxu0 %v2441
    %2556 = vmatpush.msra.mxu0 %v2438
    %2557 = vmatpush.msra.mxu0 %v2435
    %2558 = vmatpush.msra.mxu0 %v2432
    %2559 = vmatpush.msra.mxu0 %v2429
    %2560 = vmatpush.msra.mxu0 %v2426
    %2561 = vmatpush.msra.mxu0 %v2423
    %2562 = vmatpush.msra.mxu0 %v2420
    %2563 = vmatpush.msra.mxu0 %v2417
    %2564 = vmatpush.msra.mxu0 %v2414
    %2565 = vmatmul.f32.gmra.mxu0 %v2259
    %v2566 = vpop.f32.mrf.mxu0
    %v2567 = vadd.f32 %v2547, %v2566
    %2568 = vdwg.mxu0
    %2569 = vmatpush.msra.mxu0 %v2507
    %2570 = vmatpush.msra.mxu0 %v2504
    %2571 = vmatpush.msra.mxu0 %v2501
    %2572 = vmatpush.msra.mxu0 %v2498
    %2573 = vmatpush.msra.mxu0 %v2495
    %2574 = vmatpush.msra.mxu0 %v2492
    %2575 = vmatpush.msra.mxu0 %v2489
    %2576 = vmatpush.msra.mxu0 %v2486
    %2577 = vmatpush.msra.mxu0 %v2483
    %2578 = vmatpush.msra.mxu0 %v2480
    %2579 = vmatpush.msra.mxu0 %v2477
    %2580 = vmatpush.msra.mxu0 %v2474
    %2581 = vmatpush.msra.mxu0 %v2471
    %2582 = vmatpush.msra.mxu0 %v2468
    %2583 = vmatpush.msra.mxu0 %v2465
    %2584 = vmatpush.msra.mxu0 %v2462
    %2585 = vmatmul.f32.gmra.mxu0 %v2260
    %v2586 = vpop.f32.mrf.mxu0
    %v2587 = vadd.f32 %v2567, %v2586
    %2588 = vdwg.mxu0
    %2589 = vmatpush.msra.mxu0 0.0
    %2590 = vmatpush.msra.mxu0 0.0
    %2591 = vmatpush.msra.mxu0 0.0
    %2592 = vmatpush.msra.mxu0 0.0
    %2593 = vmatpush.msra.mxu0 0.0
    %2594 = vmatpush.msra.mxu0 0.0
    %2595 = vmatpush.msra.mxu0 0.0
    %2596 = vmatpush.msra.mxu0 0.0
    %2597 = vmatpush.msra.mxu0 0.0
    %2598 = vmatpush.msra.mxu0 0.0
    %2599 = vmatpush.msra.mxu0 0.0
    %2600 = vmatpush.msra.mxu0 0.0
    %2601 = vmatpush.msra.mxu0 0.0
    %2602 = vmatpush.msra.mxu0 0.0
    %2603 = vmatpush.msra.mxu0 %v2513
    %2604 = vmatpush.msra.mxu0 %v2510
    %2605 = vmatmul.f32.gmra.mxu0 %v2527
    %v2606 = vpop.f32.mrf.mxu0
    %v2607 = vadd.f32 %v2587, %v2606
    %2608 = vdwg.mxu0
    %2609 = vmatpush.msra.mxu0 %v2412
    %2610 = vmatpush.msra.mxu0 %v2409
    %2611 = vmatpush.msra.mxu0 %v2406
    %2612 = vmatpush.msra.mxu0 %v2403
    %2613 = vmatpush.msra.mxu0 %v2400
    %2614 = vmatpush.msra.mxu0 %v2397
    %2615 = vmatpush.msra.mxu0 %v2394
    %2616 = vmatpush.msra.mxu0 %v2391
    %2617 = vmatpush.msra.mxu0 %v2388
    %2618 = vmatpush.msra.mxu0 %v2385
    %2619 = vmatpush.msra.mxu0 %v2382
    %2620 = vmatpush.msra.mxu0 %v2379
    %2621 = vmatpush.msra.mxu0 %v2376
    %2622 = vmatpush.msra.mxu0 %v2373
    %2623 = vmatpush.msra.mxu0 %v2370
    %2624 = vmatpush.msra.mxu0 %v2367
    %2625 = vmatmul.f32.gmra.mxu0 %v2258
    %v2626 = vpop.f32.mrf.mxu0
    %v2627 = vadd.f32 %v2520, %v2626
    %2628 = vdwg.mxu0
    %2629 = vmatpush.msra.mxu0 %v2460
    %2630 = vmatpush.msra.mxu0 %v2457
    %2631 = vmatpush.msra.mxu0 %v2454
    %2632 = vmatpush.msra.mxu0 %v2451
    %2633 = vmatpush.msra.mxu0 %v2448
    %2634 = vmatpush.msra.mxu0 %v2445
    %2635 = vmatpush.msra.mxu0 %v2442
    %2636 = vmatpush.msra.mxu0 %v2439
    %2637 = vmatpush.msra.mxu0 %v2436
    %2638 = vmatpush.msra.mxu0 %v2433
    %2639 = vmatpush.msra.mxu0 %v2430
    %2640 = vmatpush.msra.mxu0 %v2427
    %2641 = vmatpush.msra.mxu0 %v2424
    %2642 = vmatpush.msra.mxu0 %v2421
    %2643 = vmatpush.msra.mxu0 %v2418
    %2644 = vmatpush.msra.mxu0 %v2415
    %2645 = vmatmul.f32.gmra.mxu0 %v2259
    %v2646 = vpop.f32.mrf.mxu0
    %v2647 = vadd.f32 %v2627, %v2646
    %2648 = vdwg.mxu0
    %2649 = vmatpush.msra.mxu0 %v2508
    %2650 = vmatpush.msra.mxu0 %v2505
    %2651 = vmatpush.msra.mxu0 %v2502
    %2652 = vmatpush.msra.mxu0 %v2499
    %2653 = vmatpush.msra.mxu0 %v2496
    %2654 = vmatpush.msra.mxu0 %v2493
    %2655 = vmatpush.msra.mxu0 %v2490
    %2656 = vmatpush.msra.mxu0 %v2487
    %2657 = vmatpush.msra.mxu0 %v2484
    %2658 = vmatpush.msra.mxu0 %v2481
    %2659 = vmatpush.msra.mxu0 %v2478
    %2660 = vmatpush.msra.mxu0 %v2475
    %2661 = vmatpush.msra.mxu0 %v2472
    %2662 = vmatpush.msra.mxu0 %v2469
    %2663 = vmatpush.msra.mxu0 %v2466
    %2664 = vmatpush.msra.mxu0 %v2463
    %2665 = vmatmul.f32.gmra.mxu0 %v2260
    %v2666 = vpop.f32.mrf.mxu0
    %v2667 = vadd.f32 %v2647, %v2666
    %2668 = vdwg.mxu0
    %2669 = vmatpush.msra.mxu0 0.0
    %2670 = vmatpush.msra.mxu0 0.0
    %2671 = vmatpush.msra.mxu0 0.0
    %2672 = vmatpush.msra.mxu0 0.0
    %2673 = vmatpush.msra.mxu0 0.0
    %2674 = vmatpush.msra.mxu0 0.0
    %2675 = vmatpush.msra.mxu0 0.0
    %2676 = vmatpush.msra.mxu0 0.0
    %2677 = vmatpush.msra.mxu0 0.0
    %2678 = vmatpush.msra.mxu0 0.0
    %2679 = vmatpush.msra.mxu0 0.0
    %2680 = vmatpush.msra.mxu0 0.0
    %2681 = vmatpush.msra.mxu0 0.0
    %2682 = vmatpush.msra.mxu0 0.0
    %2683 = vmatpush.msra.mxu0 %v2514
    %2684 = vmatpush.msra.mxu0 %v2511
    %2685 = vmatmul.f32.gmra.mxu0 %v2527
    %v2686 = vpop.f32.mrf.mxu0
    %v2687 = vadd.f32 %v2667, %v2686
    %2688 = vdwg.mxu0
    %2689 = vmatpush.msra.mxu0 %v2413
    %2690 = vmatpush.msra.mxu0 %v2410
    %2691 = vmatpush.msra.mxu0 %v2407
    %2692 = vmatpush.msra.mxu0 %v2404
    %2693 = vmatpush.msra.mxu0 %v2401
    %2694 = vmatpush.msra.mxu0 %v2398
    %2695 = vmatpush.msra.mxu0 %v2395
    %2696 = vmatpush.msra.mxu0 %v2392
    %2697 = vmatpush.msra.mxu0 %v2389
    %2698 = vmatpush.msra.mxu0 %v2386
    %2699 = vmatpush.msra.mxu0 %v2383
    %2700 = vmatpush.msra.mxu0 %v2380
    %2701 = vmatpush.msra.mxu0 %v2377
    %2702 = vmatpush.msra.mxu0 %v2374
    %2703 = vmatpush.msra.mxu0 %v2371
    %2704 = vmatpush.msra.mxu0 %v2368
    %2705 = vmatmul.f32.gmra.mxu0 %v2258
    %v2706 = vpop.f32.mrf.mxu0
    %v2707 = vadd.f32 %v2521, %v2706
    %2708 = vdwg.mxu0
    %2709 = vmatpush.msra.mxu0 %v2461
    %2710 = vmatpush.msra.mxu0 %v2458
    %2711 = vmatpush.msra.mxu0 %v2455
    %2712 = vmatpush.msra.mxu0 %v2452
    %2713 = vmatpush.msra.mxu0 %v2449
    %2714 = vmatpush.msra.mxu0 %v2446
    %2715 = vmatpush.msra.mxu0 %v2443
    %2716 = vmatpush.msra.mxu0 %v2440
    %2717 = vmatpush.msra.mxu0 %v2437
    %2718 = vmatpush.msra.mxu0 %v2434
    %2719 = vmatpush.msra.mxu0 %v2431
    %2720 = vmatpush.msra.mxu0 %v2428
    %2721 = vmatpush.msra.mxu0 %v2425
    %2722 = vmatpush.msra.mxu0 %v2422
    %2723 = vmatpush.msra.mxu0 %v2419
    %2724 = vmatpush.msra.mxu0 %v2416
    %2725 = vmatmul.f32.gmra.mxu0 %v2259
    %v2726 = vpop.f32.mrf.mxu0
    %v2727 = vadd.f32 %v2707, %v2726
    %2728 = vdwg.mxu0
    %2729 = vmatpush.msra.mxu0 %v2509
    %2730 = vmatpush.msra.mxu0 %v2506
    %2731 = vmatpush.msra.mxu0 %v2503
    %2732 = vmatpush.msra.mxu0 %v2500
    %2733 = vmatpush.msra.mxu0 %v2497
    %2734 = vmatpush.msra.mxu0 %v2494
    %2735 = vmatpush.msra.mxu0 %v2491
    %2736 = vmatpush.msra.mxu0 %v2488
    %2737 = vmatpush.msra.mxu0 %v2485
    %2738 = vmatpush.msra.mxu0 %v2482
    %2739 = vmatpush.msra.mxu0 %v2479
    %2740 = vmatpush.msra.mxu0 %v2476
    %2741 = vmatpush.msra.mxu0 %v2473
    %2742 = vmatpush.msra.mxu0 %v2470
    %2743 = vmatpush.msra.mxu0 %v2467
    %2744 = vmatpush.msra.mxu0 %v2464
    %2745 = vmatmul.f32.gmra.mxu0 %v2260
    %v2746 = vpop.f32.mrf.mxu0
    %v2747 = vadd.f32 %v2727, %v2746
    %2748 = vdwg.mxu0
    %2749 = vmatpush.msra.mxu0 0.0
    %2750 = vmatpush.msra.mxu0 0.0
    %2751 = vmatpush.msra.mxu0 0.0
    %2752 = vmatpush.msra.mxu0 0.0
    %2753 = vmatpush.msra.mxu0 0.0
    %2754 = vmatpush.msra.mxu0 0.0
    %2755 = vmatpush.msra.mxu0 0.0
    %2756 = vmatpush.msra.mxu0 0.0
    %2757 = vmatpush.msra.mxu0 0.0
    %2758 = vmatpush.msra.mxu0 0.0
    %2759 = vmatpush.msra.mxu0 0.0
    %2760 = vmatpush.msra.mxu0 0.0
    %2761 = vmatpush.msra.mxu0 0.0
    %2762 = vmatpush.msra.mxu0 0.0
    %2763 = vmatpush.msra.mxu0 %v2515
    %2764 = vmatpush.msra.mxu0 %v2512
    %2765 = vmatmul.f32.gmra.mxu0 %v2527
    %v2766 = vpop.f32.mrf.mxu0
    %v2767 = vadd.f32 %v2747, %v2766
    %2768 = vdwg.mxu0
    %v2769 = vmax.f32 %v2607, 0.0
    %v2770 = vmax.f32 %v2687, 0.0
    %v2771 = vmax.f32 %v2767, 0.0
    %s2772 = smul.u32 4, 35
    %s2773 = smul.u32 %s2772, 2
    %s2774 = sshll.u32 %s2773, 4
    %2775 = dma.done %s698, %s2774
    %v2776 = vld [vmem:[#allocation5] sm:$0xff]
    %v2777 = vld [vmem:[#allocation5 + $0x8] sm:$0xff]
    %v2778 = vld [vmem:[#allocation5 + $0x10] sm:$0xff]
    %v2779 = vld [vmem:[#allocation5 + $0x18] sm:$0xff]
    %v2780 = vld [vmem:[#allocation5 + $0x20] sm:$0xff]
    %v2781 = vld [vmem:[#allocation5 + $0x28] sm:$0xff]
    %v2782 = vld [vmem:[#allocation5 + $0x30] sm:$0xff]
    %v2783 = vld [vmem:[#allocation5 + $0x38] sm:$0xff]
    %v2784 = vld [vmem:[#allocation5 + $0x40] sm:$0xff]
    %v2785 = vld [vmem:[#allocation5 + $0x48] sm:$0xff]
    %v2786 = vld [vmem:[#allocation5 + $0x50] sm:$0xff]
    %v2787 = vld [vmem:[#allocation5 + $0x58] sm:$0xff]
    %v2788 = vld [vmem:[#allocation5 + $0x60] sm:$0xff]
    %v2789 = vld [vmem:[#allocation5 + $0x68] sm:$0xff]
    %v2790 = vld [vmem:[#allocation5 + $0x70] sm:$0xff]
    %v2791 = vld [vmem:[#allocation5 + $0x78] sm:$0xff]
    %v2792 = vld [vmem:[#allocation5 + $0x80] sm:$0xff]
    %v2793 = vld [vmem:[#allocation5 + $0x88] sm:$0xff]
    %v2794 = vld [vmem:[#allocation5 + $0x90] sm:$0xff]
    %v2795 = vld [vmem:[#allocation5 + $0x98] sm:$0xff]
    %v2796 = vld [vmem:[#allocation5 + $0xa0] sm:$0xff]
    %v2797 = vld [vmem:[#allocation5 + $0xa8] sm:$0xff]
    %v2798 = vld [vmem:[#allocation5 + $0xb0] sm:$0xff]
    %v2799 = vld [vmem:[#allocation5 + $0xb8] sm:$0xff]
    %v2800 = vld [vmem:[#allocation5 + $0xc0] sm:$0xff]
    %v2801 = vld [vmem:[#allocation5 + $0xc8] sm:$0xff]
    %v2802 = vld [vmem:[#allocation5 + $0xd0] sm:$0xff]
    %v2803 = vld [vmem:[#allocation5 + $0xd8] sm:$0xff]
    %v2804 = vld [vmem:[#allocation5 + $0xe0] sm:$0xff]
    %v2805 = vld [vmem:[#allocation5 + $0xe8] sm:$0xff]
    %v2806 = vld [vmem:[#allocation5 + $0xf0] sm:$0xff]
    %v2807 = vld [vmem:[#allocation5 + $0xf8] sm:$0xff]
    %v2808 = vld [vmem:[#allocation5 + $0x100] sm:$0xff]
    %v2809 = vld [vmem:[#allocation5 + $0x108] sm:$0xff]
    %v2810 = vld [vmem:[#allocation5 + $0x110] sm:$0xff]
    %v2811 = vunpack.c.l.bf16 %v2776
    %v2812 = vunpack.c.h.bf16 %v2776
    %v2813 = vunpack.c.l.bf16 %v2777
    %v2814 = vunpack.c.h.bf16 %v2777
    %v2815 = vunpack.c.l.bf16 %v2778
    %v2816 = vunpack.c.h.bf16 %v2778
    %v2817 = vunpack.c.l.bf16 %v2779
    %v2818 = vunpack.c.h.bf16 %v2779
    %v2819 = vunpack.c.l.bf16 %v2780
    %v2820 = vunpack.c.h.bf16 %v2780
    %v2821 = vunpack.c.l.bf16 %v2781
    %v2822 = vunpack.c.h.bf16 %v2781
    %v2823 = vunpack.c.l.bf16 %v2782
    %v2824 = vunpack.c.h.bf16 %v2782
    %v2825 = vunpack.c.l.bf16 %v2783
    %v2826 = vunpack.c.h.bf16 %v2783
    %v2827 = vunpack.c.l.bf16 %v2784
    %v2828 = vunpack.c.h.bf16 %v2784
    %v2829 = vunpack.c.l.bf16 %v2785
    %v2830 = vunpack.c.h.bf16 %v2785
    %v2831 = vunpack.c.l.bf16 %v2786
    %v2832 = vunpack.c.h.bf16 %v2786
    %v2833 = vunpack.c.l.bf16 %v2787
    %v2834 = vunpack.c.h.bf16 %v2787
    %v2835 = vunpack.c.l.bf16 %v2788
    %v2836 = vunpack.c.h.bf16 %v2788
    %v2837 = vunpack.c.l.bf16 %v2789
    %v2838 = vunpack.c.h.bf16 %v2789
    %v2839 = vunpack.c.l.bf16 %v2790
    %v2840 = vunpack.c.h.bf16 %v2790
    %v2841 = vunpack.c.l.bf16 %v2791
    %v2842 = vunpack.c.h.bf16 %v2791
    %v2843 = vunpack.c.l.bf16 %v2792
    %v2844 = vunpack.c.h.bf16 %v2792
    %v2845 = vunpack.c.l.bf16 %v2793
    %v2846 = vunpack.c.h.bf16 %v2793
    %v2847 = vunpack.c.l.bf16 %v2794
    %v2848 = vunpack.c.h.bf16 %v2794
    %v2849 = vunpack.c.l.bf16 %v2795
    %v2850 = vunpack.c.h.bf16 %v2795
    %v2851 = vunpack.c.l.bf16 %v2796
    %v2852 = vunpack.c.h.bf16 %v2796
    %v2853 = vunpack.c.l.bf16 %v2797
    %v2854 = vunpack.c.h.bf16 %v2797
    %v2855 = vunpack.c.l.bf16 %v2798
    %v2856 = vunpack.c.h.bf16 %v2798
    %v2857 = vunpack.c.l.bf16 %v2799
    %v2858 = vunpack.c.h.bf16 %v2799
    %v2859 = vunpack.c.l.bf16 %v2800
    %v2860 = vunpack.c.h.bf16 %v2800
    %v2861 = vunpack.c.l.bf16 %v2801
    %v2862 = vunpack.c.h.bf16 %v2801
    %v2863 = vunpack.c.l.bf16 %v2802
    %v2864 = vunpack.c.h.bf16 %v2802
    %v2865 = vunpack.c.l.bf16 %v2803
    %v2866 = vunpack.c.h.bf16 %v2803
    %v2867 = vunpack.c.l.bf16 %v2804
    %v2868 = vunpack.c.h.bf16 %v2804
    %v2869 = vunpack.c.l.bf16 %v2805
    %v2870 = vunpack.c.h.bf16 %v2805
    %v2871 = vunpack.c.l.bf16 %v2806
    %v2872 = vunpack.c.h.bf16 %v2806
    %v2873 = vunpack.c.l.bf16 %v2807
    %v2874 = vunpack.c.h.bf16 %v2807
    %v2875 = vunpack.c.l.bf16 %v2808
    %v2876 = vunpack.c.h.bf16 %v2808
    %v2877 = vunpack.c.l.bf16 %v2809
    %v2878 = vunpack.c.h.bf16 %v2809
    %v2879 = vunpack.c.l.bf16 %v2810
    %v2880 = vunpack.c.h.bf16 %v2810
    %s2881 = scalar_lea.vmem %s1, 3
    %v2882 = vld [vmem:[%s2881] ss:$8 sm:$0x3]
    %v2884 = vperm.slane %v2882, 0
    %v2885 = vperm.slane %v2882, 1
    %vm2888 = vcmask 195584
    %v2890 = vsel %vm2888, %v2771, 0
    %2892 = vmatpush.msra.mxu0 %v2841
    %2893 = vmatpush.msra.mxu0 %v2839
    %2894 = vmatpush.msra.mxu0 %v2837
    %2895 = vmatpush.msra.mxu0 %v2835
    %2896 = vmatpush.msra.mxu0 %v2833
    %2897 = vmatpush.msra.mxu0 %v2831
    %2898 = vmatpush.msra.mxu0 %v2829
    %2899 = vmatpush.msra.mxu0 %v2827
    %2900 = vmatpush.msra.mxu0 %v2825
    %2901 = vmatpush.msra.mxu0 %v2823
    %2902 = vmatpush.msra.mxu0 %v2821
    %2903 = vmatpush.msra.mxu0 %v2819
    %2904 = vmatpush.msra.mxu0 %v2817
    %2905 = vmatpush.msra.mxu0 %v2815
    %2906 = vmatpush.msra.mxu0 %v2813
    %2907 = vmatpush.msra.mxu0 %v2811
    %2908 = vmatmul.f32.gmra.mxu0 %v2769
    %v2909 = vpop.f32.mrf.mxu0
    %v2910 = vadd.f32 %v2884, %v2909
    %2911 = vdwg.mxu0
    %2912 = vmatpush.msra.mxu0 %v2873
    %2913 = vmatpush.msra.mxu0 %v2871
    %2914 = vmatpush.msra.mxu0 %v2869
    %2915 = vmatpush.msra.mxu0 %v2867
    %2916 = vmatpush.msra.mxu0 %v2865
    %2917 = vmatpush.msra.mxu0 %v2863
    %2918 = vmatpush.msra.mxu0 %v2861
    %2919 = vmatpush.msra.mxu0 %v2859
    %2920 = vmatpush.msra.mxu0 %v2857
    %2921 = vmatpush.msra.mxu0 %v2855
    %2922 = vmatpush.msra.mxu0 %v2853
    %2923 = vmatpush.msra.mxu0 %v2851
    %2924 = vmatpush.msra.mxu0 %v2849
    %2925 = vmatpush.msra.mxu0 %v2847
    %2926 = vmatpush.msra.mxu0 %v2845
    %2927 = vmatpush.msra.mxu0 %v2843
    %2928 = vmatmul.f32.gmra.mxu0 %v2770
    %v2929 = vpop.f32.mrf.mxu0
    %v2930 = vadd.f32 %v2910, %v2929
    %2931 = vdwg.mxu0
    %2932 = vmatpush.msra.mxu0 0.0
    %2933 = vmatpush.msra.mxu0 0.0
    %2934 = vmatpush.msra.mxu0 0.0
    %2935 = vmatpush.msra.mxu0 0.0
    %2936 = vmatpush.msra.mxu0 0.0
    %2937 = vmatpush.msra.mxu0 0.0
    %2938 = vmatpush.msra.mxu0 0.0
    %2939 = vmatpush.msra.mxu0 0.0
    %2940 = vmatpush.msra.mxu0 0.0
    %2941 = vmatpush.msra.mxu0 0.0
    %2942 = vmatpush.msra.mxu0 0.0
    %2943 = vmatpush.msra.mxu0 0.0
    %2944 = vmatpush.msra.mxu0 0.0
    %2945 = vmatpush.msra.mxu0 %v2879
    %2946 = vmatpush.msra.mxu0 %v2877
    %2947 = vmatpush.msra.mxu0 %v2875
    %2948 = vmatmul.f32.gmra.mxu0 %v2890
    %v2949 = vpop.f32.mrf.mxu0
    %v2950 = vadd.f32 %v2930, %v2949
    %2951 = vdwg.mxu0
    %2952 = vmatpush.msra.mxu0 %v2842
    %2953 = vmatpush.msra.mxu0 %v2840
    %2954 = vmatpush.msra.mxu0 %v2838
    %2955 = vmatpush.msra.mxu0 %v2836
    %2956 = vmatpush.msra.mxu0 %v2834
    %2957 = vmatpush.msra.mxu0 %v2832
    %2958 = vmatpush.msra.mxu0 %v2830
    %2959 = vmatpush.msra.mxu0 %v2828
    %2960 = vmatpush.msra.mxu0 %v2826
    %2961 = vmatpush.msra.mxu0 %v2824
    %2962 = vmatpush.msra.mxu0 %v2822
    %2963 = vmatpush.msra.mxu0 %v2820
    %2964 = vmatpush.msra.mxu0 %v2818
    %2965 = vmatpush.msra.mxu0 %v2816
    %2966 = vmatpush.msra.mxu0 %v2814
    %2967 = vmatpush.msra.mxu0 %v2812
    %2968 = vmatmul.f32.gmra.mxu0 %v2769
    %v2969 = vpop.f32.mrf.mxu0
    %v2970 = vadd.f32 %v2885, %v2969
    %2971 = vdwg.mxu0
    %2972 = vmatpush.msra.mxu0 %v2874
    %2973 = vmatpush.msra.mxu0 %v2872
    %2974 = vmatpush.msra.mxu0 %v2870
    %2975 = vmatpush.msra.mxu0 %v2868
    %2976 = vmatpush.msra.mxu0 %v2866
    %2977 = vmatpush.msra.mxu0 %v2864
    %2978 = vmatpush.msra.mxu0 %v2862
    %2979 = vmatpush.msra.mxu0 %v2860
    %2980 = vmatpush.msra.mxu0 %v2858
    %2981 = vmatpush.msra.mxu0 %v2856
    %2982 = vmatpush.msra.mxu0 %v2854
    %2983 = vmatpush.msra.mxu0 %v2852
    %2984 = vmatpush.msra.mxu0 %v2850
    %2985 = vmatpush.msra.mxu0 %v2848
    %2986 = vmatpush.msra.mxu0 %v2846
    %2987 = vmatpush.msra.mxu0 %v2844
    %2988 = vmatmul.f32.gmra.mxu0 %v2770
    %v2989 = vpop.f32.mrf.mxu0
    %v2990 = vadd.f32 %v2970, %v2989
    %2991 = vdwg.mxu0
    %2992 = vmatpush.msra.mxu0 0.0
    %2993 = vmatpush.msra.mxu0 0.0
    %2994 = vmatpush.msra.mxu0 0.0
    %2995 = vmatpush.msra.mxu0 0.0
    %2996 = vmatpush.msra.mxu0 0.0
    %2997 = vmatpush.msra.mxu0 0.0
    %2998 = vmatpush.msra.mxu0 0.0
    %2999 = vmatpush.msra.mxu0 0.0
    %3000 = vmatpush.msra.mxu0 0.0
    %3001 = vmatpush.msra.mxu0 0.0
    %3002 = vmatpush.msra.mxu0 0.0
    %3003 = vmatpush.msra.mxu0 0.0
    %3004 = vmatpush.msra.mxu0 0.0
    %3005 = vmatpush.msra.mxu0 %v2880
    %3006 = vmatpush.msra.mxu0 %v2878
    %3007 = vmatpush.msra.mxu0 %v2876
    %3008 = vmatmul.f32.gmra.mxu0 %v2890
    %v3009 = vpop.f32.mrf.mxu0
    %v3010 = vadd.f32 %v2990, %v3009
    %3011 = vdwg.mxu0
    %v3012 = vmax.f32 %v2950, 0.0
    %v3013 = vmax.f32 %v3010, 0.0
    %s3014 = smul.u32 4, 23
    %s3015 = smul.u32 %s3014, 1
    %s3016 = sshll.u32 %s3015, 4
    %3017 = dma.done %s785, %s3016
    %v3018 = vld [vmem:[#allocation6] sm:$0xf]
    %v3019 = vld [vmem:[#allocation6 + $0x4] sm:$0xf]
    %v3020 = vld [vmem:[#allocation6 + $0x8] sm:$0xf]
    %v3021 = vld [vmem:[#allocation6 + $0xc] sm:$0xf]
    %v3022 = vld [vmem:[#allocation6 + $0x10] sm:$0xf]
    %v3023 = vld [vmem:[#allocation6 + $0x14] sm:$0xf]
    %v3024 = vld [vmem:[#allocation6 + $0x18] sm:$0xf]
    %v3025 = vld [vmem:[#allocation6 + $0x1c] sm:$0xf]
    %v3026 = vld [vmem:[#allocation6 + $0x20] sm:$0xf]
    %v3027 = vld [vmem:[#allocation6 + $0x24] sm:$0xf]
    %v3028 = vld [vmem:[#allocation6 + $0x28] sm:$0xf]
    %v3029 = vld [vmem:[#allocation6 + $0x2c] sm:$0xf]
    %v3030 = vld [vmem:[#allocation6 + $0x30] sm:$0xf]
    %v3031 = vld [vmem:[#allocation6 + $0x34] sm:$0xf]
    %v3032 = vld [vmem:[#allocation6 + $0x38] sm:$0xf]
    %v3033 = vld [vmem:[#allocation6 + $0x3c] sm:$0xf]
    %v3034 = vld [vmem:[#allocation6 + $0x40] sm:$0xf]
    %v3035 = vld [vmem:[#allocation6 + $0x44] sm:$0xf]
    %v3036 = vld [vmem:[#allocation6 + $0x48] sm:$0xf]
    %v3037 = vld [vmem:[#allocation6 + $0x4c] sm:$0xf]
    %v3038 = vld [vmem:[#allocation6 + $0x50] sm:$0xf]
    %v3039 = vld [vmem:[#allocation6 + $0x54] sm:$0xf]
    %v3040 = vld [vmem:[#allocation6 + $0x58] sm:$0x3]
    %v3041 = vunpack.c.l.bf16 %v3018
    %v3042 = vunpack.c.l.bf16 %v3019
    %v3043 = vunpack.c.l.bf16 %v3020
    %v3044 = vunpack.c.l.bf16 %v3021
    %v3045 = vunpack.c.l.bf16 %v3022
    %v3046 = vunpack.c.l.bf16 %v3023
    %v3047 = vunpack.c.l.bf16 %v3024
    %v3048 = vunpack.c.l.bf16 %v3025
    %v3049 = vunpack.c.l.bf16 %v3026
    %v3050 = vunpack.c.l.bf16 %v3027
    %v3051 = vunpack.c.l.bf16 %v3028
    %v3052 = vunpack.c.l.bf16 %v3029
    %v3053 = vunpack.c.l.bf16 %v3030
    %v3054 = vunpack.c.l.bf16 %v3031
    %v3055 = vunpack.c.l.bf16 %v3032
    %v3056 = vunpack.c.l.bf16 %v3033
    %v3057 = vunpack.c.l.bf16 %v3034
    %v3058 = vunpack.c.l.bf16 %v3035
    %v3059 = vunpack.c.l.bf16 %v3036
    %v3060 = vunpack.c.l.bf16 %v3037
    %v3061 = vunpack.c.l.bf16 %v3038
    %v3062 = vunpack.c.l.bf16 %v3039
    %v3063 = vunpack.c.l.bf16 %v3040
    %v3064 = vld [vmem:[%s1 + $0x4] ss:$0 sm:$0xff]
    %vm3065 = vcmask 424960
    %v3067 = vsel %vm3065, %v3013, 0
    %vm3069 = vcmask 1043456
    %v3071 = vsel %vm3069, %v3063, 0
    %3073 = vmatpush.msra.mxu0 %v3056
    %3074 = vmatpush.msra.mxu0 %v3055
    %3075 = vmatpush.msra.mxu0 %v3054
    %3076 = vmatpush.msra.mxu0 %v3053
    %3077 = vmatpush.msra.mxu0 %v3052
    %3078 = vmatpush.msra.mxu0 %v3051
    %3079 = vmatpush.msra.mxu0 %v3050
    %3080 = vmatpush.msra.mxu0 %v3049
    %3081 = vmatpush.msra.mxu0 %v3048
    %3082 = vmatpush.msra.mxu0 %v3047
    %3083 = vmatpush.msra.mxu0 %v3046
    %3084 = vmatpush.msra.mxu0 %v3045
    %3085 = vmatpush.msra.mxu0 %v3044
    %3086 = vmatpush.msra.mxu0 %v3043
    %3087 = vmatpush.msra.mxu0 %v3042
    %3088 = vmatpush.msra.mxu0 %v3041
    %3089 = vmatmul.f32.gmra.mxu0 %v3012
    %v3090 = vpop.f32.mrf.mxu0
    %v3091 = vadd.f32 %v3064, %v3090
    %3092 = vdwg.mxu0
    %3093 = vmatpush.msra.mxu0 0.0
    %3094 = vmatpush.msra.mxu0 0.0
    %3095 = vmatpush.msra.mxu0 0.0
    %3096 = vmatpush.msra.mxu0 0.0
    %3097 = vmatpush.msra.mxu0 0.0
    %3098 = vmatpush.msra.mxu0 0.0
    %3099 = vmatpush.msra.mxu0 0.0
    %3100 = vmatpush.msra.mxu0 0.0
    %3101 = vmatpush.msra.mxu0 0.0
    %3102 = vmatpush.msra.mxu0 %v3071
    %3103 = vmatpush.msra.mxu0 %v3062
    %3104 = vmatpush.msra.mxu0 %v3061
    %3105 = vmatpush.msra.mxu0 %v3060
    %3106 = vmatpush.msra.mxu0 %v3059
    %3107 = vmatpush.msra.mxu0 %v3058
    %3108 = vmatpush.msra.mxu0 %v3057
    %3109 = vmatmul.f32.gmra.mxu0 %v3067
    %v3110 = vpop.f32.mrf.mxu0
    %v3111 = vadd.f32 %v3091, %v3110
    %3112 = vdwg.mxu0
    %v3113 = vmax.f32 %v3111, 0.0
    %s3114 = smul.u32 4, 13
    %s3115 = smul.u32 %s3114, 1
    %s3116 = sshll.u32 %s3115, 4
    %3117 = dma.done %s836, %s3116
    %v3118 = vld [vmem:[#allocation7] sm:$0xf]
    %v3119 = vld [vmem:[#allocation7 + $0x4] sm:$0xf]
    %v3120 = vld [vmem:[#allocation7 + $0x8] sm:$0xf]
    %v3121 = vld [vmem:[#allocation7 + $0xc] sm:$0xf]
    %v3122 = vld [vmem:[#allocation7 + $0x10] sm:$0xf]
    %v3123 = vld [vmem:[#allocation7 + $0x14] sm:$0xf]
    %v3124 = vld [vmem:[#allocation7 + $0x18] sm:$0xf]
    %v3125 = vld [vmem:[#allocation7 + $0x1c] sm:$0xf]
    %v3126 = vld [vmem:[#allocation7 + $0x20] sm:$0xf]
    %v3127 = vld [vmem:[#allocation7 + $0x24] sm:$0xf]
    %v3128 = vld [vmem:[#allocation7 + $0x28] sm:$0xf]
    %v3129 = vld [vmem:[#allocation7 + $0x2c] sm:$0xf]
    %v3130 = vld [vmem:[#allocation7 + $0x30] sm:$0x3]
    %v3131 = vunpack.c.l.bf16 %v3118
    %v3132 = vunpack.c.l.bf16 %v3119
    %v3133 = vunpack.c.l.bf16 %v3120
    %v3134 = vunpack.c.l.bf16 %v3121
    %v3135 = vunpack.c.l.bf16 %v3122
    %v3136 = vunpack.c.l.bf16 %v3123
    %v3137 = vunpack.c.l.bf16 %v3124
    %v3138 = vunpack.c.l.bf16 %v3125
    %v3139 = vunpack.c.l.bf16 %v3126
    %v3140 = vunpack.c.l.bf16 %v3127
    %v3141 = vunpack.c.l.bf16 %v3128
    %v3142 = vunpack.c.l.bf16 %v3129
    %v3143 = vunpack.c.l.bf16 %v3130
    %v3144 = vld [vmem:[%s1 + $0x5] ss:$0 sm:$0xff]
    %vm3145 = vcmask 818176
    %v3147 = vsel %vm3145, %v3113, 0
    %v3150 = vsel %vm3069, %v3143, 0
    %3152 = vmatpush.msra.mxu0 0.0
    %3153 = vmatpush.msra.mxu0 0.0
    %3154 = vmatpush.msra.mxu0 0.0
    %3155 = vmatpush.msra.mxu0 %v3150
    %3156 = vmatpush.msra.mxu0 %v3142
    %3157 = vmatpush.msra.mxu0 %v3141
    %3158 = vmatpush.msra.mxu0 %v3140
    %3159 = vmatpush.msra.mxu0 %v3139
    %3160 = vmatpush.msra.mxu0 %v3138
    %3161 = vmatpush.msra.mxu0 %v3137
    %3162 = vmatpush.msra.mxu0 %v3136
    %3163 = vmatpush.msra.mxu0 %v3135
    %3164 = vmatpush.msra.mxu0 %v3134
    %3165 = vmatpush.msra.mxu0 %v3133
    %3166 = vmatpush.msra.mxu0 %v3132
    %3167 = vmatpush.msra.mxu0 %v3131
    %3168 = vmatmul.f32.gmra.mxu0 %v3147
    %v3169 = vpop.f32.mrf.mxu0
    %v3170 = vadd.f32 %v3144, %v3169
    %3171 = vdwg.mxu0
    %vm3172 = vcmask 25600
    %3173 = vst.msk [vmem:[#allocation9] sm:$0x3] %vm3172, %v3170
    // Predicated region
    $region130: #{tpu_custom_call.1} parent=1 // pred_check
      _
    $region131: #{tpu_custom_call.1} parent=1 // pred_check_branch
      %3175 = sbr.rel (0) target = $region133
    $region132: #{tpu_custom_call.1} parent=1 // pred_region
      %3177 = vsyncadd [#allocation10], 0
      %s3179 = sshll.u32 [#allocation9], 4
      %s3180 = int_to_ptr.vmem [resolvable:$true] %s3179
      %s3181 = sshll.u32 %s8, 4
      %s3182 = int_to_ptr.hbm [resolvable:$true] %s3181
      %3184 = dma.vmem_to_hbm [thread:$0]  %s3180, 32, %s3182, [#allocation10]
    $region133: #{tpu_custom_call.1} parent=1 // pred_fallthru
      _
    // Predicated region
    $region134: #{tpu_custom_call.1} parent=1 // pred_check
      _
    $region135: #{tpu_custom_call.1} parent=1 // pred_check_branch
      %3186 = sbr.rel (0) target = $region137
    $region136: #{tpu_custom_call.1} parent=1 // pred_region
      %3188 = dma.done [#allocation10], 32
    $region137: #{tpu_custom_call.1} parent=1 // pred_fallthru
      _
    %3189 = vsyncpa [#allocation10], 1
  %3190 = vsyncmov [#allocation8]
  %s3191 = vpop.sfrf %3190
  %p3192 = scmp.eq.s32.totalorder %s3191, 0
  %p3193 = pneg %p3192
  %3195 = shalt.err (%p3193)
  %s3196 = scalar_lea.sflag [#allocation8], 1
  %3197 = vsyncmov %s3196
  %s3198 = vpop.sfrf %3197
  %p3199 = scmp.eq.s32.totalorder %s3198, 0
  %p3200 = pneg %p3199
  %3202 = shalt.err (%p3200)
  %s3203 = scalar_lea.sflag [#allocation8], 2
  %3204 = vsyncmov %s3203
  %s3205 = vpop.sfrf %3204
  %p3206 = scmp.eq.s32.totalorder %s3205, 0
  %p3207 = pneg %p3206
  %3209 = shalt.err (%p3207)
  %s3210 = scalar_lea.sflag [#allocation8], 3
  %3211 = vsyncmov %s3210
  %s3212 = vpop.sfrf %3211
  %p3213 = scmp.eq.s32.totalorder %s3212, 0
  %p3214 = pneg %p3213
  %3216 = shalt.err (%p3214)
  %s3217 = scalar_lea.sflag [#allocation8], 4
  %3218 = vsyncmov %s3217
  %s3219 = vpop.sfrf %3218
  %p3220 = scmp.eq.s32.totalorder %s3219, 0
  %p3221 = pneg %p3220
  %3223 = shalt.err (%p3221)
  %s3224 = scalar_lea.sflag [#allocation8], 5
  %3225 = vsyncmov %s3224
  %s3226 = vpop.sfrf %3225
  %p3227 = scmp.eq.s32.totalorder %s3226, 0
  %p3228 = pneg %p3227
  %3230 = shalt.err (%p3228)

</llo_original>
